<compile_context>
chip_gen: v5e
topology: v5e:2x2
jax: 0.10.0
libtpu: 0.0.40
codegen_flags: <defaults>
</compile_context>

<pallas_src>
import jax
import jax.numpy as jnp
import numpy as np
from jax.experimental import pallas as pl
from jax.experimental.pallas import tpu as pltpu


# ----------------------------- parameters (deterministic, synthetic) ---------

def _fold_bn(w, b, gamma, beta, mean, var, eps=1e-5):
    scale = gamma / jnp.sqrt(var + eps)
    return w * scale[None, :], (b - mean) * scale + beta


def _init_layer(key, cin, cout, with_bn=True):
    ks = jax.random.split(key, 6)
    w = jax.random.normal(ks[0], (cin, cout), jnp.float32) / np.sqrt(cin)
    b = 0.05 * jax.random.normal(ks[1], (cout,), jnp.float32)
    if with_bn:
        gamma = 1.0 + 0.1 * jax.random.normal(ks[2], (cout,), jnp.float32)
        beta = 0.1 * jax.random.normal(ks[3], (cout,), jnp.float32)
        mean = 0.1 * jax.random.normal(ks[4], (cout,), jnp.float32)
        var = 0.5 + jnp.abs(jax.random.normal(ks[5], (cout,), jnp.float32))
        w, b = _fold_bn(w, b, gamma, beta, mean, var)
    return w, b.reshape(1, cout)


def init_params(key):
    layers = [
        ("mlp1_1", 2, 16, True), ("mlp1_2", 16, 128, True),
        ("mlp2_1", 128, 32, True), ("mlp2_2", 32, 16, True), ("mlp2_3", 16, 4, False),
    ]
    keys = jax.random.split(key, len(layers))
    return {name: _init_layer(k, cin, cout, bn)
            for k, (name, cin, cout, bn) in zip(keys, layers)}


# ----------------------------- fused Pallas kernel ----------------------------

def _make_lpe_stnkd_kernel(K, tm):
    """One kernel invocation per tile of `tm` points (points on lanes, channels on sublanes)."""

    def kernel(xT_ref,
               w1T_ref, b1T_ref, w2T_ref, b2T_ref,
               w3T_ref, b3T_ref, w4T_ref, b4T_ref,
               w5T_ref, b5T_ref, o_ref):
        f32 = jnp.float32
        x = xT_ref[...]                                   # (2*K, tm), row = c*K + k

        # ---- mlp1: 2 -> 16 (VPU broadcast FMA) -> 128 (MXU), ReLU, max over K ----
        w1T = w1T_ref[...]                                # (16, 2)
        w1a = jnp.broadcast_to(w1T[:, 0:1], (16, tm))     # hoisted out of the K loop
        w1b = jnp.broadcast_to(w1T[:, 1:2], (16, tm))
        b1b = jnp.broadcast_to(b1T_ref[...], (16, tm))
        w2T = w2T_ref[...]                                # (128, 16)
        b2b = jnp.broadcast_to(b2T_ref[...], (128, tm))

        pooled = jnp.zeros((128, tm), f32)                # ReLU >= 0  =>  0-init == true max
        for k in range(K):                                # static unroll over neighbors
            h16 = jnp.maximum(w1a * x[k:k + 1, :] + w1b * x[K + k:K + k + 1, :] + b1b, 0.0)
            h128 = jnp.maximum(
                jnp.dot(w2T, h16, preferred_element_type=f32) + b2b, 0.0)
            pooled = jnp.maximum(pooled, h128)

        # ---- mlp2: 128 -> 32 -> 16 -> 4  (eye(2) folded into last bias upstream) ----
        h = jnp.maximum(jnp.dot(w3T_ref[...], pooled, preferred_element_type=f32)
                        + b3T_ref[...], 0.0)              # (32, tm)
        h = jnp.maximum(jnp.dot(w4T_ref[...], h, preferred_element_type=f32)
                        + b4T_ref[...], 0.0)              # (16, tm)
        o_ref[...] = (jnp.dot(w5T_ref[...], h, preferred_element_type=f32)
                      + b5T_ref[...])                     # (4, tm) lane-dense store

    return kernel


# ----------------------------- wrapper ----------------------------------------

def lpe_stnkd_forward(x, P, tm=512):
    B, C, N, K = x.shape
    assert C == 2, "LPE_STNKD is instantiated with input_channels=2"
    M = B * N

    # Point tile: multiple of 128 lanes, capped at `tm`; pad M up to the tile.
    tm = max(128, (tm // 128) * 128)
    tm_eff = min(tm, pl.cdiv(M, 128) * 128)
    Mp = pl.cdiv(M, tm_eff) * tm_eff

    # Channel-major, points-on-lanes slab: xT[c*K + k, b*N + n] = x[b, c, n, k]
    xT = jnp.transpose(x, (1, 3, 0, 2)).reshape(C * K, M)
    if Mp > M:
        xT = jnp.pad(xT, ((0, 0), (0, Mp - M)))

    def wb_T(name):
        w, b = P[name]
        return w.T, b.reshape(-1, 1)

    w1T, b1T = wb_T("mlp1_1")
    w2T, b2T = wb_T("mlp1_2")
    w3T, b3T = wb_T("mlp2_1")
    w4T, b4T = wb_T("mlp2_2")
    w5T, b5T = wb_T("mlp2_3")
    # Fold "+ eye(2).flatten()" into the final bias (no constant captured in kernel).
    b5T = b5T + jnp.array([1.0, 0.0, 0.0, 1.0], jnp.float32).reshape(4, 1)

    weights = [w1T, b1T, w2T, b2T, w3T, b3T, w4T, b4T, w5T, b5T]

    kernel = _make_lpe_stnkd_kernel(K=K, tm=tm_eff)
    out = pl.pallas_call(
        kernel,
        out_shape=jax.ShapeDtypeStruct((4, Mp), jnp.float32),
        grid=(Mp // tm_eff,),
        in_specs=[pl.BlockSpec((C * K, tm_eff), lambda i: (0, i))]
                 + [pl.BlockSpec(w.shape, lambda i: (0, 0)) for w in weights],
        out_specs=pl.BlockSpec((4, tm_eff), lambda i: (0, i)),
        compiler_params=pltpu.CompilerParams(
            dimension_semantics=("parallel",),            # v7x: split point tiles across 2 TCs
            vmem_limit_bytes=32 * 1024 * 1024),
    )(xT, *weights)

    out = out[:, :M]                                      # drop padded points
    # PyTorch: (B,4,N) -> transpose(1,2) -> view(-1,4) -> +I -> view(-1,2,2)
    return jnp.transpose(out, (1, 0)).reshape(M, C, C)


# ----------------------------- pure-JAX reference ------------------------------

def reference_forward(x, P):
    HI = jax.lax.Precision.HIGHEST
    B, C, N, K = x.shape

    def conv2d(h, wb, relu=True):
        w, b = wb
        h = jnp.einsum('bcnk,cd->bdnk', h, w, precision=HI) + b.reshape(1, -1, 1, 1)
        return jnp.maximum(h, 0.0) if relu else h

    def conv1d(h, wb, relu=True):
        w, b = wb
        h = jnp.einsum('bcn,cd->bdn', h, w, precision=HI) + b.reshape(1, -1, 1)
        return jnp.maximum(h, 0.0) if relu else h

    h = conv2d(conv2d(x, P['mlp1_1']), P['mlp1_2']).max(axis=-1)      # (B, 128, N)
    t = conv1d(conv1d(conv1d(h, P['mlp2_1']), P['mlp2_2']), P['mlp2_3'], relu=False)
    t = jnp.transpose(t, (0, 2, 1)).reshape(-1, C * C)
    t = t + jnp.eye(C, dtype=jnp.float32).reshape(-1)
    return t.reshape(-1, C, C)


# ----------------------------- main --------------------------------------------

if __name__ == "__main__":
    # input_channels = 2 (module default); K = neighborhood size.
    B, N, K = 2, 72, 20
    key = jax.random.PRNGKey(0)
    kp, kx = jax.random.split(key)
    P = init_params(kp)
    x = jax.random.normal(kx, (B, 2, N, K), jnp.float32)

    out = jax.block_until_ready(lpe_stnkd_forward(x, P))
    ref = jax.block_until_ready(reference_forward(x, P))

    assert out.shape == (B * N, 2, 2), out.shape
    np.testing.assert_allclose(np.asarray(out), np.asarray(ref), rtol=2e-3, atol=2e-3)
    print("KERNEL_OK")
</pallas_src>

<mosaic_0001>
module attributes {stable_mosaic.version = 11 : i64} {
  func.func @kernel(%arg0: i32, %arg1: memref<40x256xf32, #tpu.memory_space<vmem>>, %arg2: memref<16x2xf32, #tpu.memory_space<vmem>>, %arg3: memref<16x1xf32, #tpu.memory_space<vmem>>, %arg4: memref<128x16xf32, #tpu.memory_space<vmem>>, %arg5: memref<128x1xf32, #tpu.memory_space<vmem>>, %arg6: memref<32x128xf32, #tpu.memory_space<vmem>>, %arg7: memref<32x1xf32, #tpu.memory_space<vmem>>, %arg8: memref<16x32xf32, #tpu.memory_space<vmem>>, %arg9: memref<16x1xf32, #tpu.memory_space<vmem>>, %arg10: memref<4x16xf32, #tpu.memory_space<vmem>>, %arg11: memref<4x1xf32, #tpu.memory_space<vmem>>, %arg12: memref<4x256xf32, #tpu.memory_space<vmem>>) attributes {dimension_semantics = [#tpu.dimension_semantics<parallel>], iteration_bounds = array<i64: 1>, scalar_prefetch = 0 : i64, scratch_operands = 0 : i64, tpu.core_type = #tpu.core_type<tc>, window_params = [{transform_indices = @transform_0, window_bounds = array<i64: 40, 256>}, {pipeline_mode = #tpu.pipeline_mode<synchronous>, transform_indices = @transform_1, window_bounds = array<i64: 16, 2>}, {pipeline_mode = #tpu.pipeline_mode<synchronous>, transform_indices = @transform_2, window_bounds = array<i64: 16, 1>}, {pipeline_mode = #tpu.pipeline_mode<synchronous>, transform_indices = @transform_3, window_bounds = array<i64: 128, 16>}, {pipeline_mode = #tpu.pipeline_mode<synchronous>, transform_indices = @transform_4, window_bounds = array<i64: 128, 1>}, {pipeline_mode = #tpu.pipeline_mode<synchronous>, transform_indices = @transform_5, window_bounds = array<i64: 32, 128>}, {pipeline_mode = #tpu.pipeline_mode<synchronous>, transform_indices = @transform_6, window_bounds = array<i64: 32, 1>}, {pipeline_mode = #tpu.pipeline_mode<synchronous>, transform_indices = @transform_7, window_bounds = array<i64: 16, 32>}, {pipeline_mode = #tpu.pipeline_mode<synchronous>, transform_indices = @transform_8, window_bounds = array<i64: 16, 1>}, {pipeline_mode = #tpu.pipeline_mode<synchronous>, transform_indices = @transform_9, window_bounds = array<i64: 4, 16>}, {pipeline_mode = #tpu.pipeline_mode<synchronous>, transform_indices = @transform_10, window_bounds = array<i64: 4, 1>}, {transform_indices = @transform_11, window_bounds = array<i64: 4, 256>}]} {
    %c0 = arith.constant 0 : index
    %c0_0 = arith.constant 0 : index
    %0 = vector.load %arg1[%c0, %c0_0] : memref<40x256xf32, #tpu.memory_space<vmem>>, vector<40x256xf32>
    %c0_1 = arith.constant 0 : index
    %c0_2 = arith.constant 0 : index
    %1 = vector.load %arg2[%c0_1, %c0_2] : memref<16x2xf32, #tpu.memory_space<vmem>>, vector<16x2xf32>
    %2 = vector.extract_strided_slice %1 {offsets = [0, 0], sizes = [16, 1], strides = [1, 1]} : vector<16x2xf32> to vector<16x1xf32>
    %3 = vector.shape_cast %2 : vector<16x1xf32> to vector<16x1xf32>
    %4 = vector.broadcast %3 : vector<16x1xf32> to vector<16x256xf32>
    %5 = vector.extract_strided_slice %1 {offsets = [0, 1], sizes = [16, 1], strides = [1, 1]} : vector<16x2xf32> to vector<16x1xf32>
    %6 = vector.shape_cast %5 : vector<16x1xf32> to vector<16x1xf32>
    %7 = vector.broadcast %6 : vector<16x1xf32> to vector<16x256xf32>
    %c0_3 = arith.constant 0 : index
    %c0_4 = arith.constant 0 : index
    %8 = vector.load %arg3[%c0_3, %c0_4] : memref<16x1xf32, #tpu.memory_space<vmem>>, vector<16x1xf32>
    %9 = vector.shape_cast %8 : vector<16x1xf32> to vector<16x1xf32>
    %10 = vector.broadcast %9 : vector<16x1xf32> to vector<16x256xf32>
    %c0_5 = arith.constant 0 : index
    %c0_6 = arith.constant 0 : index
    %11 = vector.load %arg4[%c0_5, %c0_6] : memref<128x16xf32, #tpu.memory_space<vmem>>, vector<128x16xf32>
    %c0_7 = arith.constant 0 : index
    %c0_8 = arith.constant 0 : index
    %12 = vector.load %arg5[%c0_7, %c0_8] : memref<128x1xf32, #tpu.memory_space<vmem>>, vector<128x1xf32>
    %13 = vector.shape_cast %12 : vector<128x1xf32> to vector<128x1xf32>
    %14 = vector.broadcast %13 : vector<128x1xf32> to vector<128x256xf32>
    %cst = arith.constant 0.000000e+00 : f32
    %15 = vector.broadcast %cst : f32 to vector<128x256xf32>
    %16 = vector.extract_strided_slice %0 {offsets = [0, 0], sizes = [1, 256], strides = [1, 1]} : vector<40x256xf32> to vector<1x256xf32>
    %17 = vector.broadcast %16 : vector<1x256xf32> to vector<16x256xf32>
    %18 = arith.mulf %4, %17 : vector<16x256xf32>
    %19 = vector.extract_strided_slice %0 {offsets = [20, 0], sizes = [1, 256], strides = [1, 1]} : vector<40x256xf32> to vector<1x256xf32>
    %20 = vector.broadcast %19 : vector<1x256xf32> to vector<16x256xf32>
    %21 = arith.mulf %7, %20 : vector<16x256xf32>
    %22 = arith.addf %18, %21 : vector<16x256xf32>
    %23 = arith.addf %22, %10 : vector<16x256xf32>
    %cst_9 = arith.constant 0.000000e+00 : f32
    %24 = vector.broadcast %cst_9 : f32 to vector<16x256xf32>
    %25 = arith.maximumf %23, %24 : vector<16x256xf32>
    %cst_10 = arith.constant dense<0.000000e+00> : vector<128x256xf32>
    %26 = tpu.matmul %11, %25, %cst_10 {dimension_numbers = #tpu.dot_dimension_numbers<[1], [0], [0], [1], [0, 0, 1, 1], [], []>} : vector<128x16xf32>, vector<16x256xf32>, vector<128x256xf32> -> vector<128x256xf32>
    %27 = arith.addf %26, %14 : vector<128x256xf32>
    %cst_11 = arith.constant 0.000000e+00 : f32
    %28 = vector.broadcast %cst_11 : f32 to vector<128x256xf32>
    %29 = arith.maximumf %27, %28 : vector<128x256xf32>
    %30 = arith.maximumf %15, %29 : vector<128x256xf32>
    %31 = vector.extract_strided_slice %0 {offsets = [1, 0], sizes = [1, 256], strides = [1, 1]} : vector<40x256xf32> to vector<1x256xf32>
    %32 = vector.broadcast %31 : vector<1x256xf32> to vector<16x256xf32>
    %33 = arith.mulf %4, %32 : vector<16x256xf32>
    %34 = vector.extract_strided_slice %0 {offsets = [21, 0], sizes = [1, 256], strides = [1, 1]} : vector<40x256xf32> to vector<1x256xf32>
    %35 = vector.broadcast %34 : vector<1x256xf32> to vector<16x256xf32>
    %36 = arith.mulf %7, %35 : vector<16x256xf32>
    %37 = arith.addf %33, %36 : vector<16x256xf32>
    %38 = arith.addf %37, %10 : vector<16x256xf32>
    %cst_12 = arith.constant 0.000000e+00 : f32
    %39 = vector.broadcast %cst_12 : f32 to vector<16x256xf32>
    %40 = arith.maximumf %38, %39 : vector<16x256xf32>
    %cst_13 = arith.constant dense<0.000000e+00> : vector<128x256xf32>
    %41 = tpu.matmul %11, %40, %cst_13 {dimension_numbers = #tpu.dot_dimension_numbers<[1], [0], [0], [1], [0, 0, 1, 1], [], []>} : vector<128x16xf32>, vector<16x256xf32>, vector<128x256xf32> -> vector<128x256xf32>
    %42 = arith.addf %41, %14 : vector<128x256xf32>
    %cst_14 = arith.constant 0.000000e+00 : f32
    %43 = vector.broadcast %cst_14 : f32 to vector<128x256xf32>
    %44 = arith.maximumf %42, %43 : vector<128x256xf32>
    %45 = arith.maximumf %30, %44 : vector<128x256xf32>
    %46 = vector.extract_strided_slice %0 {offsets = [2, 0], sizes = [1, 256], strides = [1, 1]} : vector<40x256xf32> to vector<1x256xf32>
    %47 = vector.broadcast %46 : vector<1x256xf32> to vector<16x256xf32>
    %48 = arith.mulf %4, %47 : vector<16x256xf32>
    %49 = vector.extract_strided_slice %0 {offsets = [22, 0], sizes = [1, 256], strides = [1, 1]} : vector<40x256xf32> to vector<1x256xf32>
    %50 = vector.broadcast %49 : vector<1x256xf32> to vector<16x256xf32>
    %51 = arith.mulf %7, %50 : vector<16x256xf32>
    %52 = arith.addf %48, %51 : vector<16x256xf32>
    %53 = arith.addf %52, %10 : vector<16x256xf32>
    %cst_15 = arith.constant 0.000000e+00 : f32
    %54 = vector.broadcast %cst_15 : f32 to vector<16x256xf32>
    %55 = arith.maximumf %53, %54 : vector<16x256xf32>
    %cst_16 = arith.constant dense<0.000000e+00> : vector<128x256xf32>
    %56 = tpu.matmul %11, %55, %cst_16 {dimension_numbers = #tpu.dot_dimension_numbers<[1], [0], [0], [1], [0, 0, 1, 1], [], []>} : vector<128x16xf32>, vector<16x256xf32>, vector<128x256xf32> -> vector<128x256xf32>
    %57 = arith.addf %56, %14 : vector<128x256xf32>
    %cst_17 = arith.constant 0.000000e+00 : f32
    %58 = vector.broadcast %cst_17 : f32 to vector<128x256xf32>
    %59 = arith.maximumf %57, %58 : vector<128x256xf32>
    %60 = arith.maximumf %45, %59 : vector<128x256xf32>
    %61 = vector.extract_strided_slice %0 {offsets = [3, 0], sizes = [1, 256], strides = [1, 1]} : vector<40x256xf32> to vector<1x256xf32>
    %62 = vector.broadcast %61 : vector<1x256xf32> to vector<16x256xf32>
    %63 = arith.mulf %4, %62 : vector<16x256xf32>
    %64 = vector.extract_strided_slice %0 {offsets = [23, 0], sizes = [1, 256], strides = [1, 1]} : vector<40x256xf32> to vector<1x256xf32>
    %65 = vector.broadcast %64 : vector<1x256xf32> to vector<16x256xf32>
    %66 = arith.mulf %7, %65 : vector<16x256xf32>
    %67 = arith.addf %63, %66 : vector<16x256xf32>
    %68 = arith.addf %67, %10 : vector<16x256xf32>
    %cst_18 = arith.constant 0.000000e+00 : f32
    %69 = vector.broadcast %cst_18 : f32 to vector<16x256xf32>
    %70 = arith.maximumf %68, %69 : vector<16x256xf32>
    %cst_19 = arith.constant dense<0.000000e+00> : vector<128x256xf32>
    %71 = tpu.matmul %11, %70, %cst_19 {dimension_numbers = #tpu.dot_dimension_numbers<[1], [0], [0], [1], [0, 0, 1, 1], [], []>} : vector<128x16xf32>, vector<16x256xf32>, vector<128x256xf32> -> vector<128x256xf32>
    %72 = arith.addf %71, %14 : vector<128x256xf32>
    %cst_20 = arith.constant 0.000000e+00 : f32
    %73 = vector.broadcast %cst_20 : f32 to vector<128x256xf32>
    %74 = arith.maximumf %72, %73 : vector<128x256xf32>
    %75 = arith.maximumf %60, %74 : vector<128x256xf32>
    %76 = vector.extract_strided_slice %0 {offsets = [4, 0], sizes = [1, 256], strides = [1, 1]} : vector<40x256xf32> to vector<1x256xf32>
    %77 = vector.broadcast %76 : vector<1x256xf32> to vector<16x256xf32>
    %78 = arith.mulf %4, %77 : vector<16x256xf32>
    %79 = vector.extract_strided_slice %0 {offsets = [24, 0], sizes = [1, 256], strides = [1, 1]} : vector<40x256xf32> to vector<1x256xf32>
    %80 = vector.broadcast %79 : vector<1x256xf32> to vector<16x256xf32>
    %81 = arith.mulf %7, %80 : vector<16x256xf32>
    %82 = arith.addf %78, %81 : vector<16x256xf32>
    %83 = arith.addf %82, %10 : vector<16x256xf32>
    %cst_21 = arith.constant 0.000000e+00 : f32
    %84 = vector.broadcast %cst_21 : f32 to vector<16x256xf32>
    %85 = arith.maximumf %83, %84 : vector<16x256xf32>
    %cst_22 = arith.constant dense<0.000000e+00> : vector<128x256xf32>
    %86 = tpu.matmul %11, %85, %cst_22 {dimension_numbers = #tpu.dot_dimension_numbers<[1], [0], [0], [1], [0, 0, 1, 1], [], []>} : vector<128x16xf32>, vector<16x256xf32>, vector<128x256xf32> -> vector<128x256xf32>
    %87 = arith.addf %86, %14 : vector<128x256xf32>
    %cst_23 = arith.constant 0.000000e+00 : f32
    %88 = vector.broadcast %cst_23 : f32 to vector<128x256xf32>
    %89 = arith.maximumf %87, %88 : vector<128x256xf32>
    %90 = arith.maximumf %75, %89 : vector<128x256xf32>
    %91 = vector.extract_strided_slice %0 {offsets = [5, 0], sizes = [1, 256], strides = [1, 1]} : vector<40x256xf32> to vector<1x256xf32>
    %92 = vector.broadcast %91 : vector<1x256xf32> to vector<16x256xf32>
    %93 = arith.mulf %4, %92 : vector<16x256xf32>
    %94 = vector.extract_strided_slice %0 {offsets = [25, 0], sizes = [1, 256], strides = [1, 1]} : vector<40x256xf32> to vector<1x256xf32>
    %95 = vector.broadcast %94 : vector<1x256xf32> to vector<16x256xf32>
    %96 = arith.mulf %7, %95 : vector<16x256xf32>
    %97 = arith.addf %93, %96 : vector<16x256xf32>
    %98 = arith.addf %97, %10 : vector<16x256xf32>
    %cst_24 = arith.constant 0.000000e+00 : f32
    %99 = vector.broadcast %cst_24 : f32 to vector<16x256xf32>
    %100 = arith.maximumf %98, %99 : vector<16x256xf32>
    %cst_25 = arith.constant dense<0.000000e+00> : vector<128x256xf32>
    %101 = tpu.matmul %11, %100, %cst_25 {dimension_numbers = #tpu.dot_dimension_numbers<[1], [0], [0], [1], [0, 0, 1, 1], [], []>} : vector<128x16xf32>, vector<16x256xf32>, vector<128x256xf32> -> vector<128x256xf32>
    %102 = arith.addf %101, %14 : vector<128x256xf32>
    %cst_26 = arith.constant 0.000000e+00 : f32
    %103 = vector.broadcast %cst_26 : f32 to vector<128x256xf32>
    %104 = arith.maximumf %102, %103 : vector<128x256xf32>
    %105 = arith.maximumf %90, %104 : vector<128x256xf32>
    %106 = vector.extract_strided_slice %0 {offsets = [6, 0], sizes = [1, 256], strides = [1, 1]} : vector<40x256xf32> to vector<1x256xf32>
    %107 = vector.broadcast %106 : vector<1x256xf32> to vector<16x256xf32>
    %108 = arith.mulf %4, %107 : vector<16x256xf32>
    %109 = vector.extract_strided_slice %0 {offsets = [26, 0], sizes = [1, 256], strides = [1, 1]} : vector<40x256xf32> to vector<1x256xf32>
    %110 = vector.broadcast %109 : vector<1x256xf32> to vector<16x256xf32>
    %111 = arith.mulf %7, %110 : vector<16x256xf32>
    %112 = arith.addf %108, %111 : vector<16x256xf32>
    %113 = arith.addf %112, %10 : vector<16x256xf32>
    %cst_27 = arith.constant 0.000000e+00 : f32
    %114 = vector.broadcast %cst_27 : f32 to vector<16x256xf32>
    %115 = arith.maximumf %113, %114 : vector<16x256xf32>
    %cst_28 = arith.constant dense<0.000000e+00> : vector<128x256xf32>
    %116 = tpu.matmul %11, %115, %cst_28 {dimension_numbers = #tpu.dot_dimension_numbers<[1], [0], [0], [1], [0, 0, 1, 1], [], []>} : vector<128x16xf32>, vector<16x256xf32>, vector<128x256xf32> -> vector<128x256xf32>
    %117 = arith.addf %116, %14 : vector<128x256xf32>
    %cst_29 = arith.constant 0.000000e+00 : f32
    %118 = vector.broadcast %cst_29 : f32 to vector<128x256xf32>
    %119 = arith.maximumf %117, %118 : vector<128x256xf32>
    %120 = arith.maximumf %105, %119 : vector<128x256xf32>
    %121 = vector.extract_strided_slice %0 {offsets = [7, 0], sizes = [1, 256], strides = [1, 1]} : vector<40x256xf32> to vector<1x256xf32>
    %122 = vector.broadcast %121 : vector<1x256xf32> to vector<16x256xf32>
    %123 = arith.mulf %4, %122 : vector<16x256xf32>
    %124 = vector.extract_strided_slice %0 {offsets = [27, 0], sizes = [1, 256], strides = [1, 1]} : vector<40x256xf32> to vector<1x256xf32>
    %125 = vector.broadcast %124 : vector<1x256xf32> to vector<16x256xf32>
    %126 = arith.mulf %7, %125 : vector<16x256xf32>
    %127 = arith.addf %123, %126 : vector<16x256xf32>
    %128 = arith.addf %127, %10 : vector<16x256xf32>
    %cst_30 = arith.constant 0.000000e+00 : f32
    %129 = vector.broadcast %cst_30 : f32 to vector<16x256xf32>
    %130 = arith.maximumf %128, %129 : vector<16x256xf32>
    %cst_31 = arith.constant dense<0.000000e+00> : vector<128x256xf32>
    %131 = tpu.matmul %11, %130, %cst_31 {dimension_numbers = #tpu.dot_dimension_numbers<[1], [0], [0], [1], [0, 0, 1, 1], [], []>} : vector<128x16xf32>, vector<16x256xf32>, vector<128x256xf32> -> vector<128x256xf32>
    %132 = arith.addf %131, %14 : vector<128x256xf32>
    %cst_32 = arith.constant 0.000000e+00 : f32
    %133 = vector.broadcast %cst_32 : f32 to vector<128x256xf32>
    %134 = arith.maximumf %132, %133 : vector<128x256xf32>
    %135 = arith.maximumf %120, %134 : vector<128x256xf32>
    %136 = vector.extract_strided_slice %0 {offsets = [8, 0], sizes = [1, 256], strides = [1, 1]} : vector<40x256xf32> to vector<1x256xf32>
    %137 = vector.broadcast %136 : vector<1x256xf32> to vector<16x256xf32>
    %138 = arith.mulf %4, %137 : vector<16x256xf32>
    %139 = vector.extract_strided_slice %0 {offsets = [28, 0], sizes = [1, 256], strides = [1, 1]} : vector<40x256xf32> to vector<1x256xf32>
    %140 = vector.broadcast %139 : vector<1x256xf32> to vector<16x256xf32>
    %141 = arith.mulf %7, %140 : vector<16x256xf32>
    %142 = arith.addf %138, %141 : vector<16x256xf32>
    %143 = arith.addf %142, %10 : vector<16x256xf32>
    %cst_33 = arith.constant 0.000000e+00 : f32
    %144 = vector.broadcast %cst_33 : f32 to vector<16x256xf32>
    %145 = arith.maximumf %143, %144 : vector<16x256xf32>
    %cst_34 = arith.constant dense<0.000000e+00> : vector<128x256xf32>
    %146 = tpu.matmul %11, %145, %cst_34 {dimension_numbers = #tpu.dot_dimension_numbers<[1], [0], [0], [1], [0, 0, 1, 1], [], []>} : vector<128x16xf32>, vector<16x256xf32>, vector<128x256xf32> -> vector<128x256xf32>
    %147 = arith.addf %146, %14 : vector<128x256xf32>
    %cst_35 = arith.constant 0.000000e+00 : f32
    %148 = vector.broadcast %cst_35 : f32 to vector<128x256xf32>
    %149 = arith.maximumf %147, %148 : vector<128x256xf32>
    %150 = arith.maximumf %135, %149 : vector<128x256xf32>
    %151 = vector.extract_strided_slice %0 {offsets = [9, 0], sizes = [1, 256], strides = [1, 1]} : vector<40x256xf32> to vector<1x256xf32>
    %152 = vector.broadcast %151 : vector<1x256xf32> to vector<16x256xf32>
    %153 = arith.mulf %4, %152 : vector<16x256xf32>
    %154 = vector.extract_strided_slice %0 {offsets = [29, 0], sizes = [1, 256], strides = [1, 1]} : vector<40x256xf32> to vector<1x256xf32>
    %155 = vector.broadcast %154 : vector<1x256xf32> to vector<16x256xf32>
    %156 = arith.mulf %7, %155 : vector<16x256xf32>
    %157 = arith.addf %153, %156 : vector<16x256xf32>
    %158 = arith.addf %157, %10 : vector<16x256xf32>
    %cst_36 = arith.constant 0.000000e+00 : f32
    %159 = vector.broadcast %cst_36 : f32 to vector<16x256xf32>
    %160 = arith.maximumf %158, %159 : vector<16x256xf32>
    %cst_37 = arith.constant dense<0.000000e+00> : vector<128x256xf32>
    %161 = tpu.matmul %11, %160, %cst_37 {dimension_numbers = #tpu.dot_dimension_numbers<[1], [0], [0], [1], [0, 0, 1, 1], [], []>} : vector<128x16xf32>, vector<16x256xf32>, vector<128x256xf32> -> vector<128x256xf32>
    %162 = arith.addf %161, %14 : vector<128x256xf32>
    %cst_38 = arith.constant 0.000000e+00 : f32
    %163 = vector.broadcast %cst_38 : f32 to vector<128x256xf32>
    %164 = arith.maximumf %162, %163 : vector<128x256xf32>
    %165 = arith.maximumf %150, %164 : vector<128x256xf32>
    %166 = vector.extract_strided_slice %0 {offsets = [10, 0], sizes = [1, 256], strides = [1, 1]} : vector<40x256xf32> to vector<1x256xf32>
    %167 = vector.broadcast %166 : vector<1x256xf32> to vector<16x256xf32>
    %168 = arith.mulf %4, %167 : vector<16x256xf32>
    %169 = vector.extract_strided_slice %0 {offsets = [30, 0], sizes = [1, 256], strides = [1, 1]} : vector<40x256xf32> to vector<1x256xf32>
    %170 = vector.broadcast %169 : vector<1x256xf32> to vector<16x256xf32>
    %171 = arith.mulf %7, %170 : vector<16x256xf32>
    %172 = arith.addf %168, %171 : vector<16x256xf32>
    %173 = arith.addf %172, %10 : vector<16x256xf32>
    %cst_39 = arith.constant 0.000000e+00 : f32
    %174 = vector.broadcast %cst_39 : f32 to vector<16x256xf32>
    %175 = arith.maximumf %173, %174 : vector<16x256xf32>
    %cst_40 = arith.constant dense<0.000000e+00> : vector<128x256xf32>
    %176 = tpu.matmul %11, %175, %cst_40 {dimension_numbers = #tpu.dot_dimension_numbers<[1], [0], [0], [1], [0, 0, 1, 1], [], []>} : vector<128x16xf32>, vector<16x256xf32>, vector<128x256xf32> -> vector<128x256xf32>
    %177 = arith.addf %176, %14 : vector<128x256xf32>
    %cst_41 = arith.constant 0.000000e+00 : f32
    %178 = vector.broadcast %cst_41 : f32 to vector<128x256xf32>
    %179 = arith.maximumf %177, %178 : vector<128x256xf32>
    %180 = arith.maximumf %165, %179 : vector<128x256xf32>
    %181 = vector.extract_strided_slice %0 {offsets = [11, 0], sizes = [1, 256], strides = [1, 1]} : vector<40x256xf32> to vector<1x256xf32>
    %182 = vector.broadcast %181 : vector<1x256xf32> to vector<16x256xf32>
    %183 = arith.mulf %4, %182 : vector<16x256xf32>
    %184 = vector.extract_strided_slice %0 {offsets = [31, 0], sizes = [1, 256], strides = [1, 1]} : vector<40x256xf32> to vector<1x256xf32>
    %185 = vector.broadcast %184 : vector<1x256xf32> to vector<16x256xf32>
    %186 = arith.mulf %7, %185 : vector<16x256xf32>
    %187 = arith.addf %183, %186 : vector<16x256xf32>
    %188 = arith.addf %187, %10 : vector<16x256xf32>
    %cst_42 = arith.constant 0.000000e+00 : f32
    %189 = vector.broadcast %cst_42 : f32 to vector<16x256xf32>
    %190 = arith.maximumf %188, %189 : vector<16x256xf32>
    %cst_43 = arith.constant dense<0.000000e+00> : vector<128x256xf32>
    %191 = tpu.matmul %11, %190, %cst_43 {dimension_numbers = #tpu.dot_dimension_numbers<[1], [0], [0], [1], [0, 0, 1, 1], [], []>} : vector<128x16xf32>, vector<16x256xf32>, vector<128x256xf32> -> vector<128x256xf32>
    %192 = arith.addf %191, %14 : vector<128x256xf32>
    %cst_44 = arith.constant 0.000000e+00 : f32
    %193 = vector.broadcast %cst_44 : f32 to vector<128x256xf32>
    %194 = arith.maximumf %192, %193 : vector<128x256xf32>
    %195 = arith.maximumf %180, %194 : vector<128x256xf32>
    %196 = vector.extract_strided_slice %0 {offsets = [12, 0], sizes = [1, 256], strides = [1, 1]} : vector<40x256xf32> to vector<1x256xf32>
    %197 = vector.broadcast %196 : vector<1x256xf32> to vector<16x256xf32>
    %198 = arith.mulf %4, %197 : vector<16x256xf32>
    %199 = vector.extract_strided_slice %0 {offsets = [32, 0], sizes = [1, 256], strides = [1, 1]} : vector<40x256xf32> to vector<1x256xf32>
    %200 = vector.broadcast %199 : vector<1x256xf32> to vector<16x256xf32>
    %201 = arith.mulf %7, %200 : vector<16x256xf32>
    %202 = arith.addf %198, %201 : vector<16x256xf32>
    %203 = arith.addf %202, %10 : vector<16x256xf32>
    %cst_45 = arith.constant 0.000000e+00 : f32
    %204 = vector.broadcast %cst_45 : f32 to vector<16x256xf32>
    %205 = arith.maximumf %203, %204 : vector<16x256xf32>
    %cst_46 = arith.constant dense<0.000000e+00> : vector<128x256xf32>
    %206 = tpu.matmul %11, %205, %cst_46 {dimension_numbers = #tpu.dot_dimension_numbers<[1], [0], [0], [1], [0, 0, 1, 1], [], []>} : vector<128x16xf32>, vector<16x256xf32>, vector<128x256xf32> -> vector<128x256xf32>
    %207 = arith.addf %206, %14 : vector<128x256xf32>
    %cst_47 = arith.constant 0.000000e+00 : f32
    %208 = vector.broadcast %cst_47 : f32 to vector<128x256xf32>
    %209 = arith.maximumf %207, %208 : vector<128x256xf32>
    %210 = arith.maximumf %195, %209 : vector<128x256xf32>
    %211 = vector.extract_strided_slice %0 {offsets = [13, 0], sizes = [1, 256], strides = [1, 1]} : vector<40x256xf32> to vector<1x256xf32>
    %212 = vector.broadcast %211 : vector<1x256xf32> to vector<16x256xf32>
    %213 = arith.mulf %4, %212 : vector<16x256xf32>
    %214 = vector.extract_strided_slice %0 {offsets = [33, 0], sizes = [1, 256], strides = [1, 1]} : vector<40x256xf32> to vector<1x256xf32>
    %215 = vector.broadcast %214 : vector<1x256xf32> to vector<16x256xf32>
    %216 = arith.mulf %7, %215 : vector<16x256xf32>
    %217 = arith.addf %213, %216 : vector<16x256xf32>
    %218 = arith.addf %217, %10 : vector<16x256xf32>
    %cst_48 = arith.constant 0.000000e+00 : f32
    %219 = vector.broadcast %cst_48 : f32 to vector<16x256xf32>
    %220 = arith.maximumf %218, %219 : vector<16x256xf32>
    %cst_49 = arith.constant dense<0.000000e+00> : vector<128x256xf32>
    %221 = tpu.matmul %11, %220, %cst_49 {dimension_numbers = #tpu.dot_dimension_numbers<[1], [0], [0], [1], [0, 0, 1, 1], [], []>} : vector<128x16xf32>, vector<16x256xf32>, vector<128x256xf32> -> vector<128x256xf32>
    %222 = arith.addf %221, %14 : vector<128x256xf32>
    %cst_50 = arith.constant 0.000000e+00 : f32
    %223 = vector.broadcast %cst_50 : f32 to vector<128x256xf32>
    %224 = arith.maximumf %222, %223 : vector<128x256xf32>
    %225 = arith.maximumf %210, %224 : vector<128x256xf32>
    %226 = vector.extract_strided_slice %0 {offsets = [14, 0], sizes = [1, 256], strides = [1, 1]} : vector<40x256xf32> to vector<1x256xf32>
    %227 = vector.broadcast %226 : vector<1x256xf32> to vector<16x256xf32>
    %228 = arith.mulf %4, %227 : vector<16x256xf32>
    %229 = vector.extract_strided_slice %0 {offsets = [34, 0], sizes = [1, 256], strides = [1, 1]} : vector<40x256xf32> to vector<1x256xf32>
    %230 = vector.broadcast %229 : vector<1x256xf32> to vector<16x256xf32>
    %231 = arith.mulf %7, %230 : vector<16x256xf32>
    %232 = arith.addf %228, %231 : vector<16x256xf32>
    %233 = arith.addf %232, %10 : vector<16x256xf32>
    %cst_51 = arith.constant 0.000000e+00 : f32
    %234 = vector.broadcast %cst_51 : f32 to vector<16x256xf32>
    %235 = arith.maximumf %233, %234 : vector<16x256xf32>
    %cst_52 = arith.constant dense<0.000000e+00> : vector<128x256xf32>
    %236 = tpu.matmul %11, %235, %cst_52 {dimension_numbers = #tpu.dot_dimension_numbers<[1], [0], [0], [1], [0, 0, 1, 1], [], []>} : vector<128x16xf32>, vector<16x256xf32>, vector<128x256xf32> -> vector<128x256xf32>
    %237 = arith.addf %236, %14 : vector<128x256xf32>
    %cst_53 = arith.constant 0.000000e+00 : f32
    %238 = vector.broadcast %cst_53 : f32 to vector<128x256xf32>
    %239 = arith.maximumf %237, %238 : vector<128x256xf32>
    %240 = arith.maximumf %225, %239 : vector<128x256xf32>
    %241 = vector.extract_strided_slice %0 {offsets = [15, 0], sizes = [1, 256], strides = [1, 1]} : vector<40x256xf32> to vector<1x256xf32>
    %242 = vector.broadcast %241 : vector<1x256xf32> to vector<16x256xf32>
    %243 = arith.mulf %4, %242 : vector<16x256xf32>
    %244 = vector.extract_strided_slice %0 {offsets = [35, 0], sizes = [1, 256], strides = [1, 1]} : vector<40x256xf32> to vector<1x256xf32>
    %245 = vector.broadcast %244 : vector<1x256xf32> to vector<16x256xf32>
    %246 = arith.mulf %7, %245 : vector<16x256xf32>
    %247 = arith.addf %243, %246 : vector<16x256xf32>
    %248 = arith.addf %247, %10 : vector<16x256xf32>
    %cst_54 = arith.constant 0.000000e+00 : f32
    %249 = vector.broadcast %cst_54 : f32 to vector<16x256xf32>
    %250 = arith.maximumf %248, %249 : vector<16x256xf32>
    %cst_55 = arith.constant dense<0.000000e+00> : vector<128x256xf32>
    %251 = tpu.matmul %11, %250, %cst_55 {dimension_numbers = #tpu.dot_dimension_numbers<[1], [0], [0], [1], [0, 0, 1, 1], [], []>} : vector<128x16xf32>, vector<16x256xf32>, vector<128x256xf32> -> vector<128x256xf32>
    %252 = arith.addf %251, %14 : vector<128x256xf32>
    %cst_56 = arith.constant 0.000000e+00 : f32
    %253 = vector.broadcast %cst_56 : f32 to vector<128x256xf32>
    %254 = arith.maximumf %252, %253 : vector<128x256xf32>
    %255 = arith.maximumf %240, %254 : vector<128x256xf32>
    %256 = vector.extract_strided_slice %0 {offsets = [16, 0], sizes = [1, 256], strides = [1, 1]} : vector<40x256xf32> to vector<1x256xf32>
    %257 = vector.broadcast %256 : vector<1x256xf32> to vector<16x256xf32>
    %258 = arith.mulf %4, %257 : vector<16x256xf32>
    %259 = vector.extract_strided_slice %0 {offsets = [36, 0], sizes = [1, 256], strides = [1, 1]} : vector<40x256xf32> to vector<1x256xf32>
    %260 = vector.broadcast %259 : vector<1x256xf32> to vector<16x256xf32>
    %261 = arith.mulf %7, %260 : vector<16x256xf32>
    %262 = arith.addf %258, %261 : vector<16x256xf32>
    %263 = arith.addf %262, %10 : vector<16x256xf32>
    %cst_57 = arith.constant 0.000000e+00 : f32
    %264 = vector.broadcast %cst_57 : f32 to vector<16x256xf32>
    %265 = arith.maximumf %263, %264 : vector<16x256xf32>
    %cst_58 = arith.constant dense<0.000000e+00> : vector<128x256xf32>
    %266 = tpu.matmul %11, %265, %cst_58 {dimension_numbers = #tpu.dot_dimension_numbers<[1], [0], [0], [1], [0, 0, 1, 1], [], []>} : vector<128x16xf32>, vector<16x256xf32>, vector<128x256xf32> -> vector<128x256xf32>
    %267 = arith.addf %266, %14 : vector<128x256xf32>
    %cst_59 = arith.constant 0.000000e+00 : f32
    %268 = vector.broadcast %cst_59 : f32 to vector<128x256xf32>
    %269 = arith.maximumf %267, %268 : vector<128x256xf32>
    %270 = arith.maximumf %255, %269 : vector<128x256xf32>
    %271 = vector.extract_strided_slice %0 {offsets = [17, 0], sizes = [1, 256], strides = [1, 1]} : vector<40x256xf32> to vector<1x256xf32>
    %272 = vector.broadcast %271 : vector<1x256xf32> to vector<16x256xf32>
    %273 = arith.mulf %4, %272 : vector<16x256xf32>
    %274 = vector.extract_strided_slice %0 {offsets = [37, 0], sizes = [1, 256], strides = [1, 1]} : vector<40x256xf32> to vector<1x256xf32>
    %275 = vector.broadcast %274 : vector<1x256xf32> to vector<16x256xf32>
    %276 = arith.mulf %7, %275 : vector<16x256xf32>
    %277 = arith.addf %273, %276 : vector<16x256xf32>
    %278 = arith.addf %277, %10 : vector<16x256xf32>
    %cst_60 = arith.constant 0.000000e+00 : f32
    %279 = vector.broadcast %cst_60 : f32 to vector<16x256xf32>
    %280 = arith.maximumf %278, %279 : vector<16x256xf32>
    %cst_61 = arith.constant dense<0.000000e+00> : vector<128x256xf32>
    %281 = tpu.matmul %11, %280, %cst_61 {dimension_numbers = #tpu.dot_dimension_numbers<[1], [0], [0], [1], [0, 0, 1, 1], [], []>} : vector<128x16xf32>, vector<16x256xf32>, vector<128x256xf32> -> vector<128x256xf32>
    %282 = arith.addf %281, %14 : vector<128x256xf32>
    %cst_62 = arith.constant 0.000000e+00 : f32
    %283 = vector.broadcast %cst_62 : f32 to vector<128x256xf32>
    %284 = arith.maximumf %282, %283 : vector<128x256xf32>
    %285 = arith.maximumf %270, %284 : vector<128x256xf32>
    %286 = vector.extract_strided_slice %0 {offsets = [18, 0], sizes = [1, 256], strides = [1, 1]} : vector<40x256xf32> to vector<1x256xf32>
    %287 = vector.broadcast %286 : vector<1x256xf32> to vector<16x256xf32>
    %288 = arith.mulf %4, %287 : vector<16x256xf32>
    %289 = vector.extract_strided_slice %0 {offsets = [38, 0], sizes = [1, 256], strides = [1, 1]} : vector<40x256xf32> to vector<1x256xf32>
    %290 = vector.broadcast %289 : vector<1x256xf32> to vector<16x256xf32>
    %291 = arith.mulf %7, %290 : vector<16x256xf32>
    %292 = arith.addf %288, %291 : vector<16x256xf32>
    %293 = arith.addf %292, %10 : vector<16x256xf32>
    %cst_63 = arith.constant 0.000000e+00 : f32
    %294 = vector.broadcast %cst_63 : f32 to vector<16x256xf32>
    %295 = arith.maximumf %293, %294 : vector<16x256xf32>
    %cst_64 = arith.constant dense<0.000000e+00> : vector<128x256xf32>
    %296 = tpu.matmul %11, %295, %cst_64 {dimension_numbers = #tpu.dot_dimension_numbers<[1], [0], [0], [1], [0, 0, 1, 1], [], []>} : vector<128x16xf32>, vector<16x256xf32>, vector<128x256xf32> -> vector<128x256xf32>
    %297 = arith.addf %296, %14 : vector<128x256xf32>
    %cst_65 = arith.constant 0.000000e+00 : f32
    %298 = vector.broadcast %cst_65 : f32 to vector<128x256xf32>
    %299 = arith.maximumf %297, %298 : vector<128x256xf32>
    %300 = arith.maximumf %285, %299 : vector<128x256xf32>
    %301 = vector.extract_strided_slice %0 {offsets = [19, 0], sizes = [1, 256], strides = [1, 1]} : vector<40x256xf32> to vector<1x256xf32>
    %302 = vector.broadcast %301 : vector<1x256xf32> to vector<16x256xf32>
    %303 = arith.mulf %4, %302 : vector<16x256xf32>
    %304 = vector.extract_strided_slice %0 {offsets = [39, 0], sizes = [1, 256], strides = [1, 1]} : vector<40x256xf32> to vector<1x256xf32>
    %305 = vector.broadcast %304 : vector<1x256xf32> to vector<16x256xf32>
    %306 = arith.mulf %7, %305 : vector<16x256xf32>
    %307 = arith.addf %303, %306 : vector<16x256xf32>
    %308 = arith.addf %307, %10 : vector<16x256xf32>
    %cst_66 = arith.constant 0.000000e+00 : f32
    %309 = vector.broadcast %cst_66 : f32 to vector<16x256xf32>
    %310 = arith.maximumf %308, %309 : vector<16x256xf32>
    %cst_67 = arith.constant dense<0.000000e+00> : vector<128x256xf32>
    %311 = tpu.matmul %11, %310, %cst_67 {dimension_numbers = #tpu.dot_dimension_numbers<[1], [0], [0], [1], [0, 0, 1, 1], [], []>} : vector<128x16xf32>, vector<16x256xf32>, vector<128x256xf32> -> vector<128x256xf32>
    %312 = arith.addf %311, %14 : vector<128x256xf32>
    %cst_68 = arith.constant 0.000000e+00 : f32
    %313 = vector.broadcast %cst_68 : f32 to vector<128x256xf32>
    %314 = arith.maximumf %312, %313 : vector<128x256xf32>
    %315 = arith.maximumf %300, %314 : vector<128x256xf32>
    %c0_69 = arith.constant 0 : index
    %c0_70 = arith.constant 0 : index
    %316 = vector.load %arg6[%c0_69, %c0_70] : memref<32x128xf32, #tpu.memory_space<vmem>>, vector<32x128xf32>
    %cst_71 = arith.constant dense<0.000000e+00> : vector<32x256xf32>
    %317 = tpu.matmul %316, %315, %cst_71 {dimension_numbers = #tpu.dot_dimension_numbers<[1], [0], [0], [1], [0, 0, 1, 1], [], []>} : vector<32x128xf32>, vector<128x256xf32>, vector<32x256xf32> -> vector<32x256xf32>
    %c0_72 = arith.constant 0 : index
    %c0_73 = arith.constant 0 : index
    %318 = vector.load %arg7[%c0_72, %c0_73] : memref<32x1xf32, #tpu.memory_space<vmem>>, vector<32x1xf32>
    %319 = vector.broadcast %318 : vector<32x1xf32> to vector<32x256xf32>
    %320 = arith.addf %317, %319 : vector<32x256xf32>
    %cst_74 = arith.constant 0.000000e+00 : f32
    %321 = vector.broadcast %cst_74 : f32 to vector<32x256xf32>
    %322 = arith.maximumf %320, %321 : vector<32x256xf32>
    %c0_75 = arith.constant 0 : index
    %c0_76 = arith.constant 0 : index
    %323 = vector.load %arg8[%c0_75, %c0_76] : memref<16x32xf32, #tpu.memory_space<vmem>>, vector<16x32xf32>
    %cst_77 = arith.constant dense<0.000000e+00> : vector<16x256xf32>
    %324 = tpu.matmul %323, %322, %cst_77 {dimension_numbers = #tpu.dot_dimension_numbers<[1], [0], [0], [1], [0, 0, 1, 1], [], []>} : vector<16x32xf32>, vector<32x256xf32>, vector<16x256xf32> -> vector<16x256xf32>
    %c0_78 = arith.constant 0 : index
    %c0_79 = arith.constant 0 : index
    %325 = vector.load %arg9[%c0_78, %c0_79] : memref<16x1xf32, #tpu.memory_space<vmem>>, vector<16x1xf32>
    %326 = vector.broadcast %325 : vector<16x1xf32> to vector<16x256xf32>
    %327 = arith.addf %324, %326 : vector<16x256xf32>
    %cst_80 = arith.constant 0.000000e+00 : f32
    %328 = vector.broadcast %cst_80 : f32 to vector<16x256xf32>
    %329 = arith.maximumf %327, %328 : vector<16x256xf32>
    %c0_81 = arith.constant 0 : index
    %c0_82 = arith.constant 0 : index
    %330 = vector.load %arg10[%c0_81, %c0_82] : memref<4x16xf32, #tpu.memory_space<vmem>>, vector<4x16xf32>
    %cst_83 = arith.constant dense<0.000000e+00> : vector<4x256xf32>
    %331 = tpu.matmul %330, %329, %cst_83 {dimension_numbers = #tpu.dot_dimension_numbers<[1], [0], [0], [1], [0, 0, 1, 1], [], []>} : vector<4x16xf32>, vector<16x256xf32>, vector<4x256xf32> -> vector<4x256xf32>
    %c0_84 = arith.constant 0 : index
    %c0_85 = arith.constant 0 : index
    %332 = vector.load %arg11[%c0_84, %c0_85] : memref<4x1xf32, #tpu.memory_space<vmem>>, vector<4x1xf32>
    %333 = vector.broadcast %332 : vector<4x1xf32> to vector<4x256xf32>
    %334 = arith.addf %331, %333 : vector<4x256xf32>
    %c0_86 = arith.constant 0 : index
    %c0_87 = arith.constant 0 : index
    %335 = vector.load %arg12[%c0_86, %c0_87] : memref<4x256xf32, #tpu.memory_space<vmem>>, vector<4x256xf32>
    tpu.vector_store %arg12[%c0_86, %c0_87], %334 {strides = array<i32>} : memref<4x256xf32, #tpu.memory_space<vmem>>, vector<4x256xf32>,
    return
  }
  func.func @transform_0(%arg0: i32) -> (i32, i32) {
    %c0_i32 = arith.constant 0 : i32
    %c0_i32_0 = arith.constant 0 : i32
    return %c0_i32, %arg0 : i32, i32
  }
  func.func @transform_1(%arg0: i32) -> (i32, i32) {
    %c0_i32 = arith.constant 0 : i32
    %c0_i32_0 = arith.constant 0 : i32
    %c0_i32_1 = arith.constant 0 : i32
    return %c0_i32, %c0_i32_0 : i32, i32
  }
  func.func @transform_2(%arg0: i32) -> (i32, i32) {
    %c0_i32 = arith.constant 0 : i32
    %c0_i32_0 = arith.constant 0 : i32
    %c0_i32_1 = arith.constant 0 : i32
    return %c0_i32, %c0_i32_0 : i32, i32
  }
  func.func @transform_3(%arg0: i32) -> (i32, i32) {
    %c0_i32 = arith.constant 0 : i32
    %c0_i32_0 = arith.constant 0 : i32
    %c0_i32_1 = arith.constant 0 : i32
    return %c0_i32, %c0_i32_0 : i32, i32
  }
  func.func @transform_4(%arg0: i32) -> (i32, i32) {
    %c0_i32 = arith.constant 0 : i32
    %c0_i32_0 = arith.constant 0 : i32
    %c0_i32_1 = arith.constant 0 : i32
    return %c0_i32, %c0_i32_0 : i32, i32
  }
  func.func @transform_5(%arg0: i32) -> (i32, i32) {
    %c0_i32 = arith.constant 0 : i32
    %c0_i32_0 = arith.constant 0 : i32
    %c0_i32_1 = arith.constant 0 : i32
    return %c0_i32, %c0_i32_0 : i32, i32
  }
  func.func @transform_6(%arg0: i32) -> (i32, i32) {
    %c0_i32 = arith.constant 0 : i32
    %c0_i32_0 = arith.constant 0 : i32
    %c0_i32_1 = arith.constant 0 : i32
    return %c0_i32, %c0_i32_0 : i32, i32
  }
  func.func @transform_7(%arg0: i32) -> (i32, i32) {
    %c0_i32 = arith.constant 0 : i32
    %c0_i32_0 = arith.constant 0 : i32
    %c0_i32_1 = arith.constant 0 : i32
    return %c0_i32, %c0_i32_0 : i32, i32
  }
  func.func @transform_8(%arg0: i32) -> (i32, i32) {
    %c0_i32 = arith.constant 0 : i32
    %c0_i32_0 = arith.constant 0 : i32
    %c0_i32_1 = arith.constant 0 : i32
    return %c0_i32, %c0_i32_0 : i32, i32
  }
  func.func @transform_9(%arg0: i32) -> (i32, i32) {
    %c0_i32 = arith.constant 0 : i32
    %c0_i32_0 = arith.constant 0 : i32
    %c0_i32_1 = arith.constant 0 : i32
    return %c0_i32, %c0_i32_0 : i32, i32
  }
  func.func @transform_10(%arg0: i32) -> (i32, i32) {
    %c0_i32 = arith.constant 0 : i32
    %c0_i32_0 = arith.constant 0 : i32
    %c0_i32_1 = arith.constant 0 : i32
    return %c0_i32, %c0_i32_0 : i32, i32
  }
  func.func @transform_11(%arg0: i32) -> (i32, i32) {
    %c0_i32 = arith.constant 0 : i32
    %c0_i32_0 = arith.constant 0 : i32
    return %c0_i32, %arg0 : i32, i32
  }
}

</mosaic_0001>

<llo_original>
// kernel: tpu_custom_call.1
$region0: #{tpu_custom_call.1}
  #allocation0 [shape = 'u32[]', space=smem, size = 0x4, offset = 0x4, fixed_abs, tag = 'smem constant byte address 0x4 - core index']
  #allocation1 [shape = 'u32[72,128]{1,0:T(1,128)}', space=vmem, size = 0x9000, scoped, tag = 'internal scratch']
  %s0 = inlined_call_operand.vmem [shape: f32[40,256], index: 0, kind: input, shape index: {}]
  %s1 = inlined_call_operand.vmem [shape: f32[16,2], index: 1, kind: input, shape index: {}]
  %s2 = inlined_call_operand.vmem [shape: f32[16,1], index: 2, kind: input, shape index: {}]
  %s3 = inlined_call_operand.vmem [shape: f32[128,16], index: 3, kind: input, shape index: {}]
  %s4 = inlined_call_operand.vmem [shape: f32[128,1], index: 4, kind: input, shape index: {}]
  %s5 = inlined_call_operand.vmem [shape: f32[32,128], index: 5, kind: input, shape index: {}]
  %s6 = inlined_call_operand.vmem [shape: f32[32,1], index: 6, kind: input, shape index: {}]
  %s7 = inlined_call_operand.vmem [shape: f32[16,32], index: 7, kind: input, shape index: {}]
  %s8 = inlined_call_operand.vmem [shape: f32[16,1], index: 8, kind: input, shape index: {}]
  %s9 = inlined_call_operand.vmem [shape: f32[4,16], index: 9, kind: input, shape index: {}]
  %s10 = inlined_call_operand.vmem [shape: f32[4,1], index: 10, kind: input, shape index: {}]
  %s11 = inlined_call_operand.hbm [shape: f32[4,256], index: 11, kind: output, shape index: {}]
  %s12 = sld [smem:[#allocation0]]
  $region54: #{tpu_custom_call.1} parent=0
    _
  %s14 = ssub.s32 1, %s12
  %s15 = scalar_select 0, %s14, %s12
  $region1: #{tpu_custom_call.1} parent=0
    #allocation2 [shape = 'u8[4096]{0}', space=vmem, size = 0x1000, scoped, tag = 'output window, operand 0, single buffered']
    #allocation3 [shape = 's32[1]{0}', space=sflag, size = 0x4, scoped, tag = 'scoped memory for tpu_custom_call.1']
    %16 = vsyncpa [#allocation3], 0
    // Predicated region
    $region2: #{tpu_custom_call.1} parent=1 // pred_check
      _
    $region3: #{tpu_custom_call.1} parent=1 // pred_check_branch
      %18 = sbr.rel (0) target = $region5
    $region4: #{tpu_custom_call.1} parent=1 // pred_region
      _
    $region5: #{tpu_custom_call.1} parent=1 // pred_fallthru
      _
    // Predicated region
    $region6: #{tpu_custom_call.1} parent=1 // pred_check
      _
    $region7: #{tpu_custom_call.1} parent=1 // pred_check_branch
      %20 = sbr.rel (0) target = $region9
    $region8: #{tpu_custom_call.1} parent=1 // pred_region
      _
    $region9: #{tpu_custom_call.1} parent=1 // pred_fallthru
      _
    // Predicated region
    $region10: #{tpu_custom_call.1} parent=1 // pred_check
      _
    $region11: #{tpu_custom_call.1} parent=1 // pred_check_branch
      %22 = sbr.rel (0) target = $region13
    $region12: #{tpu_custom_call.1} parent=1 // pred_region
      _
    $region13: #{tpu_custom_call.1} parent=1 // pred_fallthru
      _
    // Predicated region
    $region14: #{tpu_custom_call.1} parent=1 // pred_check
      _
    $region15: #{tpu_custom_call.1} parent=1 // pred_check_branch
      %24 = sbr.rel (0) target = $region17
    $region16: #{tpu_custom_call.1} parent=1 // pred_region
      _
    $region17: #{tpu_custom_call.1} parent=1 // pred_fallthru
      _
    // Predicated region
    $region18: #{tpu_custom_call.1} parent=1 // pred_check
      _
    $region19: #{tpu_custom_call.1} parent=1 // pred_check_branch
      %26 = sbr.rel (0) target = $region21
    $region20: #{tpu_custom_call.1} parent=1 // pred_region
      _
    $region21: #{tpu_custom_call.1} parent=1 // pred_fallthru
      _
    // Predicated region
    $region22: #{tpu_custom_call.1} parent=1 // pred_check
      _
    $region23: #{tpu_custom_call.1} parent=1 // pred_check_branch
      %28 = sbr.rel (0) target = $region25
    $region24: #{tpu_custom_call.1} parent=1 // pred_region
      _
    $region25: #{tpu_custom_call.1} parent=1 // pred_fallthru
      _
    // Predicated region
    $region26: #{tpu_custom_call.1} parent=1 // pred_check
      _
    $region27: #{tpu_custom_call.1} parent=1 // pred_check_branch
      %30 = sbr.rel (0) target = $region29
    $region28: #{tpu_custom_call.1} parent=1 // pred_region
      _
    $region29: #{tpu_custom_call.1} parent=1 // pred_fallthru
      _
    // Predicated region
    $region30: #{tpu_custom_call.1} parent=1 // pred_check
      _
    $region31: #{tpu_custom_call.1} parent=1 // pred_check_branch
      %32 = sbr.rel (0) target = $region33
    $region32: #{tpu_custom_call.1} parent=1 // pred_region
      _
    $region33: #{tpu_custom_call.1} parent=1 // pred_fallthru
      _
    // Predicated region
    $region34: #{tpu_custom_call.1} parent=1 // pred_check
      _
    $region35: #{tpu_custom_call.1} parent=1 // pred_check_branch
      %34 = sbr.rel (0) target = $region37
    $region36: #{tpu_custom_call.1} parent=1 // pred_region
      _
    $region37: #{tpu_custom_call.1} parent=1 // pred_fallthru
      _
    // Predicated region
    $region38: #{tpu_custom_call.1} parent=1 // pred_check
      _
    $region39: #{tpu_custom_call.1} parent=1 // pred_check_branch
      %36 = sbr.rel (0) target = $region41
    $region40: #{tpu_custom_call.1} parent=1 // pred_region
      _
    $region41: #{tpu_custom_call.1} parent=1 // pred_fallthru
      _
    // Predicated region
    $region42: #{tpu_custom_call.1} parent=1 // pred_check
      _
    $region43: #{tpu_custom_call.1} parent=1 // pred_check_branch
      %38 = sbr.rel (0) target = $region45
    $region44: #{tpu_custom_call.1} parent=1 // pred_region
      _
    $region45: #{tpu_custom_call.1} parent=1 // pred_fallthru
      _
    %v39 = vld [vmem:[%s0] sm:$0xff]
    %v40 = vld [vmem:[%s0 + $0x8] sm:$0xff]
    %v41 = vld [vmem:[%s0 + $0x10] sm:$0xff]
    %v42 = vld [vmem:[%s0 + $0x18] sm:$0xff]
    %v43 = vld [vmem:[%s0 + $0x20] sm:$0xff]
    %v44 = vld [vmem:[%s0 + $0x28] sm:$0xff]
    %v45 = vld [vmem:[%s0 + $0x30] sm:$0xff]
    %v46 = vld [vmem:[%s0 + $0x38] sm:$0xff]
    %v47 = vld [vmem:[%s0 + $0x40] sm:$0xff]
    %v48 = vld [vmem:[%s0 + $0x48] sm:$0xff]
    %v49 = vld [vmem:[%s1] sm:$0xff]
    %v50 = vld [vmem:[%s1 + $0x8] sm:$0xff]
    %52 = vset.pattern.permute.xlu0 0
    %53 = vperm.xlu0 %52, %v49
    %v54 = vpop.permute.xlu0 %53
    %57 = vset.pattern.permute.xlu0 0
    %58 = vperm.xlu0 %57, %v50
    %v59 = vpop.permute.xlu0 %58
    %61 = vset.pattern.permute.xlu0 1
    %62 = vperm.xlu0 %61, %v49
    %v63 = vpop.permute.xlu0 %62
    %65 = vset.pattern.permute.xlu0 1
    %66 = vperm.xlu0 %65, %v50
    %v67 = vpop.permute.xlu0 %66
    %v69 = vld [vmem:[%s2] sm:$0xff]
    %v70 = vld [vmem:[%s2 + $0x8] sm:$0xff]
    %72 = vset.pattern.permute.xlu0 0
    %73 = vperm.xlu0 %72, %v69
    %v74 = vpop.permute.xlu0 %73
    %77 = vset.pattern.permute.xlu0 0
    %78 = vperm.xlu0 %77, %v70
    %v79 = vpop.permute.xlu0 %78
    %v81 = vld [vmem:[%s3] sm:$0xff]
    %v82 = vld [vmem:[%s3 + $0x8] sm:$0xff]
    %v83 = vld [vmem:[%s3 + $0x10] sm:$0xff]
    %v84 = vld [vmem:[%s3 + $0x18] sm:$0xff]
    %v85 = vld [vmem:[%s3 + $0x20] sm:$0xff]
    %v86 = vld [vmem:[%s3 + $0x28] sm:$0xff]
    %v87 = vld [vmem:[%s3 + $0x30] sm:$0xff]
    %v88 = vld [vmem:[%s3 + $0x38] sm:$0xff]
    %v89 = vld [vmem:[%s3 + $0x40] sm:$0xff]
    %v90 = vld [vmem:[%s3 + $0x48] sm:$0xff]
    %v91 = vld [vmem:[%s3 + $0x50] sm:$0xff]
    %v92 = vld [vmem:[%s3 + $0x58] sm:$0xff]
    %v93 = vld [vmem:[%s3 + $0x60] sm:$0xff]
    %v94 = vld [vmem:[%s3 + $0x68] sm:$0xff]
    %v95 = vld [vmem:[%s3 + $0x70] sm:$0xff]
    %v96 = vld [vmem:[%s3 + $0x78] sm:$0xff]
    %v97 = vld [vmem:[%s4] sm:$0xff]
    %v98 = vld [vmem:[%s4 + $0x8] sm:$0xff]
    %v99 = vld [vmem:[%s4 + $0x10] sm:$0xff]
    %v100 = vld [vmem:[%s4 + $0x18] sm:$0xff]
    %v101 = vld [vmem:[%s4 + $0x20] sm:$0xff]
    %v102 = vld [vmem:[%s4 + $0x28] sm:$0xff]
    %v103 = vld [vmem:[%s4 + $0x30] sm:$0xff]
    %v104 = vld [vmem:[%s4 + $0x38] sm:$0xff]
    %v105 = vld [vmem:[%s4 + $0x40] sm:$0xff]
    %v106 = vld [vmem:[%s4 + $0x48] sm:$0xff]
    %v107 = vld [vmem:[%s4 + $0x50] sm:$0xff]
    %v108 = vld [vmem:[%s4 + $0x58] sm:$0xff]
    %v109 = vld [vmem:[%s4 + $0x60] sm:$0xff]
    %v110 = vld [vmem:[%s4 + $0x68] sm:$0xff]
    %v111 = vld [vmem:[%s4 + $0x70] sm:$0xff]
    %v112 = vld [vmem:[%s4 + $0x78] sm:$0xff]
    %114 = vset.pattern.permute.xlu0 0
    %115 = vperm.xlu0 %114, %v97
    %v116 = vpop.permute.xlu0 %115
    %119 = vset.pattern.permute.xlu0 0
    %120 = vperm.xlu0 %119, %v98
    %v121 = vpop.permute.xlu0 %120
    %124 = vset.pattern.permute.xlu0 0
    %125 = vperm.xlu0 %124, %v99
    %v126 = vpop.permute.xlu0 %125
    %129 = vset.pattern.permute.xlu0 0
    %130 = vperm.xlu0 %129, %v100
    %v131 = vpop.permute.xlu0 %130
    %134 = vset.pattern.permute.xlu0 0
    %135 = vperm.xlu0 %134, %v101
    %v136 = vpop.permute.xlu0 %135
    %139 = vset.pattern.permute.xlu0 0
    %140 = vperm.xlu0 %139, %v102
    %v141 = vpop.permute.xlu0 %140
    %144 = vset.pattern.permute.xlu0 0
    %145 = vperm.xlu0 %144, %v103
    %v146 = vpop.permute.xlu0 %145
    %149 = vset.pattern.permute.xlu0 0
    %150 = vperm.xlu0 %149, %v104
    %v151 = vpop.permute.xlu0 %150
    %154 = vset.pattern.permute.xlu0 0
    %155 = vperm.xlu0 %154, %v105
    %v156 = vpop.permute.xlu0 %155
    %159 = vset.pattern.permute.xlu0 0
    %160 = vperm.xlu0 %159, %v106
    %v161 = vpop.permute.xlu0 %160
    %164 = vset.pattern.permute.xlu0 0
    %165 = vperm.xlu0 %164, %v107
    %v166 = vpop.permute.xlu0 %165
    %169 = vset.pattern.permute.xlu0 0
    %170 = vperm.xlu0 %169, %v108
    %v171 = vpop.permute.xlu0 %170
    %174 = vset.pattern.permute.xlu0 0
    %175 = vperm.xlu0 %174, %v109
    %v176 = vpop.permute.xlu0 %175
    %179 = vset.pattern.permute.xlu0 0
    %180 = vperm.xlu0 %179, %v110
    %v181 = vpop.permute.xlu0 %180
    %184 = vset.pattern.permute.xlu0 0
    %185 = vperm.xlu0 %184, %v111
    %v186 = vpop.permute.xlu0 %185
    %189 = vset.pattern.permute.xlu0 0
    %190 = vperm.xlu0 %189, %v112
    %v191 = vpop.permute.xlu0 %190
    %v193 = vperm.slane %v39, 0
    %v194 = vperm.slane %v40, 0
    %v195 = vmul.f32 %v54, %v193
    %v196 = vmul.f32 %v54, %v194
    %v197 = vmul.f32 %v59, %v193
    %v198 = vmul.f32 %v59, %v194
    %v199 = vperm.slane %v43, 4
    %v200 = vperm.slane %v44, 4
    %v201 = vmul.f32 %v63, %v199
    %v202 = vmul.f32 %v63, %v200
    %v203 = vmul.f32 %v67, %v199
    %v204 = vmul.f32 %v67, %v200
    %v205 = vadd.f32 %v195, %v201
    %v206 = vadd.f32 %v196, %v202
    %v207 = vadd.f32 %v197, %v203
    %v208 = vadd.f32 %v198, %v204
    %v209 = vadd.f32 %v205, %v74
    %v210 = vadd.f32 %v206, %v74
    %v211 = vadd.f32 %v207, %v79
    %v212 = vadd.f32 %v208, %v79
    %v213 = vmax.f32 %v209, 0.0
    %v214 = vmax.f32 %v210, 0.0
    %v215 = vmax.f32 %v211, 0.0
    %v216 = vmax.f32 %v212, 0.0
    %vm217 = vcmask 130048
    %v219 = vsel %vm217, %v81, 0
    %v222 = vsel %vm217, %v82, 0
    %v225 = vsel %vm217, %v83, 0
    %v228 = vsel %vm217, %v84, 0
    %v231 = vsel %vm217, %v85, 0
    %v234 = vsel %vm217, %v86, 0
    %v237 = vsel %vm217, %v87, 0
    %v240 = vsel %vm217, %v88, 0
    %v243 = vsel %vm217, %v89, 0
    %v246 = vsel %vm217, %v90, 0
    %v249 = vsel %vm217, %v91, 0
    %v252 = vsel %vm217, %v92, 0
    %v255 = vsel %vm217, %v93, 0
    %v258 = vsel %vm217, %v94, 0
    %v261 = vsel %vm217, %v95, 0
    %v264 = vsel %vm217, %v96, 0
    %266 = vmatpush.msra.mxu0 0.0
    %267 = vmatpush.msra.mxu0 0.0
    %268 = vmatpush.msra.mxu0 0.0
    %269 = vmatpush.msra.mxu0 0.0
    %270 = vmatpush.msra.mxu0 0.0
    %271 = vmatpush.msra.mxu0 0.0
    %272 = vmatpush.msra.mxu0 0.0
    %273 = vmatpush.msra.mxu0 0.0
    %274 = vmatpush.msra.mxu0 0.0
    %275 = vmatpush.msra.mxu0 0.0
    %276 = vmatpush.msra.mxu0 0.0
    %277 = vmatpush.msra.mxu0 0.0
    %278 = vmatpush.msra.mxu0 0.0
    %279 = vmatpush.msra.mxu0 0.0
    %280 = vmatpush.msra.mxu0 %v215
    %281 = vmatpush.msra.mxu0 %v213
    %282 = vmatmul.f32.gmra.mxu0 %v219
    %v283 = vpop.f32.mrf.mxu0
    %v284 = vadd.f32 %v116, %v283
    %285 = vmatmul.f32.gmra.mxu0 %v222
    %v286 = vpop.f32.mrf.mxu0
    %v287 = vadd.f32 %v121, %v286
    %288 = vmatmul.f32.gmra.mxu0 %v225
    %v289 = vpop.f32.mrf.mxu0
    %v290 = vadd.f32 %v126, %v289
    %291 = vmatmul.f32.gmra.mxu0 %v228
    %v292 = vpop.f32.mrf.mxu0
    %v293 = vadd.f32 %v131, %v292
    %294 = vmatmul.f32.gmra.mxu0 %v231
    %v295 = vpop.f32.mrf.mxu0
    %v296 = vadd.f32 %v136, %v295
    %297 = vmatmul.f32.gmra.mxu0 %v234
    %v298 = vpop.f32.mrf.mxu0
    %v299 = vadd.f32 %v141, %v298
    %300 = vmatmul.f32.gmra.mxu0 %v237
    %v301 = vpop.f32.mrf.mxu0
    %v302 = vadd.f32 %v146, %v301
    %303 = vmatmul.f32.gmra.mxu0 %v240
    %v304 = vpop.f32.mrf.mxu0
    %v305 = vadd.f32 %v151, %v304
    %306 = vmatmul.f32.gmra.mxu0 %v243
    %v307 = vpop.f32.mrf.mxu0
    %v308 = vadd.f32 %v156, %v307
    %309 = vmatmul.f32.gmra.mxu0 %v246
    %v310 = vpop.f32.mrf.mxu0
    %v311 = vadd.f32 %v161, %v310
    %312 = vmatmul.f32.gmra.mxu0 %v249
    %v313 = vpop.f32.mrf.mxu0
    %v314 = vadd.f32 %v166, %v313
    %315 = vmatmul.f32.gmra.mxu0 %v252
    %v316 = vpop.f32.mrf.mxu0
    %v317 = vadd.f32 %v171, %v316
    %318 = vmatmul.f32.gmra.mxu0 %v255
    %v319 = vpop.f32.mrf.mxu0
    %v320 = vadd.f32 %v176, %v319
    %321 = vmatmul.f32.gmra.mxu0 %v258
    %v322 = vpop.f32.mrf.mxu0
    %v323 = vadd.f32 %v181, %v322
    %324 = vmatmul.f32.gmra.mxu0 %v261
    %v325 = vpop.f32.mrf.mxu0
    %v326 = vadd.f32 %v186, %v325
    %327 = vmatmul.f32.gmra.mxu0 %v264
    %v328 = vpop.f32.mrf.mxu0
    %v329 = vadd.f32 %v191, %v328
    %330 = vdwg.mxu0
    %331 = vmatpush.msra.mxu0 0.0
    %332 = vmatpush.msra.mxu0 0.0
    %333 = vmatpush.msra.mxu0 0.0
    %334 = vmatpush.msra.mxu0 0.0
    %335 = vmatpush.msra.mxu0 0.0
    %336 = vmatpush.msra.mxu0 0.0
    %337 = vmatpush.msra.mxu0 0.0
    %338 = vmatpush.msra.mxu0 0.0
    %339 = vmatpush.msra.mxu0 0.0
    %340 = vmatpush.msra.mxu0 0.0
    %341 = vmatpush.msra.mxu0 0.0
    %342 = vmatpush.msra.mxu0 0.0
    %343 = vmatpush.msra.mxu0 0.0
    %344 = vmatpush.msra.mxu0 0.0
    %345 = vmatpush.msra.mxu0 %v216
    %346 = vmatpush.msra.mxu0 %v214
    %347 = vmatmul.f32.gmra.mxu0 %v219
    %v348 = vpop.f32.mrf.mxu0
    %v349 = vadd.f32 %v116, %v348
    %350 = vmatmul.f32.gmra.mxu0 %v222
    %v351 = vpop.f32.mrf.mxu0
    %v352 = vadd.f32 %v121, %v351
    %353 = vmatmul.f32.gmra.mxu0 %v225
    %v354 = vpop.f32.mrf.mxu0
    %v355 = vadd.f32 %v126, %v354
    %356 = vmatmul.f32.gmra.mxu0 %v228
    %v357 = vpop.f32.mrf.mxu0
    %v358 = vadd.f32 %v131, %v357
    %359 = vmatmul.f32.gmra.mxu0 %v231
    %v360 = vpop.f32.mrf.mxu0
    %v361 = vadd.f32 %v136, %v360
    %362 = vmatmul.f32.gmra.mxu0 %v234
    %v363 = vpop.f32.mrf.mxu0
    %v364 = vadd.f32 %v141, %v363
    %365 = vmatmul.f32.gmra.mxu0 %v237
    %v366 = vpop.f32.mrf.mxu0
    %v367 = vadd.f32 %v146, %v366
    %368 = vmatmul.f32.gmra.mxu0 %v240
    %v369 = vpop.f32.mrf.mxu0
    %v370 = vadd.f32 %v151, %v369
    %371 = vmatmul.f32.gmra.mxu0 %v243
    %v372 = vpop.f32.mrf.mxu0
    %v373 = vadd.f32 %v156, %v372
    %374 = vmatmul.f32.gmra.mxu0 %v246
    %v375 = vpop.f32.mrf.mxu0
    %v376 = vadd.f32 %v161, %v375
    %377 = vmatmul.f32.gmra.mxu0 %v249
    %v378 = vpop.f32.mrf.mxu0
    %v379 = vadd.f32 %v166, %v378
    %380 = vmatmul.f32.gmra.mxu0 %v252
    %v381 = vpop.f32.mrf.mxu0
    %v382 = vadd.f32 %v171, %v381
    %383 = vmatmul.f32.gmra.mxu0 %v255
    %v384 = vpop.f32.mrf.mxu0
    %v385 = vadd.f32 %v176, %v384
    %386 = vmatmul.f32.gmra.mxu0 %v258
    %v387 = vpop.f32.mrf.mxu0
    %v388 = vadd.f32 %v181, %v387
    %389 = vmatmul.f32.gmra.mxu0 %v261
    %v390 = vpop.f32.mrf.mxu0
    %v391 = vadd.f32 %v186, %v390
    %392 = vmatmul.f32.gmra.mxu0 %v264
    %v393 = vpop.f32.mrf.mxu0
    %v394 = vadd.f32 %v191, %v393
    %395 = vdwg.mxu0
    %v396 = vmax.f32 %v284, 0.0
    %v397 = vmax.f32 %v349, 0.0
    %v398 = vmax.f32 %v287, 0.0
    %v399 = vmax.f32 %v352, 0.0
    %v400 = vmax.f32 %v290, 0.0
    %v401 = vmax.f32 %v355, 0.0
    %v402 = vmax.f32 %v293, 0.0
    %v403 = vmax.f32 %v358, 0.0
    %v404 = vmax.f32 %v296, 0.0
    %v405 = vmax.f32 %v361, 0.0
    %v406 = vmax.f32 %v299, 0.0
    %v407 = vmax.f32 %v364, 0.0
    %v408 = vmax.f32 %v302, 0.0
    %v409 = vmax.f32 %v367, 0.0
    %v410 = vmax.f32 %v305, 0.0
    %v411 = vmax.f32 %v370, 0.0
    %v412 = vmax.f32 %v308, 0.0
    %v413 = vmax.f32 %v373, 0.0
    %v414 = vmax.f32 %v311, 0.0
    %v415 = vmax.f32 %v376, 0.0
    %v416 = vmax.f32 %v314, 0.0
    %v417 = vmax.f32 %v379, 0.0
    %v418 = vmax.f32 %v317, 0.0
    %v419 = vmax.f32 %v382, 0.0
    %v420 = vmax.f32 %v320, 0.0
    %v421 = vmax.f32 %v385, 0.0
    %v422 = vmax.f32 %v323, 0.0
    %v423 = vmax.f32 %v388, 0.0
    %v424 = vmax.f32 %v326, 0.0
    %v425 = vmax.f32 %v391, 0.0
    %v426 = vmax.f32 %v329, 0.0
    %v427 = vmax.f32 %v394, 0.0
    %v428 = vmax.f32 %v396, 0.0
    %v429 = vmax.f32 %v397, 0.0
    %v430 = vmax.f32 %v398, 0.0
    %v431 = vmax.f32 %v399, 0.0
    %v432 = vmax.f32 %v400, 0.0
    %v433 = vmax.f32 %v401, 0.0
    %v434 = vmax.f32 %v402, 0.0
    %v435 = vmax.f32 %v403, 0.0
    %v436 = vmax.f32 %v404, 0.0
    %v437 = vmax.f32 %v405, 0.0
    %v438 = vmax.f32 %v406, 0.0
    %v439 = vmax.f32 %v407, 0.0
    %v440 = vmax.f32 %v408, 0.0
    %v441 = vmax.f32 %v409, 0.0
    %v442 = vmax.f32 %v410, 0.0
    %v443 = vmax.f32 %v411, 0.0
    %v444 = vmax.f32 %v412, 0.0
    %v445 = vmax.f32 %v413, 0.0
    %v446 = vmax.f32 %v414, 0.0
    %v447 = vmax.f32 %v415, 0.0
    %v448 = vmax.f32 %v416, 0.0
    %v449 = vmax.f32 %v417, 0.0
    %v450 = vmax.f32 %v418, 0.0
    %v451 = vmax.f32 %v419, 0.0
    %v452 = vmax.f32 %v420, 0.0
    %v453 = vmax.f32 %v421, 0.0
    %v454 = vmax.f32 %v422, 0.0
    %v455 = vmax.f32 %v423, 0.0
    %v456 = vmax.f32 %v424, 0.0
    %v457 = vmax.f32 %v425, 0.0
    %v458 = vmax.f32 %v426, 0.0
    %v459 = vmax.f32 %v427, 0.0
    %v460 = vperm.slane %v39, 1
    %v461 = vperm.slane %v40, 1
    %v462 = vmul.f32 %v54, %v460
    %v463 = vmul.f32 %v54, %v461
    %v464 = vmul.f32 %v59, %v460
    %v465 = vmul.f32 %v59, %v461
    %v466 = vperm.slane %v43, 5
    %v467 = vperm.slane %v44, 5
    %v468 = vmul.f32 %v63, %v466
    %v469 = vmul.f32 %v63, %v467
    %v470 = vmul.f32 %v67, %v466
    %v471 = vmul.f32 %v67, %v467
    %v472 = vadd.f32 %v462, %v468
    %v473 = vadd.f32 %v463, %v469
    %v474 = vadd.f32 %v464, %v470
    %v475 = vadd.f32 %v465, %v471
    %v476 = vadd.f32 %v472, %v74
    %v477 = vadd.f32 %v473, %v74
    %v478 = vadd.f32 %v474, %v79
    %v479 = vadd.f32 %v475, %v79
    %v480 = vmax.f32 %v476, 0.0
    %v481 = vmax.f32 %v477, 0.0
    %v482 = vmax.f32 %v478, 0.0
    %v483 = vmax.f32 %v479, 0.0
    %484 = vmatpush.msra.mxu0 0.0
    %485 = vmatpush.msra.mxu0 0.0
    %486 = vmatpush.msra.mxu0 0.0
    %487 = vmatpush.msra.mxu0 0.0
    %488 = vmatpush.msra.mxu0 0.0
    %489 = vmatpush.msra.mxu0 0.0
    %490 = vmatpush.msra.mxu0 0.0
    %491 = vmatpush.msra.mxu0 0.0
    %492 = vmatpush.msra.mxu0 0.0
    %493 = vmatpush.msra.mxu0 0.0
    %494 = vmatpush.msra.mxu0 0.0
    %495 = vmatpush.msra.mxu0 0.0
    %496 = vmatpush.msra.mxu0 0.0
    %497 = vmatpush.msra.mxu0 0.0
    %498 = vmatpush.msra.mxu0 %v482
    %499 = vmatpush.msra.mxu0 %v480
    %500 = vmatmul.f32.gmra.mxu0 %v219
    %v501 = vpop.f32.mrf.mxu0
    %v502 = vadd.f32 %v116, %v501
    %503 = vmatmul.f32.gmra.mxu0 %v222
    %v504 = vpop.f32.mrf.mxu0
    %v505 = vadd.f32 %v121, %v504
    %506 = vmatmul.f32.gmra.mxu0 %v225
    %v507 = vpop.f32.mrf.mxu0
    %v508 = vadd.f32 %v126, %v507
    %509 = vmatmul.f32.gmra.mxu0 %v228
    %v510 = vpop.f32.mrf.mxu0
    %v511 = vadd.f32 %v131, %v510
    %512 = vmatmul.f32.gmra.mxu0 %v231
    %v513 = vpop.f32.mrf.mxu0
    %v514 = vadd.f32 %v136, %v513
    %515 = vmatmul.f32.gmra.mxu0 %v234
    %v516 = vpop.f32.mrf.mxu0
    %v517 = vadd.f32 %v141, %v516
    %518 = vmatmul.f32.gmra.mxu0 %v237
    %v519 = vpop.f32.mrf.mxu0
    %v520 = vadd.f32 %v146, %v519
    %521 = vmatmul.f32.gmra.mxu0 %v240
    %v522 = vpop.f32.mrf.mxu0
    %v523 = vadd.f32 %v151, %v522
    %524 = vmatmul.f32.gmra.mxu0 %v243
    %v525 = vpop.f32.mrf.mxu0
    %v526 = vadd.f32 %v156, %v525
    %527 = vmatmul.f32.gmra.mxu0 %v246
    %v528 = vpop.f32.mrf.mxu0
    %v529 = vadd.f32 %v161, %v528
    %530 = vmatmul.f32.gmra.mxu0 %v249
    %v531 = vpop.f32.mrf.mxu0
    %v532 = vadd.f32 %v166, %v531
    %533 = vmatmul.f32.gmra.mxu0 %v252
    %v534 = vpop.f32.mrf.mxu0
    %v535 = vadd.f32 %v171, %v534
    %536 = vmatmul.f32.gmra.mxu0 %v255
    %v537 = vpop.f32.mrf.mxu0
    %v538 = vadd.f32 %v176, %v537
    %539 = vmatmul.f32.gmra.mxu0 %v258
    %v540 = vpop.f32.mrf.mxu0
    %v541 = vadd.f32 %v181, %v540
    %542 = vmatmul.f32.gmra.mxu0 %v261
    %v543 = vpop.f32.mrf.mxu0
    %v544 = vadd.f32 %v186, %v543
    %545 = vmatmul.f32.gmra.mxu0 %v264
    %v546 = vpop.f32.mrf.mxu0
    %v547 = vadd.f32 %v191, %v546
    %548 = vdwg.mxu0
    %549 = vmatpush.msra.mxu0 0.0
    %550 = vmatpush.msra.mxu0 0.0
    %551 = vmatpush.msra.mxu0 0.0
    %552 = vmatpush.msra.mxu0 0.0
    %553 = vmatpush.msra.mxu0 0.0
    %554 = vmatpush.msra.mxu0 0.0
    %555 = vmatpush.msra.mxu0 0.0
    %556 = vmatpush.msra.mxu0 0.0
    %557 = vmatpush.msra.mxu0 0.0
    %558 = vmatpush.msra.mxu0 0.0
    %559 = vmatpush.msra.mxu0 0.0
    %560 = vmatpush.msra.mxu0 0.0
    %561 = vmatpush.msra.mxu0 0.0
    %562 = vmatpush.msra.mxu0 0.0
    %563 = vmatpush.msra.mxu0 %v483
    %564 = vmatpush.msra.mxu0 %v481
    %565 = vmatmul.f32.gmra.mxu0 %v219
    %v566 = vpop.f32.mrf.mxu0
    %v567 = vadd.f32 %v116, %v566
    %568 = vmatmul.f32.gmra.mxu0 %v222
    %v569 = vpop.f32.mrf.mxu0
    %v570 = vadd.f32 %v121, %v569
    %571 = vmatmul.f32.gmra.mxu0 %v225
    %v572 = vpop.f32.mrf.mxu0
    %v573 = vadd.f32 %v126, %v572
    %574 = vmatmul.f32.gmra.mxu0 %v228
    %v575 = vpop.f32.mrf.mxu0
    %v576 = vadd.f32 %v131, %v575
    %577 = vmatmul.f32.gmra.mxu0 %v231
    %v578 = vpop.f32.mrf.mxu0
    %v579 = vadd.f32 %v136, %v578
    %580 = vmatmul.f32.gmra.mxu0 %v234
    %v581 = vpop.f32.mrf.mxu0
    %v582 = vadd.f32 %v141, %v581
    %583 = vmatmul.f32.gmra.mxu0 %v237
    %v584 = vpop.f32.mrf.mxu0
    %v585 = vadd.f32 %v146, %v584
    %586 = vmatmul.f32.gmra.mxu0 %v240
    %v587 = vpop.f32.mrf.mxu0
    %v588 = vadd.f32 %v151, %v587
    %589 = vmatmul.f32.gmra.mxu0 %v243
    %v590 = vpop.f32.mrf.mxu0
    %v591 = vadd.f32 %v156, %v590
    %592 = vmatmul.f32.gmra.mxu0 %v246
    %v593 = vpop.f32.mrf.mxu0
    %v594 = vadd.f32 %v161, %v593
    %595 = vmatmul.f32.gmra.mxu0 %v249
    %v596 = vpop.f32.mrf.mxu0
    %v597 = vadd.f32 %v166, %v596
    %598 = vmatmul.f32.gmra.mxu0 %v252
    %v599 = vpop.f32.mrf.mxu0
    %v600 = vadd.f32 %v171, %v599
    %601 = vmatmul.f32.gmra.mxu0 %v255
    %v602 = vpop.f32.mrf.mxu0
    %v603 = vadd.f32 %v176, %v602
    %604 = vmatmul.f32.gmra.mxu0 %v258
    %v605 = vpop.f32.mrf.mxu0
    %v606 = vadd.f32 %v181, %v605
    %607 = vmatmul.f32.gmra.mxu0 %v261
    %v608 = vpop.f32.mrf.mxu0
    %v609 = vadd.f32 %v186, %v608
    %610 = vmatmul.f32.gmra.mxu0 %v264
    %v611 = vpop.f32.mrf.mxu0
    %v612 = vadd.f32 %v191, %v611
    %613 = vdwg.mxu0
    %v614 = vmax.f32 %v502, 0.0
    %v615 = vmax.f32 %v567, 0.0
    %v616 = vmax.f32 %v505, 0.0
    %v617 = vmax.f32 %v570, 0.0
    %v618 = vmax.f32 %v508, 0.0
    %v619 = vmax.f32 %v573, 0.0
    %v620 = vmax.f32 %v511, 0.0
    %v621 = vmax.f32 %v576, 0.0
    %v622 = vmax.f32 %v514, 0.0
    %v623 = vmax.f32 %v579, 0.0
    %v624 = vmax.f32 %v517, 0.0
    %v625 = vmax.f32 %v582, 0.0
    %v626 = vmax.f32 %v520, 0.0
    %v627 = vmax.f32 %v585, 0.0
    %v628 = vmax.f32 %v523, 0.0
    %v629 = vmax.f32 %v588, 0.0
    %v630 = vmax.f32 %v526, 0.0
    %v631 = vmax.f32 %v591, 0.0
    %v632 = vmax.f32 %v529, 0.0
    %v633 = vmax.f32 %v594, 0.0
    %v634 = vmax.f32 %v532, 0.0
    %v635 = vmax.f32 %v597, 0.0
    %v636 = vmax.f32 %v535, 0.0
    %v637 = vmax.f32 %v600, 0.0
    %v638 = vmax.f32 %v538, 0.0
    %v639 = vmax.f32 %v603, 0.0
    %v640 = vmax.f32 %v541, 0.0
    %v641 = vmax.f32 %v606, 0.0
    %v642 = vmax.f32 %v544, 0.0
    %v643 = vmax.f32 %v609, 0.0
    %v644 = vmax.f32 %v547, 0.0
    %v645 = vmax.f32 %v612, 0.0
    %v646 = vmax.f32 %v428, %v614
    %v647 = vmax.f32 %v429, %v615
    %v648 = vmax.f32 %v430, %v616
    %v649 = vmax.f32 %v431, %v617
    %v650 = vmax.f32 %v432, %v618
    %v651 = vmax.f32 %v433, %v619
    %v652 = vmax.f32 %v434, %v620
    %v653 = vmax.f32 %v435, %v621
    %v654 = vmax.f32 %v436, %v622
    %v655 = vmax.f32 %v437, %v623
    %v656 = vmax.f32 %v438, %v624
    %v657 = vmax.f32 %v439, %v625
    %v658 = vmax.f32 %v440, %v626
    %v659 = vmax.f32 %v441, %v627
    %v660 = vmax.f32 %v442, %v628
    %v661 = vmax.f32 %v443, %v629
    %v662 = vmax.f32 %v444, %v630
    %v663 = vmax.f32 %v445, %v631
    %v664 = vmax.f32 %v446, %v632
    %v665 = vmax.f32 %v447, %v633
    %v666 = vmax.f32 %v448, %v634
    %v667 = vmax.f32 %v449, %v635
    %v668 = vmax.f32 %v450, %v636
    %v669 = vmax.f32 %v451, %v637
    %v670 = vmax.f32 %v452, %v638
    %v671 = vmax.f32 %v453, %v639
    %v672 = vmax.f32 %v454, %v640
    %v673 = vmax.f32 %v455, %v641
    %v674 = vmax.f32 %v456, %v642
    %v675 = vmax.f32 %v457, %v643
    %v676 = vmax.f32 %v458, %v644
    %v677 = vmax.f32 %v459, %v645
    %v678 = vperm.slane %v39, 2
    %v679 = vperm.slane %v40, 2
    %v680 = vmul.f32 %v54, %v678
    %v681 = vmul.f32 %v54, %v679
    %v682 = vmul.f32 %v59, %v678
    %v683 = vmul.f32 %v59, %v679
    %v684 = vperm.slane %v43, 6
    %v685 = vperm.slane %v44, 6
    %v686 = vmul.f32 %v63, %v684
    %v687 = vmul.f32 %v63, %v685
    %v688 = vmul.f32 %v67, %v684
    %v689 = vmul.f32 %v67, %v685
    %v690 = vadd.f32 %v680, %v686
    %v691 = vadd.f32 %v681, %v687
    %v692 = vadd.f32 %v682, %v688
    %v693 = vadd.f32 %v683, %v689
    %v694 = vadd.f32 %v690, %v74
    %v695 = vadd.f32 %v691, %v74
    %v696 = vadd.f32 %v692, %v79
    %v697 = vadd.f32 %v693, %v79
    %v698 = vmax.f32 %v694, 0.0
    %v699 = vmax.f32 %v695, 0.0
    %v700 = vmax.f32 %v696, 0.0
    %v701 = vmax.f32 %v697, 0.0
    %702 = vmatpush.msra.mxu0 0.0
    %703 = vmatpush.msra.mxu0 0.0
    %704 = vmatpush.msra.mxu0 0.0
    %705 = vmatpush.msra.mxu0 0.0
    %706 = vmatpush.msra.mxu0 0.0
    %707 = vmatpush.msra.mxu0 0.0
    %708 = vmatpush.msra.mxu0 0.0
    %709 = vmatpush.msra.mxu0 0.0
    %710 = vmatpush.msra.mxu0 0.0
    %711 = vmatpush.msra.mxu0 0.0
    %712 = vmatpush.msra.mxu0 0.0
    %713 = vmatpush.msra.mxu0 0.0
    %714 = vmatpush.msra.mxu0 0.0
    %715 = vmatpush.msra.mxu0 0.0
    %716 = vmatpush.msra.mxu0 %v700
    %717 = vmatpush.msra.mxu0 %v698
    %718 = vmatmul.f32.gmra.mxu0 %v219
    %v719 = vpop.f32.mrf.mxu0
    %v720 = vadd.f32 %v116, %v719
    %721 = vmatmul.f32.gmra.mxu0 %v222
    %v722 = vpop.f32.mrf.mxu0
    %v723 = vadd.f32 %v121, %v722
    %724 = vmatmul.f32.gmra.mxu0 %v225
    %v725 = vpop.f32.mrf.mxu0
    %v726 = vadd.f32 %v126, %v725
    %727 = vmatmul.f32.gmra.mxu0 %v228
    %v728 = vpop.f32.mrf.mxu0
    %v729 = vadd.f32 %v131, %v728
    %730 = vmatmul.f32.gmra.mxu0 %v231
    %v731 = vpop.f32.mrf.mxu0
    %v732 = vadd.f32 %v136, %v731
    %733 = vmatmul.f32.gmra.mxu0 %v234
    %v734 = vpop.f32.mrf.mxu0
    %v735 = vadd.f32 %v141, %v734
    %736 = vmatmul.f32.gmra.mxu0 %v237
    %v737 = vpop.f32.mrf.mxu0
    %v738 = vadd.f32 %v146, %v737
    %739 = vmatmul.f32.gmra.mxu0 %v240
    %v740 = vpop.f32.mrf.mxu0
    %v741 = vadd.f32 %v151, %v740
    %742 = vmatmul.f32.gmra.mxu0 %v243
    %v743 = vpop.f32.mrf.mxu0
    %v744 = vadd.f32 %v156, %v743
    %745 = vmatmul.f32.gmra.mxu0 %v246
    %v746 = vpop.f32.mrf.mxu0
    %v747 = vadd.f32 %v161, %v746
    %748 = vmatmul.f32.gmra.mxu0 %v249
    %v749 = vpop.f32.mrf.mxu0
    %v750 = vadd.f32 %v166, %v749
    %751 = vmatmul.f32.gmra.mxu0 %v252
    %v752 = vpop.f32.mrf.mxu0
    %v753 = vadd.f32 %v171, %v752
    %754 = vmatmul.f32.gmra.mxu0 %v255
    %v755 = vpop.f32.mrf.mxu0
    %v756 = vadd.f32 %v176, %v755
    %757 = vmatmul.f32.gmra.mxu0 %v258
    %v758 = vpop.f32.mrf.mxu0
    %v759 = vadd.f32 %v181, %v758
    %760 = vmatmul.f32.gmra.mxu0 %v261
    %v761 = vpop.f32.mrf.mxu0
    %v762 = vadd.f32 %v186, %v761
    %763 = vmatmul.f32.gmra.mxu0 %v264
    %v764 = vpop.f32.mrf.mxu0
    %v765 = vadd.f32 %v191, %v764
    %766 = vdwg.mxu0
    %767 = vmatpush.msra.mxu0 0.0
    %768 = vmatpush.msra.mxu0 0.0
    %769 = vmatpush.msra.mxu0 0.0
    %770 = vmatpush.msra.mxu0 0.0
    %771 = vmatpush.msra.mxu0 0.0
    %772 = vmatpush.msra.mxu0 0.0
    %773 = vmatpush.msra.mxu0 0.0
    %774 = vmatpush.msra.mxu0 0.0
    %775 = vmatpush.msra.mxu0 0.0
    %776 = vmatpush.msra.mxu0 0.0
    %777 = vmatpush.msra.mxu0 0.0
    %778 = vmatpush.msra.mxu0 0.0
    %779 = vmatpush.msra.mxu0 0.0
    %780 = vmatpush.msra.mxu0 0.0
    %781 = vmatpush.msra.mxu0 %v701
    %782 = vmatpush.msra.mxu0 %v699
    %783 = vmatmul.f32.gmra.mxu0 %v219
    %v784 = vpop.f32.mrf.mxu0
    %v785 = vadd.f32 %v116, %v784
    %786 = vmatmul.f32.gmra.mxu0 %v222
    %v787 = vpop.f32.mrf.mxu0
    %v788 = vadd.f32 %v121, %v787
    %789 = vmatmul.f32.gmra.mxu0 %v225
    %v790 = vpop.f32.mrf.mxu0
    %v791 = vadd.f32 %v126, %v790
    %792 = vmatmul.f32.gmra.mxu0 %v228
    %v793 = vpop.f32.mrf.mxu0
    %v794 = vadd.f32 %v131, %v793
    %795 = vmatmul.f32.gmra.mxu0 %v231
    %v796 = vpop.f32.mrf.mxu0
    %v797 = vadd.f32 %v136, %v796
    %798 = vmatmul.f32.gmra.mxu0 %v234
    %v799 = vpop.f32.mrf.mxu0
    %v800 = vadd.f32 %v141, %v799
    %801 = vmatmul.f32.gmra.mxu0 %v237
    %v802 = vpop.f32.mrf.mxu0
    %v803 = vadd.f32 %v146, %v802
    %804 = vmatmul.f32.gmra.mxu0 %v240
    %v805 = vpop.f32.mrf.mxu0
    %v806 = vadd.f32 %v151, %v805
    %807 = vmatmul.f32.gmra.mxu0 %v243
    %v808 = vpop.f32.mrf.mxu0
    %v809 = vadd.f32 %v156, %v808
    %810 = vmatmul.f32.gmra.mxu0 %v246
    %v811 = vpop.f32.mrf.mxu0
    %v812 = vadd.f32 %v161, %v811
    %813 = vmatmul.f32.gmra.mxu0 %v249
    %v814 = vpop.f32.mrf.mxu0
    %v815 = vadd.f32 %v166, %v814
    %816 = vmatmul.f32.gmra.mxu0 %v252
    %v817 = vpop.f32.mrf.mxu0
    %v818 = vadd.f32 %v171, %v817
    %819 = vmatmul.f32.gmra.mxu0 %v255
    %v820 = vpop.f32.mrf.mxu0
    %v821 = vadd.f32 %v176, %v820
    %822 = vmatmul.f32.gmra.mxu0 %v258
    %v823 = vpop.f32.mrf.mxu0
    %v824 = vadd.f32 %v181, %v823
    %825 = vmatmul.f32.gmra.mxu0 %v261
    %v826 = vpop.f32.mrf.mxu0
    %v827 = vadd.f32 %v186, %v826
    %828 = vmatmul.f32.gmra.mxu0 %v264
    %v829 = vpop.f32.mrf.mxu0
    %v830 = vadd.f32 %v191, %v829
    %831 = vdwg.mxu0
    %v832 = vmax.f32 %v720, 0.0
    %v833 = vmax.f32 %v785, 0.0
    %v834 = vmax.f32 %v723, 0.0
    %v835 = vmax.f32 %v788, 0.0
    %v836 = vmax.f32 %v726, 0.0
    %v837 = vmax.f32 %v791, 0.0
    %v838 = vmax.f32 %v729, 0.0
    %v839 = vmax.f32 %v794, 0.0
    %v840 = vmax.f32 %v732, 0.0
    %v841 = vmax.f32 %v797, 0.0
    %v842 = vmax.f32 %v735, 0.0
    %v843 = vmax.f32 %v800, 0.0
    %v844 = vmax.f32 %v738, 0.0
    %v845 = vmax.f32 %v803, 0.0
    %v846 = vmax.f32 %v741, 0.0
    %v847 = vmax.f32 %v806, 0.0
    %v848 = vmax.f32 %v744, 0.0
    %v849 = vmax.f32 %v809, 0.0
    %v850 = vmax.f32 %v747, 0.0
    %v851 = vmax.f32 %v812, 0.0
    %v852 = vmax.f32 %v750, 0.0
    %v853 = vmax.f32 %v815, 0.0
    %v854 = vmax.f32 %v753, 0.0
    %v855 = vmax.f32 %v818, 0.0
    %v856 = vmax.f32 %v756, 0.0
    %v857 = vmax.f32 %v821, 0.0
    %v858 = vmax.f32 %v759, 0.0
    %v859 = vmax.f32 %v824, 0.0
    %v860 = vmax.f32 %v762, 0.0
    %v861 = vmax.f32 %v827, 0.0
    %v862 = vmax.f32 %v765, 0.0
    %v863 = vmax.f32 %v830, 0.0
    %v864 = vmax.f32 %v646, %v832
    %v865 = vmax.f32 %v647, %v833
    %v866 = vmax.f32 %v648, %v834
    %v867 = vmax.f32 %v649, %v835
    %v868 = vmax.f32 %v650, %v836
    %v869 = vmax.f32 %v651, %v837
    %v870 = vmax.f32 %v652, %v838
    %v871 = vmax.f32 %v653, %v839
    %v872 = vmax.f32 %v654, %v840
    %v873 = vmax.f32 %v655, %v841
    %v874 = vmax.f32 %v656, %v842
    %v875 = vmax.f32 %v657, %v843
    %v876 = vmax.f32 %v658, %v844
    %v877 = vmax.f32 %v659, %v845
    %v878 = vmax.f32 %v660, %v846
    %v879 = vmax.f32 %v661, %v847
    %v880 = vmax.f32 %v662, %v848
    %v881 = vmax.f32 %v663, %v849
    %v882 = vmax.f32 %v664, %v850
    %v883 = vmax.f32 %v665, %v851
    %v884 = vmax.f32 %v666, %v852
    %v885 = vmax.f32 %v667, %v853
    %v886 = vmax.f32 %v668, %v854
    %v887 = vmax.f32 %v669, %v855
    %v888 = vmax.f32 %v670, %v856
    %v889 = vmax.f32 %v671, %v857
    %v890 = vmax.f32 %v672, %v858
    %v891 = vmax.f32 %v673, %v859
    %v892 = vmax.f32 %v674, %v860
    %v893 = vmax.f32 %v675, %v861
    %v894 = vmax.f32 %v676, %v862
    %v895 = vmax.f32 %v677, %v863
    %v896 = vperm.slane %v39, 3
    %v897 = vperm.slane %v40, 3
    %v898 = vmul.f32 %v54, %v896
    %v899 = vmul.f32 %v54, %v897
    %v900 = vmul.f32 %v59, %v896
    %v901 = vmul.f32 %v59, %v897
    %v902 = vperm.slane %v43, 7
    %v903 = vperm.slane %v44, 7
    %v904 = vmul.f32 %v63, %v902
    %v905 = vmul.f32 %v63, %v903
    %v906 = vmul.f32 %v67, %v902
    %v907 = vmul.f32 %v67, %v903
    %v908 = vadd.f32 %v898, %v904
    %v909 = vadd.f32 %v899, %v905
    %v910 = vadd.f32 %v900, %v906
    %v911 = vadd.f32 %v901, %v907
    %v912 = vadd.f32 %v908, %v74
    %v913 = vadd.f32 %v909, %v74
    %v914 = vadd.f32 %v910, %v79
    %v915 = vadd.f32 %v911, %v79
    %v916 = vmax.f32 %v912, 0.0
    %v917 = vmax.f32 %v913, 0.0
    %v918 = vmax.f32 %v914, 0.0
    %v919 = vmax.f32 %v915, 0.0
    %920 = vmatpush.msra.mxu0 0.0
    %921 = vmatpush.msra.mxu0 0.0
    %922 = vmatpush.msra.mxu0 0.0
    %923 = vmatpush.msra.mxu0 0.0
    %924 = vmatpush.msra.mxu0 0.0
    %925 = vmatpush.msra.mxu0 0.0
    %926 = vmatpush.msra.mxu0 0.0
    %927 = vmatpush.msra.mxu0 0.0
    %928 = vmatpush.msra.mxu0 0.0
    %929 = vmatpush.msra.mxu0 0.0
    %930 = vmatpush.msra.mxu0 0.0
    %931 = vmatpush.msra.mxu0 0.0
    %932 = vmatpush.msra.mxu0 0.0
    %933 = vmatpush.msra.mxu0 0.0
    %934 = vmatpush.msra.mxu0 %v918
    %935 = vmatpush.msra.mxu0 %v916
    %936 = vmatmul.f32.gmra.mxu0 %v219
    %v937 = vpop.f32.mrf.mxu0
    %v938 = vadd.f32 %v116, %v937
    %939 = vmatmul.f32.gmra.mxu0 %v222
    %v940 = vpop.f32.mrf.mxu0
    %v941 = vadd.f32 %v121, %v940
    %942 = vmatmul.f32.gmra.mxu0 %v225
    %v943 = vpop.f32.mrf.mxu0
    %v944 = vadd.f32 %v126, %v943
    %945 = vmatmul.f32.gmra.mxu0 %v228
    %v946 = vpop.f32.mrf.mxu0
    %v947 = vadd.f32 %v131, %v946
    %948 = vmatmul.f32.gmra.mxu0 %v231
    %v949 = vpop.f32.mrf.mxu0
    %v950 = vadd.f32 %v136, %v949
    %951 = vmatmul.f32.gmra.mxu0 %v234
    %v952 = vpop.f32.mrf.mxu0
    %v953 = vadd.f32 %v141, %v952
    %954 = vmatmul.f32.gmra.mxu0 %v237
    %v955 = vpop.f32.mrf.mxu0
    %v956 = vadd.f32 %v146, %v955
    %957 = vmatmul.f32.gmra.mxu0 %v240
    %v958 = vpop.f32.mrf.mxu0
    %v959 = vadd.f32 %v151, %v958
    %960 = vmatmul.f32.gmra.mxu0 %v243
    %v961 = vpop.f32.mrf.mxu0
    %v962 = vadd.f32 %v156, %v961
    %963 = vmatmul.f32.gmra.mxu0 %v246
    %v964 = vpop.f32.mrf.mxu0
    %v965 = vadd.f32 %v161, %v964
    %966 = vmatmul.f32.gmra.mxu0 %v249
    %v967 = vpop.f32.mrf.mxu0
    %v968 = vadd.f32 %v166, %v967
    %969 = vmatmul.f32.gmra.mxu0 %v252
    %v970 = vpop.f32.mrf.mxu0
    %v971 = vadd.f32 %v171, %v970
    %972 = vmatmul.f32.gmra.mxu0 %v255
    %v973 = vpop.f32.mrf.mxu0
    %v974 = vadd.f32 %v176, %v973
    %975 = vmatmul.f32.gmra.mxu0 %v258
    %v976 = vpop.f32.mrf.mxu0
    %v977 = vadd.f32 %v181, %v976
    %978 = vmatmul.f32.gmra.mxu0 %v261
    %v979 = vpop.f32.mrf.mxu0
    %v980 = vadd.f32 %v186, %v979
    %981 = vmatmul.f32.gmra.mxu0 %v264
    %v982 = vpop.f32.mrf.mxu0
    %v983 = vadd.f32 %v191, %v982
    %984 = vdwg.mxu0
    %985 = vmatpush.msra.mxu0 0.0
    %986 = vmatpush.msra.mxu0 0.0
    %987 = vmatpush.msra.mxu0 0.0
    %988 = vmatpush.msra.mxu0 0.0
    %989 = vmatpush.msra.mxu0 0.0
    %990 = vmatpush.msra.mxu0 0.0
    %991 = vmatpush.msra.mxu0 0.0
    %992 = vmatpush.msra.mxu0 0.0
    %993 = vmatpush.msra.mxu0 0.0
    %994 = vmatpush.msra.mxu0 0.0
    %995 = vmatpush.msra.mxu0 0.0
    %996 = vmatpush.msra.mxu0 0.0
    %997 = vmatpush.msra.mxu0 0.0
    %998 = vmatpush.msra.mxu0 0.0
    %999 = vmatpush.msra.mxu0 %v919
    %1000 = vmatpush.msra.mxu0 %v917
    %1001 = vmatmul.f32.gmra.mxu0 %v219
    %v1002 = vpop.f32.mrf.mxu0
    %v1003 = vadd.f32 %v116, %v1002
    %1004 = vmatmul.f32.gmra.mxu0 %v222
    %v1005 = vpop.f32.mrf.mxu0
    %v1006 = vadd.f32 %v121, %v1005
    %1007 = vmatmul.f32.gmra.mxu0 %v225
    %v1008 = vpop.f32.mrf.mxu0
    %v1009 = vadd.f32 %v126, %v1008
    %1010 = vmatmul.f32.gmra.mxu0 %v228
    %v1011 = vpop.f32.mrf.mxu0
    %v1012 = vadd.f32 %v131, %v1011
    %1013 = vmatmul.f32.gmra.mxu0 %v231
    %v1014 = vpop.f32.mrf.mxu0
    %v1015 = vadd.f32 %v136, %v1014
    %1016 = vmatmul.f32.gmra.mxu0 %v234
    %v1017 = vpop.f32.mrf.mxu0
    %v1018 = vadd.f32 %v141, %v1017
    %1019 = vmatmul.f32.gmra.mxu0 %v237
    %v1020 = vpop.f32.mrf.mxu0
    %v1021 = vadd.f32 %v146, %v1020
    %1022 = vmatmul.f32.gmra.mxu0 %v240
    %v1023 = vpop.f32.mrf.mxu0
    %v1024 = vadd.f32 %v151, %v1023
    %1025 = vmatmul.f32.gmra.mxu0 %v243
    %v1026 = vpop.f32.mrf.mxu0
    %v1027 = vadd.f32 %v156, %v1026
    %1028 = vmatmul.f32.gmra.mxu0 %v246
    %v1029 = vpop.f32.mrf.mxu0
    %v1030 = vadd.f32 %v161, %v1029
    %1031 = vmatmul.f32.gmra.mxu0 %v249
    %v1032 = vpop.f32.mrf.mxu0
    %v1033 = vadd.f32 %v166, %v1032
    %1034 = vmatmul.f32.gmra.mxu0 %v252
    %v1035 = vpop.f32.mrf.mxu0
    %v1036 = vadd.f32 %v171, %v1035
    %1037 = vmatmul.f32.gmra.mxu0 %v255
    %v1038 = vpop.f32.mrf.mxu0
    %v1039 = vadd.f32 %v176, %v1038
    %1040 = vmatmul.f32.gmra.mxu0 %v258
    %v1041 = vpop.f32.mrf.mxu0
    %v1042 = vadd.f32 %v181, %v1041
    %1043 = vmatmul.f32.gmra.mxu0 %v261
    %v1044 = vpop.f32.mrf.mxu0
    %v1045 = vadd.f32 %v186, %v1044
    %1046 = vmatmul.f32.gmra.mxu0 %v264
    %v1047 = vpop.f32.mrf.mxu0
    %v1048 = vadd.f32 %v191, %v1047
    %1049 = vdwg.mxu0
    %v1050 = vmax.f32 %v938, 0.0
    %v1051 = vmax.f32 %v1003, 0.0
    %v1052 = vmax.f32 %v941, 0.0
    %v1053 = vmax.f32 %v1006, 0.0
    %v1054 = vmax.f32 %v944, 0.0
    %v1055 = vmax.f32 %v1009, 0.0
    %v1056 = vmax.f32 %v947, 0.0
    %v1057 = vmax.f32 %v1012, 0.0
    %v1058 = vmax.f32 %v950, 0.0
    %v1059 = vmax.f32 %v1015, 0.0
    %v1060 = vmax.f32 %v953, 0.0
    %v1061 = vmax.f32 %v1018, 0.0
    %v1062 = vmax.f32 %v956, 0.0
    %v1063 = vmax.f32 %v1021, 0.0
    %v1064 = vmax.f32 %v959, 0.0
    %v1065 = vmax.f32 %v1024, 0.0
    %v1066 = vmax.f32 %v962, 0.0
    %v1067 = vmax.f32 %v1027, 0.0
    %v1068 = vmax.f32 %v965, 0.0
    %v1069 = vmax.f32 %v1030, 0.0
    %v1070 = vmax.f32 %v968, 0.0
    %v1071 = vmax.f32 %v1033, 0.0
    %v1072 = vmax.f32 %v971, 0.0
    %v1073 = vmax.f32 %v1036, 0.0
    %v1074 = vmax.f32 %v974, 0.0
    %v1075 = vmax.f32 %v1039, 0.0
    %v1076 = vmax.f32 %v977, 0.0
    %v1077 = vmax.f32 %v1042, 0.0
    %v1078 = vmax.f32 %v980, 0.0
    %v1079 = vmax.f32 %v1045, 0.0
    %v1080 = vmax.f32 %v983, 0.0
    %v1081 = vmax.f32 %v1048, 0.0
    %v1082 = vmax.f32 %v864, %v1050
    %v1083 = vmax.f32 %v865, %v1051
    %v1084 = vmax.f32 %v866, %v1052
    %v1085 = vmax.f32 %v867, %v1053
    %v1086 = vmax.f32 %v868, %v1054
    %v1087 = vmax.f32 %v869, %v1055
    %v1088 = vmax.f32 %v870, %v1056
    %v1089 = vmax.f32 %v871, %v1057
    %v1090 = vmax.f32 %v872, %v1058
    %v1091 = vmax.f32 %v873, %v1059
    %v1092 = vmax.f32 %v874, %v1060
    %v1093 = vmax.f32 %v875, %v1061
    %v1094 = vmax.f32 %v876, %v1062
    %v1095 = vmax.f32 %v877, %v1063
    %v1096 = vmax.f32 %v878, %v1064
    %v1097 = vmax.f32 %v879, %v1065
    %v1098 = vmax.f32 %v880, %v1066
    %v1099 = vmax.f32 %v881, %v1067
    %v1100 = vmax.f32 %v882, %v1068
    %v1101 = vmax.f32 %v883, %v1069
    %v1102 = vmax.f32 %v884, %v1070
    %v1103 = vmax.f32 %v885, %v1071
    %v1104 = vmax.f32 %v886, %v1072
    %v1105 = vmax.f32 %v887, %v1073
    %v1106 = vmax.f32 %v888, %v1074
    %v1107 = vmax.f32 %v889, %v1075
    %v1108 = vmax.f32 %v890, %v1076
    %v1109 = vmax.f32 %v891, %v1077
    %v1110 = vmax.f32 %v892, %v1078
    %v1111 = vmax.f32 %v893, %v1079
    %v1112 = vmax.f32 %v894, %v1080
    %v1113 = vmax.f32 %v895, %v1081
    %v1114 = vperm.slane %v39, 4
    %v1115 = vperm.slane %v40, 4
    %v1116 = vmul.f32 %v54, %v1114
    %v1117 = vmul.f32 %v54, %v1115
    %v1118 = vmul.f32 %v59, %v1114
    %v1119 = vmul.f32 %v59, %v1115
    %v1120 = vperm.slane %v45, 0
    %v1121 = vperm.slane %v46, 0
    %v1122 = vmul.f32 %v63, %v1120
    %v1123 = vmul.f32 %v63, %v1121
    %v1124 = vmul.f32 %v67, %v1120
    %v1125 = vmul.f32 %v67, %v1121
    %v1126 = vadd.f32 %v1116, %v1122
    %v1127 = vadd.f32 %v1117, %v1123
    %v1128 = vadd.f32 %v1118, %v1124
    %v1129 = vadd.f32 %v1119, %v1125
    %v1130 = vadd.f32 %v1126, %v74
    %v1131 = vadd.f32 %v1127, %v74
    %v1132 = vadd.f32 %v1128, %v79
    %v1133 = vadd.f32 %v1129, %v79
    %v1134 = vmax.f32 %v1130, 0.0
    %v1135 = vmax.f32 %v1131, 0.0
    %v1136 = vmax.f32 %v1132, 0.0
    %v1137 = vmax.f32 %v1133, 0.0
    %1138 = vmatpush.msra.mxu0 0.0
    %1139 = vmatpush.msra.mxu0 0.0
    %1140 = vmatpush.msra.mxu0 0.0
    %1141 = vmatpush.msra.mxu0 0.0
    %1142 = vmatpush.msra.mxu0 0.0
    %1143 = vmatpush.msra.mxu0 0.0
    %1144 = vmatpush.msra.mxu0 0.0
    %1145 = vmatpush.msra.mxu0 0.0
    %1146 = vmatpush.msra.mxu0 0.0
    %1147 = vmatpush.msra.mxu0 0.0
    %1148 = vmatpush.msra.mxu0 0.0
    %1149 = vmatpush.msra.mxu0 0.0
    %1150 = vmatpush.msra.mxu0 0.0
    %1151 = vmatpush.msra.mxu0 0.0
    %1152 = vmatpush.msra.mxu0 %v1136
    %1153 = vmatpush.msra.mxu0 %v1134
    %1154 = vmatmul.f32.gmra.mxu0 %v219
    %v1155 = vpop.f32.mrf.mxu0
    %v1156 = vadd.f32 %v116, %v1155
    %1157 = vmatmul.f32.gmra.mxu0 %v222
    %v1158 = vpop.f32.mrf.mxu0
    %v1159 = vadd.f32 %v121, %v1158
    %1160 = vmatmul.f32.gmra.mxu0 %v225
    %v1161 = vpop.f32.mrf.mxu0
    %v1162 = vadd.f32 %v126, %v1161
    %1163 = vmatmul.f32.gmra.mxu0 %v228
    %v1164 = vpop.f32.mrf.mxu0
    %v1165 = vadd.f32 %v131, %v1164
    %1166 = vmatmul.f32.gmra.mxu0 %v231
    %v1167 = vpop.f32.mrf.mxu0
    %v1168 = vadd.f32 %v136, %v1167
    %1169 = vmatmul.f32.gmra.mxu0 %v234
    %v1170 = vpop.f32.mrf.mxu0
    %v1171 = vadd.f32 %v141, %v1170
    %1172 = vmatmul.f32.gmra.mxu0 %v237
    %v1173 = vpop.f32.mrf.mxu0
    %v1174 = vadd.f32 %v146, %v1173
    %1175 = vmatmul.f32.gmra.mxu0 %v240
    %v1176 = vpop.f32.mrf.mxu0
    %v1177 = vadd.f32 %v151, %v1176
    %1178 = vmatmul.f32.gmra.mxu0 %v243
    %v1179 = vpop.f32.mrf.mxu0
    %v1180 = vadd.f32 %v156, %v1179
    %1181 = vmatmul.f32.gmra.mxu0 %v246
    %v1182 = vpop.f32.mrf.mxu0
    %v1183 = vadd.f32 %v161, %v1182
    %1184 = vmatmul.f32.gmra.mxu0 %v249
    %v1185 = vpop.f32.mrf.mxu0
    %v1186 = vadd.f32 %v166, %v1185
    %1187 = vmatmul.f32.gmra.mxu0 %v252
    %v1188 = vpop.f32.mrf.mxu0
    %v1189 = vadd.f32 %v171, %v1188
    %1190 = vmatmul.f32.gmra.mxu0 %v255
    %v1191 = vpop.f32.mrf.mxu0
    %v1192 = vadd.f32 %v176, %v1191
    %1193 = vmatmul.f32.gmra.mxu0 %v258
    %v1194 = vpop.f32.mrf.mxu0
    %v1195 = vadd.f32 %v181, %v1194
    %1196 = vmatmul.f32.gmra.mxu0 %v261
    %v1197 = vpop.f32.mrf.mxu0
    %v1198 = vadd.f32 %v186, %v1197
    %1199 = vmatmul.f32.gmra.mxu0 %v264
    %v1200 = vpop.f32.mrf.mxu0
    %v1201 = vadd.f32 %v191, %v1200
    %1202 = vdwg.mxu0
    %1203 = vmatpush.msra.mxu0 0.0
    %1204 = vmatpush.msra.mxu0 0.0
    %1205 = vmatpush.msra.mxu0 0.0
    %1206 = vmatpush.msra.mxu0 0.0
    %1207 = vmatpush.msra.mxu0 0.0
    %1208 = vmatpush.msra.mxu0 0.0
    %1209 = vmatpush.msra.mxu0 0.0
    %1210 = vmatpush.msra.mxu0 0.0
    %1211 = vmatpush.msra.mxu0 0.0
    %1212 = vmatpush.msra.mxu0 0.0
    %1213 = vmatpush.msra.mxu0 0.0
    %1214 = vmatpush.msra.mxu0 0.0
    %1215 = vmatpush.msra.mxu0 0.0
    %1216 = vmatpush.msra.mxu0 0.0
    %1217 = vmatpush.msra.mxu0 %v1137
    %1218 = vmatpush.msra.mxu0 %v1135
    %1219 = vmatmul.f32.gmra.mxu0 %v219
    %v1220 = vpop.f32.mrf.mxu0
    %v1221 = vadd.f32 %v116, %v1220
    %1222 = vmatmul.f32.gmra.mxu0 %v222
    %v1223 = vpop.f32.mrf.mxu0
    %v1224 = vadd.f32 %v121, %v1223
    %1225 = vmatmul.f32.gmra.mxu0 %v225
    %v1226 = vpop.f32.mrf.mxu0
    %v1227 = vadd.f32 %v126, %v1226
    %1228 = vmatmul.f32.gmra.mxu0 %v228
    %v1229 = vpop.f32.mrf.mxu0
    %v1230 = vadd.f32 %v131, %v1229
    %1231 = vmatmul.f32.gmra.mxu0 %v231
    %v1232 = vpop.f32.mrf.mxu0
    %v1233 = vadd.f32 %v136, %v1232
    %1234 = vmatmul.f32.gmra.mxu0 %v234
    %v1235 = vpop.f32.mrf.mxu0
    %v1236 = vadd.f32 %v141, %v1235
    %1237 = vmatmul.f32.gmra.mxu0 %v237
    %v1238 = vpop.f32.mrf.mxu0
    %v1239 = vadd.f32 %v146, %v1238
    %1240 = vmatmul.f32.gmra.mxu0 %v240
    %v1241 = vpop.f32.mrf.mxu0
    %v1242 = vadd.f32 %v151, %v1241
    %1243 = vmatmul.f32.gmra.mxu0 %v243
    %v1244 = vpop.f32.mrf.mxu0
    %v1245 = vadd.f32 %v156, %v1244
    %1246 = vmatmul.f32.gmra.mxu0 %v246
    %v1247 = vpop.f32.mrf.mxu0
    %v1248 = vadd.f32 %v161, %v1247
    %1249 = vmatmul.f32.gmra.mxu0 %v249
    %v1250 = vpop.f32.mrf.mxu0
    %v1251 = vadd.f32 %v166, %v1250
    %1252 = vmatmul.f32.gmra.mxu0 %v252
    %v1253 = vpop.f32.mrf.mxu0
    %v1254 = vadd.f32 %v171, %v1253
    %1255 = vmatmul.f32.gmra.mxu0 %v255
    %v1256 = vpop.f32.mrf.mxu0
    %v1257 = vadd.f32 %v176, %v1256
    %1258 = vmatmul.f32.gmra.mxu0 %v258
    %v1259 = vpop.f32.mrf.mxu0
    %v1260 = vadd.f32 %v181, %v1259
    %1261 = vmatmul.f32.gmra.mxu0 %v261
    %v1262 = vpop.f32.mrf.mxu0
    %v1263 = vadd.f32 %v186, %v1262
    %1264 = vmatmul.f32.gmra.mxu0 %v264
    %v1265 = vpop.f32.mrf.mxu0
    %v1266 = vadd.f32 %v191, %v1265
    %1267 = vdwg.mxu0
    %v1268 = vmax.f32 %v1156, 0.0
    %v1269 = vmax.f32 %v1221, 0.0
    %v1270 = vmax.f32 %v1159, 0.0
    %v1271 = vmax.f32 %v1224, 0.0
    %v1272 = vmax.f32 %v1162, 0.0
    %v1273 = vmax.f32 %v1227, 0.0
    %v1274 = vmax.f32 %v1165, 0.0
    %v1275 = vmax.f32 %v1230, 0.0
    %v1276 = vmax.f32 %v1168, 0.0
    %v1277 = vmax.f32 %v1233, 0.0
    %v1278 = vmax.f32 %v1171, 0.0
    %v1279 = vmax.f32 %v1236, 0.0
    %v1280 = vmax.f32 %v1174, 0.0
    %v1281 = vmax.f32 %v1239, 0.0
    %v1282 = vmax.f32 %v1177, 0.0
    %v1283 = vmax.f32 %v1242, 0.0
    %v1284 = vmax.f32 %v1180, 0.0
    %v1285 = vmax.f32 %v1245, 0.0
    %v1286 = vmax.f32 %v1183, 0.0
    %v1287 = vmax.f32 %v1248, 0.0
    %v1288 = vmax.f32 %v1186, 0.0
    %v1289 = vmax.f32 %v1251, 0.0
    %v1290 = vmax.f32 %v1189, 0.0
    %v1291 = vmax.f32 %v1254, 0.0
    %v1292 = vmax.f32 %v1192, 0.0
    %v1293 = vmax.f32 %v1257, 0.0
    %v1294 = vmax.f32 %v1195, 0.0
    %v1295 = vmax.f32 %v1260, 0.0
    %v1296 = vmax.f32 %v1198, 0.0
    %v1297 = vmax.f32 %v1263, 0.0
    %v1298 = vmax.f32 %v1201, 0.0
    %v1299 = vmax.f32 %v1266, 0.0
    %v1300 = vmax.f32 %v1082, %v1268
    %v1301 = vmax.f32 %v1083, %v1269
    %v1302 = vmax.f32 %v1084, %v1270
    %v1303 = vmax.f32 %v1085, %v1271
    %v1304 = vmax.f32 %v1086, %v1272
    %v1305 = vmax.f32 %v1087, %v1273
    %v1306 = vmax.f32 %v1088, %v1274
    %v1307 = vmax.f32 %v1089, %v1275
    %v1308 = vmax.f32 %v1090, %v1276
    %v1309 = vmax.f32 %v1091, %v1277
    %v1310 = vmax.f32 %v1092, %v1278
    %v1311 = vmax.f32 %v1093, %v1279
    %v1312 = vmax.f32 %v1094, %v1280
    %v1313 = vmax.f32 %v1095, %v1281
    %v1314 = vmax.f32 %v1096, %v1282
    %v1315 = vmax.f32 %v1097, %v1283
    %v1316 = vmax.f32 %v1098, %v1284
    %v1317 = vmax.f32 %v1099, %v1285
    %v1318 = vmax.f32 %v1100, %v1286
    %v1319 = vmax.f32 %v1101, %v1287
    %v1320 = vmax.f32 %v1102, %v1288
    %v1321 = vmax.f32 %v1103, %v1289
    %v1322 = vmax.f32 %v1104, %v1290
    %v1323 = vmax.f32 %v1105, %v1291
    %v1324 = vmax.f32 %v1106, %v1292
    %v1325 = vmax.f32 %v1107, %v1293
    %v1326 = vmax.f32 %v1108, %v1294
    %v1327 = vmax.f32 %v1109, %v1295
    %v1328 = vmax.f32 %v1110, %v1296
    %v1329 = vmax.f32 %v1111, %v1297
    %v1330 = vmax.f32 %v1112, %v1298
    %v1331 = vmax.f32 %v1113, %v1299
    %v1332 = vperm.slane %v39, 5
    %v1333 = vperm.slane %v40, 5
    %v1334 = vmul.f32 %v54, %v1332
    %v1335 = vmul.f32 %v54, %v1333
    %v1336 = vmul.f32 %v59, %v1332
    %v1337 = vmul.f32 %v59, %v1333
    %v1338 = vperm.slane %v45, 1
    %v1339 = vperm.slane %v46, 1
    %v1340 = vmul.f32 %v63, %v1338
    %v1341 = vmul.f32 %v63, %v1339
    %v1342 = vmul.f32 %v67, %v1338
    %v1343 = vmul.f32 %v67, %v1339
    %v1344 = vadd.f32 %v1334, %v1340
    %v1345 = vadd.f32 %v1335, %v1341
    %v1346 = vadd.f32 %v1336, %v1342
    %v1347 = vadd.f32 %v1337, %v1343
    %v1348 = vadd.f32 %v1344, %v74
    %v1349 = vadd.f32 %v1345, %v74
    %v1350 = vadd.f32 %v1346, %v79
    %v1351 = vadd.f32 %v1347, %v79
    %v1352 = vmax.f32 %v1348, 0.0
    %v1353 = vmax.f32 %v1349, 0.0
    %v1354 = vmax.f32 %v1350, 0.0
    %v1355 = vmax.f32 %v1351, 0.0
    %1356 = vmatpush.msra.mxu0 0.0
    %1357 = vmatpush.msra.mxu0 0.0
    %1358 = vmatpush.msra.mxu0 0.0
    %1359 = vmatpush.msra.mxu0 0.0
    %1360 = vmatpush.msra.mxu0 0.0
    %1361 = vmatpush.msra.mxu0 0.0
    %1362 = vmatpush.msra.mxu0 0.0
    %1363 = vmatpush.msra.mxu0 0.0
    %1364 = vmatpush.msra.mxu0 0.0
    %1365 = vmatpush.msra.mxu0 0.0
    %1366 = vmatpush.msra.mxu0 0.0
    %1367 = vmatpush.msra.mxu0 0.0
    %1368 = vmatpush.msra.mxu0 0.0
    %1369 = vmatpush.msra.mxu0 0.0
    %1370 = vmatpush.msra.mxu0 %v1354
    %1371 = vmatpush.msra.mxu0 %v1352
    %1372 = vmatmul.f32.gmra.mxu0 %v219
    %v1373 = vpop.f32.mrf.mxu0
    %v1374 = vadd.f32 %v116, %v1373
    %1375 = vmatmul.f32.gmra.mxu0 %v222
    %v1376 = vpop.f32.mrf.mxu0
    %v1377 = vadd.f32 %v121, %v1376
    %1378 = vmatmul.f32.gmra.mxu0 %v225
    %v1379 = vpop.f32.mrf.mxu0
    %v1380 = vadd.f32 %v126, %v1379
    %1381 = vmatmul.f32.gmra.mxu0 %v228
    %v1382 = vpop.f32.mrf.mxu0
    %v1383 = vadd.f32 %v131, %v1382
    %1384 = vmatmul.f32.gmra.mxu0 %v231
    %v1385 = vpop.f32.mrf.mxu0
    %v1386 = vadd.f32 %v136, %v1385
    %1387 = vmatmul.f32.gmra.mxu0 %v234
    %v1388 = vpop.f32.mrf.mxu0
    %v1389 = vadd.f32 %v141, %v1388
    %1390 = vmatmul.f32.gmra.mxu0 %v237
    %v1391 = vpop.f32.mrf.mxu0
    %v1392 = vadd.f32 %v146, %v1391
    %1393 = vmatmul.f32.gmra.mxu0 %v240
    %v1394 = vpop.f32.mrf.mxu0
    %v1395 = vadd.f32 %v151, %v1394
    %1396 = vmatmul.f32.gmra.mxu0 %v243
    %v1397 = vpop.f32.mrf.mxu0
    %v1398 = vadd.f32 %v156, %v1397
    %1399 = vmatmul.f32.gmra.mxu0 %v246
    %v1400 = vpop.f32.mrf.mxu0
    %v1401 = vadd.f32 %v161, %v1400
    %1402 = vmatmul.f32.gmra.mxu0 %v249
    %v1403 = vpop.f32.mrf.mxu0
    %v1404 = vadd.f32 %v166, %v1403
    %1405 = vmatmul.f32.gmra.mxu0 %v252
    %v1406 = vpop.f32.mrf.mxu0
    %v1407 = vadd.f32 %v171, %v1406
    %1408 = vmatmul.f32.gmra.mxu0 %v255
    %v1409 = vpop.f32.mrf.mxu0
    %v1410 = vadd.f32 %v176, %v1409
    %1411 = vmatmul.f32.gmra.mxu0 %v258
    %v1412 = vpop.f32.mrf.mxu0
    %v1413 = vadd.f32 %v181, %v1412
    %1414 = vmatmul.f32.gmra.mxu0 %v261
    %v1415 = vpop.f32.mrf.mxu0
    %v1416 = vadd.f32 %v186, %v1415
    %1417 = vmatmul.f32.gmra.mxu0 %v264
    %v1418 = vpop.f32.mrf.mxu0
    %v1419 = vadd.f32 %v191, %v1418
    %1420 = vdwg.mxu0
    %1421 = vmatpush.msra.mxu0 0.0
    %1422 = vmatpush.msra.mxu0 0.0
    %1423 = vmatpush.msra.mxu0 0.0
    %1424 = vmatpush.msra.mxu0 0.0
    %1425 = vmatpush.msra.mxu0 0.0
    %1426 = vmatpush.msra.mxu0 0.0
    %1427 = vmatpush.msra.mxu0 0.0
    %1428 = vmatpush.msra.mxu0 0.0
    %1429 = vmatpush.msra.mxu0 0.0
    %1430 = vmatpush.msra.mxu0 0.0
    %1431 = vmatpush.msra.mxu0 0.0
    %1432 = vmatpush.msra.mxu0 0.0
    %1433 = vmatpush.msra.mxu0 0.0
    %1434 = vmatpush.msra.mxu0 0.0
    %1435 = vmatpush.msra.mxu0 %v1355
    %1436 = vmatpush.msra.mxu0 %v1353
    %1437 = vmatmul.f32.gmra.mxu0 %v219
    %v1438 = vpop.f32.mrf.mxu0
    %v1439 = vadd.f32 %v116, %v1438
    %1440 = vmatmul.f32.gmra.mxu0 %v222
    %v1441 = vpop.f32.mrf.mxu0
    %v1442 = vadd.f32 %v121, %v1441
    %1443 = vmatmul.f32.gmra.mxu0 %v225
    %v1444 = vpop.f32.mrf.mxu0
    %v1445 = vadd.f32 %v126, %v1444
    %1446 = vmatmul.f32.gmra.mxu0 %v228
    %v1447 = vpop.f32.mrf.mxu0
    %v1448 = vadd.f32 %v131, %v1447
    %1449 = vmatmul.f32.gmra.mxu0 %v231
    %v1450 = vpop.f32.mrf.mxu0
    %v1451 = vadd.f32 %v136, %v1450
    %1452 = vmatmul.f32.gmra.mxu0 %v234
    %v1453 = vpop.f32.mrf.mxu0
    %v1454 = vadd.f32 %v141, %v1453
    %1455 = vmatmul.f32.gmra.mxu0 %v237
    %v1456 = vpop.f32.mrf.mxu0
    %v1457 = vadd.f32 %v146, %v1456
    %1458 = vmatmul.f32.gmra.mxu0 %v240
    %v1459 = vpop.f32.mrf.mxu0
    %v1460 = vadd.f32 %v151, %v1459
    %1461 = vmatmul.f32.gmra.mxu0 %v243
    %v1462 = vpop.f32.mrf.mxu0
    %v1463 = vadd.f32 %v156, %v1462
    %1464 = vmatmul.f32.gmra.mxu0 %v246
    %v1465 = vpop.f32.mrf.mxu0
    %v1466 = vadd.f32 %v161, %v1465
    %1467 = vmatmul.f32.gmra.mxu0 %v249
    %v1468 = vpop.f32.mrf.mxu0
    %v1469 = vadd.f32 %v166, %v1468
    %1470 = vmatmul.f32.gmra.mxu0 %v252
    %v1471 = vpop.f32.mrf.mxu0
    %v1472 = vadd.f32 %v171, %v1471
    %1473 = vmatmul.f32.gmra.mxu0 %v255
    %v1474 = vpop.f32.mrf.mxu0
    %v1475 = vadd.f32 %v176, %v1474
    %1476 = vmatmul.f32.gmra.mxu0 %v258
    %v1477 = vpop.f32.mrf.mxu0
    %v1478 = vadd.f32 %v181, %v1477
    %1479 = vmatmul.f32.gmra.mxu0 %v261
    %v1480 = vpop.f32.mrf.mxu0
    %v1481 = vadd.f32 %v186, %v1480
    %1482 = vmatmul.f32.gmra.mxu0 %v264
    %v1483 = vpop.f32.mrf.mxu0
    %v1484 = vadd.f32 %v191, %v1483
    %1485 = vdwg.mxu0
    %v1486 = vmax.f32 %v1374, 0.0
    %v1487 = vmax.f32 %v1439, 0.0
    %v1488 = vmax.f32 %v1377, 0.0
    %v1489 = vmax.f32 %v1442, 0.0
    %v1490 = vmax.f32 %v1380, 0.0
    %v1491 = vmax.f32 %v1445, 0.0
    %v1492 = vmax.f32 %v1383, 0.0
    %v1493 = vmax.f32 %v1448, 0.0
    %v1494 = vmax.f32 %v1386, 0.0
    %v1495 = vmax.f32 %v1451, 0.0
    %v1496 = vmax.f32 %v1389, 0.0
    %v1497 = vmax.f32 %v1454, 0.0
    %v1498 = vmax.f32 %v1392, 0.0
    %v1499 = vmax.f32 %v1457, 0.0
    %v1500 = vmax.f32 %v1395, 0.0
    %v1501 = vmax.f32 %v1460, 0.0
    %v1502 = vmax.f32 %v1398, 0.0
    %v1503 = vmax.f32 %v1463, 0.0
    %v1504 = vmax.f32 %v1401, 0.0
    %v1505 = vmax.f32 %v1466, 0.0
    %v1506 = vmax.f32 %v1404, 0.0
    %v1507 = vmax.f32 %v1469, 0.0
    %v1508 = vmax.f32 %v1407, 0.0
    %v1509 = vmax.f32 %v1472, 0.0
    %v1510 = vmax.f32 %v1410, 0.0
    %v1511 = vmax.f32 %v1475, 0.0
    %v1512 = vmax.f32 %v1413, 0.0
    %v1513 = vmax.f32 %v1478, 0.0
    %v1514 = vmax.f32 %v1416, 0.0
    %v1515 = vmax.f32 %v1481, 0.0
    %v1516 = vmax.f32 %v1419, 0.0
    %v1517 = vmax.f32 %v1484, 0.0
    %v1518 = vmax.f32 %v1300, %v1486
    %v1519 = vmax.f32 %v1301, %v1487
    %v1520 = vmax.f32 %v1302, %v1488
    %v1521 = vmax.f32 %v1303, %v1489
    %v1522 = vmax.f32 %v1304, %v1490
    %v1523 = vmax.f32 %v1305, %v1491
    %v1524 = vmax.f32 %v1306, %v1492
    %v1525 = vmax.f32 %v1307, %v1493
    %v1526 = vmax.f32 %v1308, %v1494
    %v1527 = vmax.f32 %v1309, %v1495
    %v1528 = vmax.f32 %v1310, %v1496
    %v1529 = vmax.f32 %v1311, %v1497
    %v1530 = vmax.f32 %v1312, %v1498
    %v1531 = vmax.f32 %v1313, %v1499
    %v1532 = vmax.f32 %v1314, %v1500
    %v1533 = vmax.f32 %v1315, %v1501
    %v1534 = vmax.f32 %v1316, %v1502
    %v1535 = vmax.f32 %v1317, %v1503
    %v1536 = vmax.f32 %v1318, %v1504
    %v1537 = vmax.f32 %v1319, %v1505
    %v1538 = vmax.f32 %v1320, %v1506
    %v1539 = vmax.f32 %v1321, %v1507
    %v1540 = vmax.f32 %v1322, %v1508
    %v1541 = vmax.f32 %v1323, %v1509
    %v1542 = vmax.f32 %v1324, %v1510
    %v1543 = vmax.f32 %v1325, %v1511
    %v1544 = vmax.f32 %v1326, %v1512
    %v1545 = vmax.f32 %v1327, %v1513
    %v1546 = vmax.f32 %v1328, %v1514
    %v1547 = vmax.f32 %v1329, %v1515
    %v1548 = vmax.f32 %v1330, %v1516
    %v1549 = vmax.f32 %v1331, %v1517
    %v1550 = vperm.slane %v39, 6
    %v1551 = vperm.slane %v40, 6
    %v1552 = vmul.f32 %v54, %v1550
    %v1553 = vmul.f32 %v54, %v1551
    %v1554 = vmul.f32 %v59, %v1550
    %v1555 = vmul.f32 %v59, %v1551
    %v1556 = vperm.slane %v45, 2
    %v1557 = vperm.slane %v46, 2
    %v1558 = vmul.f32 %v63, %v1556
    %v1559 = vmul.f32 %v63, %v1557
    %v1560 = vmul.f32 %v67, %v1556
    %v1561 = vmul.f32 %v67, %v1557
    %v1562 = vadd.f32 %v1552, %v1558
    %v1563 = vadd.f32 %v1553, %v1559
    %v1564 = vadd.f32 %v1554, %v1560
    %v1565 = vadd.f32 %v1555, %v1561
    %v1566 = vadd.f32 %v1562, %v74
    %v1567 = vadd.f32 %v1563, %v74
    %v1568 = vadd.f32 %v1564, %v79
    %v1569 = vadd.f32 %v1565, %v79
    %v1570 = vmax.f32 %v1566, 0.0
    %v1571 = vmax.f32 %v1567, 0.0
    %v1572 = vmax.f32 %v1568, 0.0
    %v1573 = vmax.f32 %v1569, 0.0
    %1574 = vmatpush.msra.mxu0 0.0
    %1575 = vmatpush.msra.mxu0 0.0
    %1576 = vmatpush.msra.mxu0 0.0
    %1577 = vmatpush.msra.mxu0 0.0
    %1578 = vmatpush.msra.mxu0 0.0
    %1579 = vmatpush.msra.mxu0 0.0
    %1580 = vmatpush.msra.mxu0 0.0
    %1581 = vmatpush.msra.mxu0 0.0
    %1582 = vmatpush.msra.mxu0 0.0
    %1583 = vmatpush.msra.mxu0 0.0
    %1584 = vmatpush.msra.mxu0 0.0
    %1585 = vmatpush.msra.mxu0 0.0
    %1586 = vmatpush.msra.mxu0 0.0
    %1587 = vmatpush.msra.mxu0 0.0
    %1588 = vmatpush.msra.mxu0 %v1572
    %1589 = vmatpush.msra.mxu0 %v1570
    %1590 = vmatmul.f32.gmra.mxu0 %v219
    %v1591 = vpop.f32.mrf.mxu0
    %v1592 = vadd.f32 %v116, %v1591
    %1593 = vmatmul.f32.gmra.mxu0 %v222
    %v1594 = vpop.f32.mrf.mxu0
    %v1595 = vadd.f32 %v121, %v1594
    %1596 = vmatmul.f32.gmra.mxu0 %v225
    %v1597 = vpop.f32.mrf.mxu0
    %v1598 = vadd.f32 %v126, %v1597
    %1599 = vmatmul.f32.gmra.mxu0 %v228
    %v1600 = vpop.f32.mrf.mxu0
    %v1601 = vadd.f32 %v131, %v1600
    %1602 = vmatmul.f32.gmra.mxu0 %v231
    %v1603 = vpop.f32.mrf.mxu0
    %v1604 = vadd.f32 %v136, %v1603
    %1605 = vmatmul.f32.gmra.mxu0 %v234
    %v1606 = vpop.f32.mrf.mxu0
    %v1607 = vadd.f32 %v141, %v1606
    %1608 = vmatmul.f32.gmra.mxu0 %v237
    %v1609 = vpop.f32.mrf.mxu0
    %v1610 = vadd.f32 %v146, %v1609
    %1611 = vmatmul.f32.gmra.mxu0 %v240
    %v1612 = vpop.f32.mrf.mxu0
    %v1613 = vadd.f32 %v151, %v1612
    %1614 = vmatmul.f32.gmra.mxu0 %v243
    %v1615 = vpop.f32.mrf.mxu0
    %v1616 = vadd.f32 %v156, %v1615
    %1617 = vmatmul.f32.gmra.mxu0 %v246
    %v1618 = vpop.f32.mrf.mxu0
    %v1619 = vadd.f32 %v161, %v1618
    %1620 = vmatmul.f32.gmra.mxu0 %v249
    %v1621 = vpop.f32.mrf.mxu0
    %v1622 = vadd.f32 %v166, %v1621
    %1623 = vmatmul.f32.gmra.mxu0 %v252
    %v1624 = vpop.f32.mrf.mxu0
    %v1625 = vadd.f32 %v171, %v1624
    %1626 = vmatmul.f32.gmra.mxu0 %v255
    %v1627 = vpop.f32.mrf.mxu0
    %v1628 = vadd.f32 %v176, %v1627
    %1629 = vmatmul.f32.gmra.mxu0 %v258
    %v1630 = vpop.f32.mrf.mxu0
    %v1631 = vadd.f32 %v181, %v1630
    %1632 = vmatmul.f32.gmra.mxu0 %v261
    %v1633 = vpop.f32.mrf.mxu0
    %v1634 = vadd.f32 %v186, %v1633
    %1635 = vmatmul.f32.gmra.mxu0 %v264
    %v1636 = vpop.f32.mrf.mxu0
    %v1637 = vadd.f32 %v191, %v1636
    %1638 = vdwg.mxu0
    %1639 = vmatpush.msra.mxu0 0.0
    %1640 = vmatpush.msra.mxu0 0.0
    %1641 = vmatpush.msra.mxu0 0.0
    %1642 = vmatpush.msra.mxu0 0.0
    %1643 = vmatpush.msra.mxu0 0.0
    %1644 = vmatpush.msra.mxu0 0.0
    %1645 = vmatpush.msra.mxu0 0.0
    %1646 = vmatpush.msra.mxu0 0.0
    %1647 = vmatpush.msra.mxu0 0.0
    %1648 = vmatpush.msra.mxu0 0.0
    %1649 = vmatpush.msra.mxu0 0.0
    %1650 = vmatpush.msra.mxu0 0.0
    %1651 = vmatpush.msra.mxu0 0.0
    %1652 = vmatpush.msra.mxu0 0.0
    %1653 = vmatpush.msra.mxu0 %v1573
    %1654 = vmatpush.msra.mxu0 %v1571
    %1655 = vmatmul.f32.gmra.mxu0 %v219
    %v1656 = vpop.f32.mrf.mxu0
    %v1657 = vadd.f32 %v116, %v1656
    %1658 = vmatmul.f32.gmra.mxu0 %v222
    %v1659 = vpop.f32.mrf.mxu0
    %v1660 = vadd.f32 %v121, %v1659
    %1661 = vmatmul.f32.gmra.mxu0 %v225
    %v1662 = vpop.f32.mrf.mxu0
    %v1663 = vadd.f32 %v126, %v1662
    %1664 = vmatmul.f32.gmra.mxu0 %v228
    %v1665 = vpop.f32.mrf.mxu0
    %v1666 = vadd.f32 %v131, %v1665
    %1667 = vmatmul.f32.gmra.mxu0 %v231
    %v1668 = vpop.f32.mrf.mxu0
    %v1669 = vadd.f32 %v136, %v1668
    %1670 = vmatmul.f32.gmra.mxu0 %v234
    %v1671 = vpop.f32.mrf.mxu0
    %v1672 = vadd.f32 %v141, %v1671
    %1673 = vmatmul.f32.gmra.mxu0 %v237
    %v1674 = vpop.f32.mrf.mxu0
    %v1675 = vadd.f32 %v146, %v1674
    %1676 = vmatmul.f32.gmra.mxu0 %v240
    %v1677 = vpop.f32.mrf.mxu0
    %v1678 = vadd.f32 %v151, %v1677
    %1679 = vmatmul.f32.gmra.mxu0 %v243
    %v1680 = vpop.f32.mrf.mxu0
    %v1681 = vadd.f32 %v156, %v1680
    %1682 = vmatmul.f32.gmra.mxu0 %v246
    %v1683 = vpop.f32.mrf.mxu0
    %v1684 = vadd.f32 %v161, %v1683
    %1685 = vmatmul.f32.gmra.mxu0 %v249
    %v1686 = vpop.f32.mrf.mxu0
    %v1687 = vadd.f32 %v166, %v1686
    %1688 = vmatmul.f32.gmra.mxu0 %v252
    %v1689 = vpop.f32.mrf.mxu0
    %v1690 = vadd.f32 %v171, %v1689
    %1691 = vmatmul.f32.gmra.mxu0 %v255
    %v1692 = vpop.f32.mrf.mxu0
    %v1693 = vadd.f32 %v176, %v1692
    %1694 = vmatmul.f32.gmra.mxu0 %v258
    %v1695 = vpop.f32.mrf.mxu0
    %v1696 = vadd.f32 %v181, %v1695
    %1697 = vmatmul.f32.gmra.mxu0 %v261
    %v1698 = vpop.f32.mrf.mxu0
    %v1699 = vadd.f32 %v186, %v1698
    %1700 = vmatmul.f32.gmra.mxu0 %v264
    %v1701 = vpop.f32.mrf.mxu0
    %v1702 = vadd.f32 %v191, %v1701
    %1703 = vdwg.mxu0
    %v1704 = vmax.f32 %v1592, 0.0
    %v1705 = vmax.f32 %v1657, 0.0
    %v1706 = vmax.f32 %v1595, 0.0
    %v1707 = vmax.f32 %v1660, 0.0
    %v1708 = vmax.f32 %v1598, 0.0
    %v1709 = vmax.f32 %v1663, 0.0
    %v1710 = vmax.f32 %v1601, 0.0
    %v1711 = vmax.f32 %v1666, 0.0
    %v1712 = vmax.f32 %v1604, 0.0
    %v1713 = vmax.f32 %v1669, 0.0
    %v1714 = vmax.f32 %v1607, 0.0
    %v1715 = vmax.f32 %v1672, 0.0
    %v1716 = vmax.f32 %v1610, 0.0
    %v1717 = vmax.f32 %v1675, 0.0
    %v1718 = vmax.f32 %v1613, 0.0
    %v1719 = vmax.f32 %v1678, 0.0
    %v1720 = vmax.f32 %v1616, 0.0
    %v1721 = vmax.f32 %v1681, 0.0
    %v1722 = vmax.f32 %v1619, 0.0
    %v1723 = vmax.f32 %v1684, 0.0
    %v1724 = vmax.f32 %v1622, 0.0
    %v1725 = vmax.f32 %v1687, 0.0
    %v1726 = vmax.f32 %v1625, 0.0
    %v1727 = vmax.f32 %v1690, 0.0
    %v1728 = vmax.f32 %v1628, 0.0
    %v1729 = vmax.f32 %v1693, 0.0
    %v1730 = vmax.f32 %v1631, 0.0
    %v1731 = vmax.f32 %v1696, 0.0
    %v1732 = vmax.f32 %v1634, 0.0
    %v1733 = vmax.f32 %v1699, 0.0
    %v1734 = vmax.f32 %v1637, 0.0
    %v1735 = vmax.f32 %v1702, 0.0
    %v1736 = vmax.f32 %v1518, %v1704
    %v1737 = vmax.f32 %v1519, %v1705
    %v1738 = vmax.f32 %v1520, %v1706
    %v1739 = vmax.f32 %v1521, %v1707
    %v1740 = vmax.f32 %v1522, %v1708
    %v1741 = vmax.f32 %v1523, %v1709
    %v1742 = vmax.f32 %v1524, %v1710
    %v1743 = vmax.f32 %v1525, %v1711
    %v1744 = vmax.f32 %v1526, %v1712
    %v1745 = vmax.f32 %v1527, %v1713
    %v1746 = vmax.f32 %v1528, %v1714
    %v1747 = vmax.f32 %v1529, %v1715
    %v1748 = vmax.f32 %v1530, %v1716
    %v1749 = vmax.f32 %v1531, %v1717
    %v1750 = vmax.f32 %v1532, %v1718
    %v1751 = vmax.f32 %v1533, %v1719
    %v1752 = vmax.f32 %v1534, %v1720
    %v1753 = vmax.f32 %v1535, %v1721
    %v1754 = vmax.f32 %v1536, %v1722
    %v1755 = vmax.f32 %v1537, %v1723
    %v1756 = vmax.f32 %v1538, %v1724
    %v1757 = vmax.f32 %v1539, %v1725
    %v1758 = vmax.f32 %v1540, %v1726
    %v1759 = vmax.f32 %v1541, %v1727
    %v1760 = vmax.f32 %v1542, %v1728
    %v1761 = vmax.f32 %v1543, %v1729
    %v1762 = vmax.f32 %v1544, %v1730
    %v1763 = vmax.f32 %v1545, %v1731
    %v1764 = vmax.f32 %v1546, %v1732
    %v1765 = vmax.f32 %v1547, %v1733
    %v1766 = vmax.f32 %v1548, %v1734
    %v1767 = vmax.f32 %v1549, %v1735
    %v1768 = vperm.slane %v39, 7
    %v1769 = vperm.slane %v40, 7
    %v1770 = vmul.f32 %v54, %v1768
    %v1771 = vmul.f32 %v54, %v1769
    %v1772 = vmul.f32 %v59, %v1768
    %v1773 = vmul.f32 %v59, %v1769
    %v1774 = vperm.slane %v45, 3
    %v1775 = vperm.slane %v46, 3
    %v1776 = vmul.f32 %v63, %v1774
    %v1777 = vmul.f32 %v63, %v1775
    %v1778 = vmul.f32 %v67, %v1774
    %v1779 = vmul.f32 %v67, %v1775
    %v1780 = vadd.f32 %v1770, %v1776
    %v1781 = vadd.f32 %v1771, %v1777
    %v1782 = vadd.f32 %v1772, %v1778
    %v1783 = vadd.f32 %v1773, %v1779
    %v1784 = vadd.f32 %v1780, %v74
    %v1785 = vadd.f32 %v1781, %v74
    %v1786 = vadd.f32 %v1782, %v79
    %v1787 = vadd.f32 %v1783, %v79
    %v1788 = vmax.f32 %v1784, 0.0
    %v1789 = vmax.f32 %v1785, 0.0
    %v1790 = vmax.f32 %v1786, 0.0
    %v1791 = vmax.f32 %v1787, 0.0
    %1792 = vmatpush.msra.mxu0 0.0
    %1793 = vmatpush.msra.mxu0 0.0
    %1794 = vmatpush.msra.mxu0 0.0
    %1795 = vmatpush.msra.mxu0 0.0
    %1796 = vmatpush.msra.mxu0 0.0
    %1797 = vmatpush.msra.mxu0 0.0
    %1798 = vmatpush.msra.mxu0 0.0
    %1799 = vmatpush.msra.mxu0 0.0
    %1800 = vmatpush.msra.mxu0 0.0
    %1801 = vmatpush.msra.mxu0 0.0
    %1802 = vmatpush.msra.mxu0 0.0
    %1803 = vmatpush.msra.mxu0 0.0
    %1804 = vmatpush.msra.mxu0 0.0
    %1805 = vmatpush.msra.mxu0 0.0
    %1806 = vmatpush.msra.mxu0 %v1790
    %1807 = vmatpush.msra.mxu0 %v1788
    %1808 = vmatmul.f32.gmra.mxu0 %v219
    %v1809 = vpop.f32.mrf.mxu0
    %v1810 = vadd.f32 %v116, %v1809
    %1811 = vmatmul.f32.gmra.mxu0 %v222
    %v1812 = vpop.f32.mrf.mxu0
    %v1813 = vadd.f32 %v121, %v1812
    %1814 = vmatmul.f32.gmra.mxu0 %v225
    %v1815 = vpop.f32.mrf.mxu0
    %v1816 = vadd.f32 %v126, %v1815
    %1817 = vmatmul.f32.gmra.mxu0 %v228
    %v1818 = vpop.f32.mrf.mxu0
    %v1819 = vadd.f32 %v131, %v1818
    %1820 = vmatmul.f32.gmra.mxu0 %v231
    %v1821 = vpop.f32.mrf.mxu0
    %v1822 = vadd.f32 %v136, %v1821
    %1823 = vmatmul.f32.gmra.mxu0 %v234
    %v1824 = vpop.f32.mrf.mxu0
    %v1825 = vadd.f32 %v141, %v1824
    %1826 = vmatmul.f32.gmra.mxu0 %v237
    %v1827 = vpop.f32.mrf.mxu0
    %v1828 = vadd.f32 %v146, %v1827
    %1829 = vmatmul.f32.gmra.mxu0 %v240
    %v1830 = vpop.f32.mrf.mxu0
    %v1831 = vadd.f32 %v151, %v1830
    %1832 = vmatmul.f32.gmra.mxu0 %v243
    %v1833 = vpop.f32.mrf.mxu0
    %v1834 = vadd.f32 %v156, %v1833
    %1835 = vmatmul.f32.gmra.mxu0 %v246
    %v1836 = vpop.f32.mrf.mxu0
    %v1837 = vadd.f32 %v161, %v1836
    %1838 = vmatmul.f32.gmra.mxu0 %v249
    %v1839 = vpop.f32.mrf.mxu0
    %v1840 = vadd.f32 %v166, %v1839
    %1841 = vmatmul.f32.gmra.mxu0 %v252
    %v1842 = vpop.f32.mrf.mxu0
    %v1843 = vadd.f32 %v171, %v1842
    %1844 = vmatmul.f32.gmra.mxu0 %v255
    %v1845 = vpop.f32.mrf.mxu0
    %v1846 = vadd.f32 %v176, %v1845
    %1847 = vmatmul.f32.gmra.mxu0 %v258
    %v1848 = vpop.f32.mrf.mxu0
    %v1849 = vadd.f32 %v181, %v1848
    %1850 = vmatmul.f32.gmra.mxu0 %v261
    %v1851 = vpop.f32.mrf.mxu0
    %v1852 = vadd.f32 %v186, %v1851
    %1853 = vmatmul.f32.gmra.mxu0 %v264
    %v1854 = vpop.f32.mrf.mxu0
    %v1855 = vadd.f32 %v191, %v1854
    %1856 = vdwg.mxu0
    %1857 = vmatpush.msra.mxu0 0.0
    %1858 = vmatpush.msra.mxu0 0.0
    %1859 = vmatpush.msra.mxu0 0.0
    %1860 = vmatpush.msra.mxu0 0.0
    %1861 = vmatpush.msra.mxu0 0.0
    %1862 = vmatpush.msra.mxu0 0.0
    %1863 = vmatpush.msra.mxu0 0.0
    %1864 = vmatpush.msra.mxu0 0.0
    %1865 = vmatpush.msra.mxu0 0.0
    %1866 = vmatpush.msra.mxu0 0.0
    %1867 = vmatpush.msra.mxu0 0.0
    %1868 = vmatpush.msra.mxu0 0.0
    %1869 = vmatpush.msra.mxu0 0.0
    %1870 = vmatpush.msra.mxu0 0.0
    %1871 = vmatpush.msra.mxu0 %v1791
    %1872 = vmatpush.msra.mxu0 %v1789
    %1873 = vmatmul.f32.gmra.mxu0 %v219
    %v1874 = vpop.f32.mrf.mxu0
    %v1875 = vadd.f32 %v116, %v1874
    %1876 = vmatmul.f32.gmra.mxu0 %v222
    %v1877 = vpop.f32.mrf.mxu0
    %v1878 = vadd.f32 %v121, %v1877
    %1879 = vmatmul.f32.gmra.mxu0 %v225
    %v1880 = vpop.f32.mrf.mxu0
    %v1881 = vadd.f32 %v126, %v1880
    %1882 = vmatmul.f32.gmra.mxu0 %v228
    %v1883 = vpop.f32.mrf.mxu0
    %v1884 = vadd.f32 %v131, %v1883
    %1885 = vmatmul.f32.gmra.mxu0 %v231
    %v1886 = vpop.f32.mrf.mxu0
    %v1887 = vadd.f32 %v136, %v1886
    %1888 = vmatmul.f32.gmra.mxu0 %v234
    %v1889 = vpop.f32.mrf.mxu0
    %v1890 = vadd.f32 %v141, %v1889
    %1891 = vmatmul.f32.gmra.mxu0 %v237
    %v1892 = vpop.f32.mrf.mxu0
    %v1893 = vadd.f32 %v146, %v1892
    %1894 = vmatmul.f32.gmra.mxu0 %v240
    %v1895 = vpop.f32.mrf.mxu0
    %v1896 = vadd.f32 %v151, %v1895
    %1897 = vmatmul.f32.gmra.mxu0 %v243
    %v1898 = vpop.f32.mrf.mxu0
    %v1899 = vadd.f32 %v156, %v1898
    %1900 = vmatmul.f32.gmra.mxu0 %v246
    %v1901 = vpop.f32.mrf.mxu0
    %v1902 = vadd.f32 %v161, %v1901
    %1903 = vmatmul.f32.gmra.mxu0 %v249
    %v1904 = vpop.f32.mrf.mxu0
    %v1905 = vadd.f32 %v166, %v1904
    %1906 = vmatmul.f32.gmra.mxu0 %v252
    %v1907 = vpop.f32.mrf.mxu0
    %v1908 = vadd.f32 %v171, %v1907
    %1909 = vmatmul.f32.gmra.mxu0 %v255
    %v1910 = vpop.f32.mrf.mxu0
    %v1911 = vadd.f32 %v176, %v1910
    %1912 = vmatmul.f32.gmra.mxu0 %v258
    %v1913 = vpop.f32.mrf.mxu0
    %v1914 = vadd.f32 %v181, %v1913
    %1915 = vmatmul.f32.gmra.mxu0 %v261
    %v1916 = vpop.f32.mrf.mxu0
    %v1917 = vadd.f32 %v186, %v1916
    %1918 = vmatmul.f32.gmra.mxu0 %v264
    %v1919 = vpop.f32.mrf.mxu0
    %v1920 = vadd.f32 %v191, %v1919
    %1921 = vdwg.mxu0
    %v1922 = vmax.f32 %v1810, 0.0
    %v1923 = vmax.f32 %v1875, 0.0
    %v1924 = vmax.f32 %v1813, 0.0
    %v1925 = vmax.f32 %v1878, 0.0
    %v1926 = vmax.f32 %v1816, 0.0
    %v1927 = vmax.f32 %v1881, 0.0
    %v1928 = vmax.f32 %v1819, 0.0
    %v1929 = vmax.f32 %v1884, 0.0
    %v1930 = vmax.f32 %v1822, 0.0
    %v1931 = vmax.f32 %v1887, 0.0
    %v1932 = vmax.f32 %v1825, 0.0
    %v1933 = vmax.f32 %v1890, 0.0
    %v1934 = vmax.f32 %v1828, 0.0
    %v1935 = vmax.f32 %v1893, 0.0
    %v1936 = vmax.f32 %v1831, 0.0
    %v1937 = vmax.f32 %v1896, 0.0
    %v1938 = vmax.f32 %v1834, 0.0
    %v1939 = vmax.f32 %v1899, 0.0
    %v1940 = vmax.f32 %v1837, 0.0
    %v1941 = vmax.f32 %v1902, 0.0
    %v1942 = vmax.f32 %v1840, 0.0
    %v1943 = vmax.f32 %v1905, 0.0
    %v1944 = vmax.f32 %v1843, 0.0
    %v1945 = vmax.f32 %v1908, 0.0
    %v1946 = vmax.f32 %v1846, 0.0
    %v1947 = vmax.f32 %v1911, 0.0
    %v1948 = vmax.f32 %v1849, 0.0
    %v1949 = vmax.f32 %v1914, 0.0
    %v1950 = vmax.f32 %v1852, 0.0
    %v1951 = vmax.f32 %v1917, 0.0
    %v1952 = vmax.f32 %v1855, 0.0
    %v1953 = vmax.f32 %v1920, 0.0
    %v1954 = vmax.f32 %v1736, %v1922
    %v1955 = vmax.f32 %v1737, %v1923
    %v1956 = vmax.f32 %v1738, %v1924
    %v1957 = vmax.f32 %v1739, %v1925
    %v1958 = vmax.f32 %v1740, %v1926
    %v1959 = vmax.f32 %v1741, %v1927
    %v1960 = vmax.f32 %v1742, %v1928
    %v1961 = vmax.f32 %v1743, %v1929
    %v1962 = vmax.f32 %v1744, %v1930
    %v1963 = vmax.f32 %v1745, %v1931
    %v1964 = vmax.f32 %v1746, %v1932
    %v1965 = vmax.f32 %v1747, %v1933
    %v1966 = vmax.f32 %v1748, %v1934
    %v1967 = vmax.f32 %v1749, %v1935
    %v1968 = vmax.f32 %v1750, %v1936
    %v1969 = vmax.f32 %v1751, %v1937
    %v1970 = vmax.f32 %v1752, %v1938
    %v1971 = vmax.f32 %v1753, %v1939
    %v1972 = vmax.f32 %v1754, %v1940
    %v1973 = vmax.f32 %v1755, %v1941
    %v1974 = vmax.f32 %v1756, %v1942
    %v1975 = vmax.f32 %v1757, %v1943
    %v1976 = vmax.f32 %v1758, %v1944
    %v1977 = vmax.f32 %v1759, %v1945
    %v1978 = vmax.f32 %v1760, %v1946
    %v1979 = vmax.f32 %v1761, %v1947
    %v1980 = vmax.f32 %v1762, %v1948
    %v1981 = vmax.f32 %v1763, %v1949
    %v1982 = vmax.f32 %v1764, %v1950
    %v1983 = vmax.f32 %v1765, %v1951
    %v1984 = vmax.f32 %v1766, %v1952
    %v1985 = vmax.f32 %v1767, %v1953
    %v1986 = vperm.slane %v41, 0
    %v1987 = vperm.slane %v42, 0
    %v1988 = vmul.f32 %v54, %v1986
    %v1989 = vmul.f32 %v54, %v1987
    %v1990 = vmul.f32 %v59, %v1986
    %v1991 = vmul.f32 %v59, %v1987
    %v1992 = vperm.slane %v45, 4
    %v1993 = vperm.slane %v46, 4
    %v1994 = vmul.f32 %v63, %v1992
    %v1995 = vmul.f32 %v63, %v1993
    %v1996 = vmul.f32 %v67, %v1992
    %v1997 = vmul.f32 %v67, %v1993
    %v1998 = vadd.f32 %v1988, %v1994
    %v1999 = vadd.f32 %v1989, %v1995
    %v2000 = vadd.f32 %v1990, %v1996
    %v2001 = vadd.f32 %v1991, %v1997
    %v2002 = vadd.f32 %v1998, %v74
    %v2003 = vadd.f32 %v1999, %v74
    %v2004 = vadd.f32 %v2000, %v79
    %v2005 = vadd.f32 %v2001, %v79
    %v2006 = vmax.f32 %v2002, 0.0
    %v2007 = vmax.f32 %v2003, 0.0
    %v2008 = vmax.f32 %v2004, 0.0
    %v2009 = vmax.f32 %v2005, 0.0
    %2010 = vmatpush.msra.mxu0 0.0
    %2011 = vmatpush.msra.mxu0 0.0
    %2012 = vmatpush.msra.mxu0 0.0
    %2013 = vmatpush.msra.mxu0 0.0
    %2014 = vmatpush.msra.mxu0 0.0
    %2015 = vmatpush.msra.mxu0 0.0
    %2016 = vmatpush.msra.mxu0 0.0
    %2017 = vmatpush.msra.mxu0 0.0
    %2018 = vmatpush.msra.mxu0 0.0
    %2019 = vmatpush.msra.mxu0 0.0
    %2020 = vmatpush.msra.mxu0 0.0
    %2021 = vmatpush.msra.mxu0 0.0
    %2022 = vmatpush.msra.mxu0 0.0
    %2023 = vmatpush.msra.mxu0 0.0
    %2024 = vmatpush.msra.mxu0 %v2008
    %2025 = vmatpush.msra.mxu0 %v2006
    %2026 = vmatmul.f32.gmra.mxu0 %v219
    %v2027 = vpop.f32.mrf.mxu0
    %v2028 = vadd.f32 %v116, %v2027
    %2029 = vmatmul.f32.gmra.mxu0 %v222
    %v2030 = vpop.f32.mrf.mxu0
    %v2031 = vadd.f32 %v121, %v2030
    %2032 = vmatmul.f32.gmra.mxu0 %v225
    %v2033 = vpop.f32.mrf.mxu0
    %v2034 = vadd.f32 %v126, %v2033
    %2035 = vmatmul.f32.gmra.mxu0 %v228
    %v2036 = vpop.f32.mrf.mxu0
    %v2037 = vadd.f32 %v131, %v2036
    %2038 = vmatmul.f32.gmra.mxu0 %v231
    %v2039 = vpop.f32.mrf.mxu0
    %v2040 = vadd.f32 %v136, %v2039
    %2041 = vmatmul.f32.gmra.mxu0 %v234
    %v2042 = vpop.f32.mrf.mxu0
    %v2043 = vadd.f32 %v141, %v2042
    %2044 = vmatmul.f32.gmra.mxu0 %v237
    %v2045 = vpop.f32.mrf.mxu0
    %v2046 = vadd.f32 %v146, %v2045
    %2047 = vmatmul.f32.gmra.mxu0 %v240
    %v2048 = vpop.f32.mrf.mxu0
    %v2049 = vadd.f32 %v151, %v2048
    %2050 = vmatmul.f32.gmra.mxu0 %v243
    %v2051 = vpop.f32.mrf.mxu0
    %v2052 = vadd.f32 %v156, %v2051
    %2053 = vmatmul.f32.gmra.mxu0 %v246
    %v2054 = vpop.f32.mrf.mxu0
    %v2055 = vadd.f32 %v161, %v2054
    %2056 = vmatmul.f32.gmra.mxu0 %v249
    %v2057 = vpop.f32.mrf.mxu0
    %v2058 = vadd.f32 %v166, %v2057
    %2059 = vmatmul.f32.gmra.mxu0 %v252
    %v2060 = vpop.f32.mrf.mxu0
    %v2061 = vadd.f32 %v171, %v2060
    %2062 = vmatmul.f32.gmra.mxu0 %v255
    %v2063 = vpop.f32.mrf.mxu0
    %v2064 = vadd.f32 %v176, %v2063
    %2065 = vmatmul.f32.gmra.mxu0 %v258
    %v2066 = vpop.f32.mrf.mxu0
    %v2067 = vadd.f32 %v181, %v2066
    %2068 = vmatmul.f32.gmra.mxu0 %v261
    %v2069 = vpop.f32.mrf.mxu0
    %v2070 = vadd.f32 %v186, %v2069
    %2071 = vmatmul.f32.gmra.mxu0 %v264
    %v2072 = vpop.f32.mrf.mxu0
    %v2073 = vadd.f32 %v191, %v2072
    %2074 = vdwg.mxu0
    %2075 = vmatpush.msra.mxu0 0.0
    %2076 = vmatpush.msra.mxu0 0.0
    %2077 = vmatpush.msra.mxu0 0.0
    %2078 = vmatpush.msra.mxu0 0.0
    %2079 = vmatpush.msra.mxu0 0.0
    %2080 = vmatpush.msra.mxu0 0.0
    %2081 = vmatpush.msra.mxu0 0.0
    %2082 = vmatpush.msra.mxu0 0.0
    %2083 = vmatpush.msra.mxu0 0.0
    %2084 = vmatpush.msra.mxu0 0.0
    %2085 = vmatpush.msra.mxu0 0.0
    %2086 = vmatpush.msra.mxu0 0.0
    %2087 = vmatpush.msra.mxu0 0.0
    %2088 = vmatpush.msra.mxu0 0.0
    %2089 = vmatpush.msra.mxu0 %v2009
    %2090 = vmatpush.msra.mxu0 %v2007
    %2091 = vmatmul.f32.gmra.mxu0 %v219
    %v2092 = vpop.f32.mrf.mxu0
    %v2093 = vadd.f32 %v116, %v2092
    %2094 = vmatmul.f32.gmra.mxu0 %v222
    %v2095 = vpop.f32.mrf.mxu0
    %v2096 = vadd.f32 %v121, %v2095
    %2097 = vmatmul.f32.gmra.mxu0 %v225
    %v2098 = vpop.f32.mrf.mxu0
    %v2099 = vadd.f32 %v126, %v2098
    %2100 = vmatmul.f32.gmra.mxu0 %v228
    %v2101 = vpop.f32.mrf.mxu0
    %v2102 = vadd.f32 %v131, %v2101
    %2103 = vmatmul.f32.gmra.mxu0 %v231
    %v2104 = vpop.f32.mrf.mxu0
    %v2105 = vadd.f32 %v136, %v2104
    %2106 = vmatmul.f32.gmra.mxu0 %v234
    %v2107 = vpop.f32.mrf.mxu0
    %v2108 = vadd.f32 %v141, %v2107
    %2109 = vmatmul.f32.gmra.mxu0 %v237
    %v2110 = vpop.f32.mrf.mxu0
    %v2111 = vadd.f32 %v146, %v2110
    %2112 = vmatmul.f32.gmra.mxu0 %v240
    %v2113 = vpop.f32.mrf.mxu0
    %v2114 = vadd.f32 %v151, %v2113
    %2115 = vmatmul.f32.gmra.mxu0 %v243
    %v2116 = vpop.f32.mrf.mxu0
    %v2117 = vadd.f32 %v156, %v2116
    %2118 = vmatmul.f32.gmra.mxu0 %v246
    %v2119 = vpop.f32.mrf.mxu0
    %v2120 = vadd.f32 %v161, %v2119
    %2121 = vmatmul.f32.gmra.mxu0 %v249
    %v2122 = vpop.f32.mrf.mxu0
    %v2123 = vadd.f32 %v166, %v2122
    %2124 = vmatmul.f32.gmra.mxu0 %v252
    %v2125 = vpop.f32.mrf.mxu0
    %v2126 = vadd.f32 %v171, %v2125
    %2127 = vmatmul.f32.gmra.mxu0 %v255
    %v2128 = vpop.f32.mrf.mxu0
    %v2129 = vadd.f32 %v176, %v2128
    %2130 = vmatmul.f32.gmra.mxu0 %v258
    %v2131 = vpop.f32.mrf.mxu0
    %v2132 = vadd.f32 %v181, %v2131
    %2133 = vmatmul.f32.gmra.mxu0 %v261
    %v2134 = vpop.f32.mrf.mxu0
    %v2135 = vadd.f32 %v186, %v2134
    %2136 = vmatmul.f32.gmra.mxu0 %v264
    %v2137 = vpop.f32.mrf.mxu0
    %v2138 = vadd.f32 %v191, %v2137
    %2139 = vdwg.mxu0
    %v2140 = vmax.f32 %v2028, 0.0
    %v2141 = vmax.f32 %v2093, 0.0
    %v2142 = vmax.f32 %v2031, 0.0
    %v2143 = vmax.f32 %v2096, 0.0
    %v2144 = vmax.f32 %v2034, 0.0
    %v2145 = vmax.f32 %v2099, 0.0
    %v2146 = vmax.f32 %v2037, 0.0
    %v2147 = vmax.f32 %v2102, 0.0
    %v2148 = vmax.f32 %v2040, 0.0
    %v2149 = vmax.f32 %v2105, 0.0
    %v2150 = vmax.f32 %v2043, 0.0
    %v2151 = vmax.f32 %v2108, 0.0
    %v2152 = vmax.f32 %v2046, 0.0
    %v2153 = vmax.f32 %v2111, 0.0
    %v2154 = vmax.f32 %v2049, 0.0
    %v2155 = vmax.f32 %v2114, 0.0
    %v2156 = vmax.f32 %v2052, 0.0
    %v2157 = vmax.f32 %v2117, 0.0
    %v2158 = vmax.f32 %v2055, 0.0
    %v2159 = vmax.f32 %v2120, 0.0
    %v2160 = vmax.f32 %v2058, 0.0
    %v2161 = vmax.f32 %v2123, 0.0
    %v2162 = vmax.f32 %v2061, 0.0
    %v2163 = vmax.f32 %v2126, 0.0
    %v2164 = vmax.f32 %v2064, 0.0
    %v2165 = vmax.f32 %v2129, 0.0
    %v2166 = vmax.f32 %v2067, 0.0
    %v2167 = vmax.f32 %v2132, 0.0
    %v2168 = vmax.f32 %v2070, 0.0
    %v2169 = vmax.f32 %v2135, 0.0
    %v2170 = vmax.f32 %v2073, 0.0
    %v2171 = vmax.f32 %v2138, 0.0
    %v2172 = vmax.f32 %v1954, %v2140
    %v2173 = vmax.f32 %v1955, %v2141
    %v2174 = vmax.f32 %v1956, %v2142
    %v2175 = vmax.f32 %v1957, %v2143
    %v2176 = vmax.f32 %v1958, %v2144
    %v2177 = vmax.f32 %v1959, %v2145
    %v2178 = vmax.f32 %v1960, %v2146
    %v2179 = vmax.f32 %v1961, %v2147
    %v2180 = vmax.f32 %v1962, %v2148
    %v2181 = vmax.f32 %v1963, %v2149
    %v2182 = vmax.f32 %v1964, %v2150
    %v2183 = vmax.f32 %v1965, %v2151
    %v2184 = vmax.f32 %v1966, %v2152
    %v2185 = vmax.f32 %v1967, %v2153
    %v2186 = vmax.f32 %v1968, %v2154
    %v2187 = vmax.f32 %v1969, %v2155
    %v2188 = vmax.f32 %v1970, %v2156
    %v2189 = vmax.f32 %v1971, %v2157
    %v2190 = vmax.f32 %v1972, %v2158
    %v2191 = vmax.f32 %v1973, %v2159
    %v2192 = vmax.f32 %v1974, %v2160
    %v2193 = vmax.f32 %v1975, %v2161
    %v2194 = vmax.f32 %v1976, %v2162
    %v2195 = vmax.f32 %v1977, %v2163
    %v2196 = vmax.f32 %v1978, %v2164
    %v2197 = vmax.f32 %v1979, %v2165
    %v2198 = vmax.f32 %v1980, %v2166
    %v2199 = vmax.f32 %v1981, %v2167
    %v2200 = vmax.f32 %v1982, %v2168
    %v2201 = vmax.f32 %v1983, %v2169
    %v2202 = vmax.f32 %v1984, %v2170
    %v2203 = vmax.f32 %v1985, %v2171
    %v2204 = vperm.slane %v41, 1
    %v2205 = vperm.slane %v42, 1
    %v2206 = vmul.f32 %v54, %v2204
    %v2207 = vmul.f32 %v54, %v2205
    %v2208 = vmul.f32 %v59, %v2204
    %v2209 = vmul.f32 %v59, %v2205
    %v2210 = vperm.slane %v45, 5
    %v2211 = vperm.slane %v46, 5
    %v2212 = vmul.f32 %v63, %v2210
    %v2213 = vmul.f32 %v63, %v2211
    %v2214 = vmul.f32 %v67, %v2210
    %v2215 = vmul.f32 %v67, %v2211
    %v2216 = vadd.f32 %v2206, %v2212
    %v2217 = vadd.f32 %v2207, %v2213
    %v2218 = vadd.f32 %v2208, %v2214
    %v2219 = vadd.f32 %v2209, %v2215
    %v2220 = vadd.f32 %v2216, %v74
    %v2221 = vadd.f32 %v2217, %v74
    %v2222 = vadd.f32 %v2218, %v79
    %v2223 = vadd.f32 %v2219, %v79
    %v2224 = vmax.f32 %v2220, 0.0
    %v2225 = vmax.f32 %v2221, 0.0
    %v2226 = vmax.f32 %v2222, 0.0
    %v2227 = vmax.f32 %v2223, 0.0
    %2228 = vmatpush.msra.mxu0 0.0
    %2229 = vmatpush.msra.mxu0 0.0
    %2230 = vmatpush.msra.mxu0 0.0
    %2231 = vmatpush.msra.mxu0 0.0
    %2232 = vmatpush.msra.mxu0 0.0
    %2233 = vmatpush.msra.mxu0 0.0
    %2234 = vmatpush.msra.mxu0 0.0
    %2235 = vmatpush.msra.mxu0 0.0
    %2236 = vmatpush.msra.mxu0 0.0
    %2237 = vmatpush.msra.mxu0 0.0
    %2238 = vmatpush.msra.mxu0 0.0
    %2239 = vmatpush.msra.mxu0 0.0
    %2240 = vmatpush.msra.mxu0 0.0
    %2241 = vmatpush.msra.mxu0 0.0
    %2242 = vmatpush.msra.mxu0 %v2226
    %2243 = vmatpush.msra.mxu0 %v2224
    %2244 = vmatmul.f32.gmra.mxu0 %v219
    %v2245 = vpop.f32.mrf.mxu0
    %v2246 = vadd.f32 %v116, %v2245
    %2247 = vmatmul.f32.gmra.mxu0 %v222
    %v2248 = vpop.f32.mrf.mxu0
    %v2249 = vadd.f32 %v121, %v2248
    %2250 = vmatmul.f32.gmra.mxu0 %v225
    %v2251 = vpop.f32.mrf.mxu0
    %v2252 = vadd.f32 %v126, %v2251
    %2253 = vmatmul.f32.gmra.mxu0 %v228
    %v2254 = vpop.f32.mrf.mxu0
    %v2255 = vadd.f32 %v131, %v2254
    %2256 = vmatmul.f32.gmra.mxu0 %v231
    %v2257 = vpop.f32.mrf.mxu0
    %v2258 = vadd.f32 %v136, %v2257
    %2259 = vmatmul.f32.gmra.mxu0 %v234
    %v2260 = vpop.f32.mrf.mxu0
    %v2261 = vadd.f32 %v141, %v2260
    %2262 = vmatmul.f32.gmra.mxu0 %v237
    %v2263 = vpop.f32.mrf.mxu0
    %v2264 = vadd.f32 %v146, %v2263
    %2265 = vmatmul.f32.gmra.mxu0 %v240
    %v2266 = vpop.f32.mrf.mxu0
    %v2267 = vadd.f32 %v151, %v2266
    %2268 = vmatmul.f32.gmra.mxu0 %v243
    %v2269 = vpop.f32.mrf.mxu0
    %v2270 = vadd.f32 %v156, %v2269
    %2271 = vmatmul.f32.gmra.mxu0 %v246
    %v2272 = vpop.f32.mrf.mxu0
    %v2273 = vadd.f32 %v161, %v2272
    %2274 = vmatmul.f32.gmra.mxu0 %v249
    %v2275 = vpop.f32.mrf.mxu0
    %v2276 = vadd.f32 %v166, %v2275
    %2277 = vmatmul.f32.gmra.mxu0 %v252
    %v2278 = vpop.f32.mrf.mxu0
    %v2279 = vadd.f32 %v171, %v2278
    %2280 = vmatmul.f32.gmra.mxu0 %v255
    %v2281 = vpop.f32.mrf.mxu0
    %v2282 = vadd.f32 %v176, %v2281
    %2283 = vmatmul.f32.gmra.mxu0 %v258
    %v2284 = vpop.f32.mrf.mxu0
    %v2285 = vadd.f32 %v181, %v2284
    %2286 = vmatmul.f32.gmra.mxu0 %v261
    %v2287 = vpop.f32.mrf.mxu0
    %v2288 = vadd.f32 %v186, %v2287
    %2289 = vmatmul.f32.gmra.mxu0 %v264
    %v2290 = vpop.f32.mrf.mxu0
    %v2291 = vadd.f32 %v191, %v2290
    %2292 = vdwg.mxu0
    %2293 = vmatpush.msra.mxu0 0.0
    %2294 = vmatpush.msra.mxu0 0.0
    %2295 = vmatpush.msra.mxu0 0.0
    %2296 = vmatpush.msra.mxu0 0.0
    %2297 = vmatpush.msra.mxu0 0.0
    %2298 = vmatpush.msra.mxu0 0.0
    %2299 = vmatpush.msra.mxu0 0.0
    %2300 = vmatpush.msra.mxu0 0.0
    %2301 = vmatpush.msra.mxu0 0.0
    %2302 = vmatpush.msra.mxu0 0.0
    %2303 = vmatpush.msra.mxu0 0.0
    %2304 = vmatpush.msra.mxu0 0.0
    %2305 = vmatpush.msra.mxu0 0.0
    %2306 = vmatpush.msra.mxu0 0.0
    %2307 = vmatpush.msra.mxu0 %v2227
    %2308 = vmatpush.msra.mxu0 %v2225
    %2309 = vmatmul.f32.gmra.mxu0 %v219
    %v2310 = vpop.f32.mrf.mxu0
    %v2311 = vadd.f32 %v116, %v2310
    %2312 = vmatmul.f32.gmra.mxu0 %v222
    %v2313 = vpop.f32.mrf.mxu0
    %v2314 = vadd.f32 %v121, %v2313
    %2315 = vmatmul.f32.gmra.mxu0 %v225
    %v2316 = vpop.f32.mrf.mxu0
    %v2317 = vadd.f32 %v126, %v2316
    %2318 = vmatmul.f32.gmra.mxu0 %v228
    %v2319 = vpop.f32.mrf.mxu0
    %v2320 = vadd.f32 %v131, %v2319
    %2321 = vmatmul.f32.gmra.mxu0 %v231
    %v2322 = vpop.f32.mrf.mxu0
    %v2323 = vadd.f32 %v136, %v2322
    %2324 = vmatmul.f32.gmra.mxu0 %v234
    %v2325 = vpop.f32.mrf.mxu0
    %v2326 = vadd.f32 %v141, %v2325
    %2327 = vmatmul.f32.gmra.mxu0 %v237
    %v2328 = vpop.f32.mrf.mxu0
    %v2329 = vadd.f32 %v146, %v2328
    %2330 = vmatmul.f32.gmra.mxu0 %v240
    %v2331 = vpop.f32.mrf.mxu0
    %v2332 = vadd.f32 %v151, %v2331
    %2333 = vmatmul.f32.gmra.mxu0 %v243
    %v2334 = vpop.f32.mrf.mxu0
    %v2335 = vadd.f32 %v156, %v2334
    %2336 = vmatmul.f32.gmra.mxu0 %v246
    %v2337 = vpop.f32.mrf.mxu0
    %v2338 = vadd.f32 %v161, %v2337
    %2339 = vmatmul.f32.gmra.mxu0 %v249
    %v2340 = vpop.f32.mrf.mxu0
    %v2341 = vadd.f32 %v166, %v2340
    %2342 = vmatmul.f32.gmra.mxu0 %v252
    %v2343 = vpop.f32.mrf.mxu0
    %v2344 = vadd.f32 %v171, %v2343
    %2345 = vmatmul.f32.gmra.mxu0 %v255
    %v2346 = vpop.f32.mrf.mxu0
    %v2347 = vadd.f32 %v176, %v2346
    %2348 = vmatmul.f32.gmra.mxu0 %v258
    %v2349 = vpop.f32.mrf.mxu0
    %v2350 = vadd.f32 %v181, %v2349
    %2351 = vmatmul.f32.gmra.mxu0 %v261
    %v2352 = vpop.f32.mrf.mxu0
    %v2353 = vadd.f32 %v186, %v2352
    %2354 = vmatmul.f32.gmra.mxu0 %v264
    %v2355 = vpop.f32.mrf.mxu0
    %v2356 = vadd.f32 %v191, %v2355
    %2357 = vdwg.mxu0
    %v2358 = vmax.f32 %v2246, 0.0
    %v2359 = vmax.f32 %v2311, 0.0
    %v2360 = vmax.f32 %v2249, 0.0
    %v2361 = vmax.f32 %v2314, 0.0
    %v2362 = vmax.f32 %v2252, 0.0
    %v2363 = vmax.f32 %v2317, 0.0
    %v2364 = vmax.f32 %v2255, 0.0
    %v2365 = vmax.f32 %v2320, 0.0
    %v2366 = vmax.f32 %v2258, 0.0
    %v2367 = vmax.f32 %v2323, 0.0
    %v2368 = vmax.f32 %v2261, 0.0
    %v2369 = vmax.f32 %v2326, 0.0
    %v2370 = vmax.f32 %v2264, 0.0
    %v2371 = vmax.f32 %v2329, 0.0
    %v2372 = vmax.f32 %v2267, 0.0
    %v2373 = vmax.f32 %v2332, 0.0
    %v2374 = vmax.f32 %v2270, 0.0
    %v2375 = vmax.f32 %v2335, 0.0
    %v2376 = vmax.f32 %v2273, 0.0
    %v2377 = vmax.f32 %v2338, 0.0
    %v2378 = vmax.f32 %v2276, 0.0
    %v2379 = vmax.f32 %v2341, 0.0
    %v2380 = vmax.f32 %v2279, 0.0
    %v2381 = vmax.f32 %v2344, 0.0
    %v2382 = vmax.f32 %v2282, 0.0
    %v2383 = vmax.f32 %v2347, 0.0
    %v2384 = vmax.f32 %v2285, 0.0
    %v2385 = vmax.f32 %v2350, 0.0
    %v2386 = vmax.f32 %v2288, 0.0
    %v2387 = vmax.f32 %v2353, 0.0
    %v2388 = vmax.f32 %v2291, 0.0
    %v2389 = vmax.f32 %v2356, 0.0
    %v2390 = vmax.f32 %v2172, %v2358
    %v2391 = vmax.f32 %v2173, %v2359
    %v2392 = vmax.f32 %v2174, %v2360
    %v2393 = vmax.f32 %v2175, %v2361
    %v2394 = vmax.f32 %v2176, %v2362
    %v2395 = vmax.f32 %v2177, %v2363
    %v2396 = vmax.f32 %v2178, %v2364
    %v2397 = vmax.f32 %v2179, %v2365
    %v2398 = vmax.f32 %v2180, %v2366
    %v2399 = vmax.f32 %v2181, %v2367
    %v2400 = vmax.f32 %v2182, %v2368
    %v2401 = vmax.f32 %v2183, %v2369
    %v2402 = vmax.f32 %v2184, %v2370
    %v2403 = vmax.f32 %v2185, %v2371
    %v2404 = vmax.f32 %v2186, %v2372
    %v2405 = vmax.f32 %v2187, %v2373
    %v2406 = vmax.f32 %v2188, %v2374
    %v2407 = vmax.f32 %v2189, %v2375
    %v2408 = vmax.f32 %v2190, %v2376
    %v2409 = vmax.f32 %v2191, %v2377
    %v2410 = vmax.f32 %v2192, %v2378
    %v2411 = vmax.f32 %v2193, %v2379
    %v2412 = vmax.f32 %v2194, %v2380
    %v2413 = vmax.f32 %v2195, %v2381
    %v2414 = vmax.f32 %v2196, %v2382
    %v2415 = vmax.f32 %v2197, %v2383
    %v2416 = vmax.f32 %v2198, %v2384
    %v2417 = vmax.f32 %v2199, %v2385
    %v2418 = vmax.f32 %v2200, %v2386
    %v2419 = vmax.f32 %v2201, %v2387
    %v2420 = vmax.f32 %v2202, %v2388
    %v2421 = vmax.f32 %v2203, %v2389
    %v2422 = vperm.slane %v41, 2
    %v2423 = vperm.slane %v42, 2
    %v2424 = vmul.f32 %v54, %v2422
    %v2425 = vmul.f32 %v54, %v2423
    %v2426 = vmul.f32 %v59, %v2422
    %v2427 = vmul.f32 %v59, %v2423
    %v2428 = vperm.slane %v45, 6
    %v2429 = vperm.slane %v46, 6
    %v2430 = vmul.f32 %v63, %v2428
    %v2431 = vmul.f32 %v63, %v2429
    %v2432 = vmul.f32 %v67, %v2428
    %v2433 = vmul.f32 %v67, %v2429
    %v2434 = vadd.f32 %v2424, %v2430
    %v2435 = vadd.f32 %v2425, %v2431
    %v2436 = vadd.f32 %v2426, %v2432
    %v2437 = vadd.f32 %v2427, %v2433
    %v2438 = vadd.f32 %v2434, %v74
    %v2439 = vadd.f32 %v2435, %v74
    %v2440 = vadd.f32 %v2436, %v79
    %v2441 = vadd.f32 %v2437, %v79
    %v2442 = vmax.f32 %v2438, 0.0
    %v2443 = vmax.f32 %v2439, 0.0
    %v2444 = vmax.f32 %v2440, 0.0
    %v2445 = vmax.f32 %v2441, 0.0
    %2446 = vmatpush.msra.mxu0 0.0
    %2447 = vmatpush.msra.mxu0 0.0
    %2448 = vmatpush.msra.mxu0 0.0
    %2449 = vmatpush.msra.mxu0 0.0
    %2450 = vmatpush.msra.mxu0 0.0
    %2451 = vmatpush.msra.mxu0 0.0
    %2452 = vmatpush.msra.mxu0 0.0
    %2453 = vmatpush.msra.mxu0 0.0
    %2454 = vmatpush.msra.mxu0 0.0
    %2455 = vmatpush.msra.mxu0 0.0
    %2456 = vmatpush.msra.mxu0 0.0
    %2457 = vmatpush.msra.mxu0 0.0
    %2458 = vmatpush.msra.mxu0 0.0
    %2459 = vmatpush.msra.mxu0 0.0
    %2460 = vmatpush.msra.mxu0 %v2444
    %2461 = vmatpush.msra.mxu0 %v2442
    %2462 = vmatmul.f32.gmra.mxu0 %v219
    %v2463 = vpop.f32.mrf.mxu0
    %v2464 = vadd.f32 %v116, %v2463
    %2465 = vmatmul.f32.gmra.mxu0 %v222
    %v2466 = vpop.f32.mrf.mxu0
    %v2467 = vadd.f32 %v121, %v2466
    %2468 = vmatmul.f32.gmra.mxu0 %v225
    %v2469 = vpop.f32.mrf.mxu0
    %v2470 = vadd.f32 %v126, %v2469
    %2471 = vmatmul.f32.gmra.mxu0 %v228
    %v2472 = vpop.f32.mrf.mxu0
    %v2473 = vadd.f32 %v131, %v2472
    %2474 = vmatmul.f32.gmra.mxu0 %v231
    %v2475 = vpop.f32.mrf.mxu0
    %v2476 = vadd.f32 %v136, %v2475
    %2477 = vmatmul.f32.gmra.mxu0 %v234
    %v2478 = vpop.f32.mrf.mxu0
    %v2479 = vadd.f32 %v141, %v2478
    %2480 = vmatmul.f32.gmra.mxu0 %v237
    %v2481 = vpop.f32.mrf.mxu0
    %v2482 = vadd.f32 %v146, %v2481
    %2483 = vmatmul.f32.gmra.mxu0 %v240
    %v2484 = vpop.f32.mrf.mxu0
    %v2485 = vadd.f32 %v151, %v2484
    %2486 = vmatmul.f32.gmra.mxu0 %v243
    %v2487 = vpop.f32.mrf.mxu0
    %v2488 = vadd.f32 %v156, %v2487
    %2489 = vmatmul.f32.gmra.mxu0 %v246
    %v2490 = vpop.f32.mrf.mxu0
    %v2491 = vadd.f32 %v161, %v2490
    %2492 = vmatmul.f32.gmra.mxu0 %v249
    %v2493 = vpop.f32.mrf.mxu0
    %v2494 = vadd.f32 %v166, %v2493
    %2495 = vmatmul.f32.gmra.mxu0 %v252
    %v2496 = vpop.f32.mrf.mxu0
    %v2497 = vadd.f32 %v171, %v2496
    %2498 = vmatmul.f32.gmra.mxu0 %v255
    %v2499 = vpop.f32.mrf.mxu0
    %v2500 = vadd.f32 %v176, %v2499
    %2501 = vmatmul.f32.gmra.mxu0 %v258
    %v2502 = vpop.f32.mrf.mxu0
    %v2503 = vadd.f32 %v181, %v2502
    %2504 = vmatmul.f32.gmra.mxu0 %v261
    %v2505 = vpop.f32.mrf.mxu0
    %v2506 = vadd.f32 %v186, %v2505
    %2507 = vmatmul.f32.gmra.mxu0 %v264
    %v2508 = vpop.f32.mrf.mxu0
    %v2509 = vadd.f32 %v191, %v2508
    %2510 = vdwg.mxu0
    %2511 = vmatpush.msra.mxu0 0.0
    %2512 = vmatpush.msra.mxu0 0.0
    %2513 = vmatpush.msra.mxu0 0.0
    %2514 = vmatpush.msra.mxu0 0.0
    %2515 = vmatpush.msra.mxu0 0.0
    %2516 = vmatpush.msra.mxu0 0.0
    %2517 = vmatpush.msra.mxu0 0.0
    %2518 = vmatpush.msra.mxu0 0.0
    %2519 = vmatpush.msra.mxu0 0.0
    %2520 = vmatpush.msra.mxu0 0.0
    %2521 = vmatpush.msra.mxu0 0.0
    %2522 = vmatpush.msra.mxu0 0.0
    %2523 = vmatpush.msra.mxu0 0.0
    %2524 = vmatpush.msra.mxu0 0.0
    %2525 = vmatpush.msra.mxu0 %v2445
    %2526 = vmatpush.msra.mxu0 %v2443
    %2527 = vmatmul.f32.gmra.mxu0 %v219
    %v2528 = vpop.f32.mrf.mxu0
    %v2529 = vadd.f32 %v116, %v2528
    %2530 = vmatmul.f32.gmra.mxu0 %v222
    %v2531 = vpop.f32.mrf.mxu0
    %v2532 = vadd.f32 %v121, %v2531
    %2533 = vmatmul.f32.gmra.mxu0 %v225
    %v2534 = vpop.f32.mrf.mxu0
    %v2535 = vadd.f32 %v126, %v2534
    %2536 = vmatmul.f32.gmra.mxu0 %v228
    %v2537 = vpop.f32.mrf.mxu0
    %v2538 = vadd.f32 %v131, %v2537
    %2539 = vmatmul.f32.gmra.mxu0 %v231
    %v2540 = vpop.f32.mrf.mxu0
    %v2541 = vadd.f32 %v136, %v2540
    %2542 = vmatmul.f32.gmra.mxu0 %v234
    %v2543 = vpop.f32.mrf.mxu0
    %v2544 = vadd.f32 %v141, %v2543
    %2545 = vmatmul.f32.gmra.mxu0 %v237
    %v2546 = vpop.f32.mrf.mxu0
    %v2547 = vadd.f32 %v146, %v2546
    %2548 = vmatmul.f32.gmra.mxu0 %v240
    %v2549 = vpop.f32.mrf.mxu0
    %v2550 = vadd.f32 %v151, %v2549
    %2551 = vmatmul.f32.gmra.mxu0 %v243
    %v2552 = vpop.f32.mrf.mxu0
    %v2553 = vadd.f32 %v156, %v2552
    %2554 = vmatmul.f32.gmra.mxu0 %v246
    %v2555 = vpop.f32.mrf.mxu0
    %v2556 = vadd.f32 %v161, %v2555
    %2557 = vmatmul.f32.gmra.mxu0 %v249
    %v2558 = vpop.f32.mrf.mxu0
    %v2559 = vadd.f32 %v166, %v2558
    %2560 = vmatmul.f32.gmra.mxu0 %v252
    %v2561 = vpop.f32.mrf.mxu0
    %v2562 = vadd.f32 %v171, %v2561
    %2563 = vmatmul.f32.gmra.mxu0 %v255
    %v2564 = vpop.f32.mrf.mxu0
    %v2565 = vadd.f32 %v176, %v2564
    %2566 = vmatmul.f32.gmra.mxu0 %v258
    %v2567 = vpop.f32.mrf.mxu0
    %v2568 = vadd.f32 %v181, %v2567
    %2569 = vmatmul.f32.gmra.mxu0 %v261
    %v2570 = vpop.f32.mrf.mxu0
    %v2571 = vadd.f32 %v186, %v2570
    %2572 = vmatmul.f32.gmra.mxu0 %v264
    %v2573 = vpop.f32.mrf.mxu0
    %v2574 = vadd.f32 %v191, %v2573
    %2575 = vdwg.mxu0
    %v2576 = vmax.f32 %v2464, 0.0
    %v2577 = vmax.f32 %v2529, 0.0
    %v2578 = vmax.f32 %v2467, 0.0
    %v2579 = vmax.f32 %v2532, 0.0
    %v2580 = vmax.f32 %v2470, 0.0
    %v2581 = vmax.f32 %v2535, 0.0
    %v2582 = vmax.f32 %v2473, 0.0
    %v2583 = vmax.f32 %v2538, 0.0
    %v2584 = vmax.f32 %v2476, 0.0
    %v2585 = vmax.f32 %v2541, 0.0
    %v2586 = vmax.f32 %v2479, 0.0
    %v2587 = vmax.f32 %v2544, 0.0
    %v2588 = vmax.f32 %v2482, 0.0
    %v2589 = vmax.f32 %v2547, 0.0
    %v2590 = vmax.f32 %v2485, 0.0
    %v2591 = vmax.f32 %v2550, 0.0
    %v2592 = vmax.f32 %v2488, 0.0
    %v2593 = vmax.f32 %v2553, 0.0
    %v2594 = vmax.f32 %v2491, 0.0
    %v2595 = vmax.f32 %v2556, 0.0
    %v2596 = vmax.f32 %v2494, 0.0
    %v2597 = vmax.f32 %v2559, 0.0
    %v2598 = vmax.f32 %v2497, 0.0
    %v2599 = vmax.f32 %v2562, 0.0
    %v2600 = vmax.f32 %v2500, 0.0
    %v2601 = vmax.f32 %v2565, 0.0
    %v2602 = vmax.f32 %v2503, 0.0
    %v2603 = vmax.f32 %v2568, 0.0
    %v2604 = vmax.f32 %v2506, 0.0
    %v2605 = vmax.f32 %v2571, 0.0
    %v2606 = vmax.f32 %v2509, 0.0
    %v2607 = vmax.f32 %v2574, 0.0
    %v2608 = vmax.f32 %v2390, %v2576
    %v2609 = vmax.f32 %v2391, %v2577
    %v2610 = vmax.f32 %v2392, %v2578
    %v2611 = vmax.f32 %v2393, %v2579
    %v2612 = vmax.f32 %v2394, %v2580
    %v2613 = vmax.f32 %v2395, %v2581
    %v2614 = vmax.f32 %v2396, %v2582
    %v2615 = vmax.f32 %v2397, %v2583
    %v2616 = vmax.f32 %v2398, %v2584
    %v2617 = vmax.f32 %v2399, %v2585
    %v2618 = vmax.f32 %v2400, %v2586
    %v2619 = vmax.f32 %v2401, %v2587
    %v2620 = vmax.f32 %v2402, %v2588
    %v2621 = vmax.f32 %v2403, %v2589
    %v2622 = vmax.f32 %v2404, %v2590
    %v2623 = vmax.f32 %v2405, %v2591
    %v2624 = vmax.f32 %v2406, %v2592
    %v2625 = vmax.f32 %v2407, %v2593
    %v2626 = vmax.f32 %v2408, %v2594
    %v2627 = vmax.f32 %v2409, %v2595
    %v2628 = vmax.f32 %v2410, %v2596
    %v2629 = vmax.f32 %v2411, %v2597
    %v2630 = vmax.f32 %v2412, %v2598
    %v2631 = vmax.f32 %v2413, %v2599
    %v2632 = vmax.f32 %v2414, %v2600
    %v2633 = vmax.f32 %v2415, %v2601
    %v2634 = vmax.f32 %v2416, %v2602
    %v2635 = vmax.f32 %v2417, %v2603
    %v2636 = vmax.f32 %v2418, %v2604
    %v2637 = vmax.f32 %v2419, %v2605
    %v2638 = vmax.f32 %v2420, %v2606
    %v2639 = vmax.f32 %v2421, %v2607
    %v2640 = vperm.slane %v41, 3
    %v2641 = vperm.slane %v42, 3
    %v2642 = vmul.f32 %v54, %v2640
    %v2643 = vmul.f32 %v54, %v2641
    %v2644 = vmul.f32 %v59, %v2640
    %v2645 = vmul.f32 %v59, %v2641
    %v2646 = vperm.slane %v45, 7
    %v2647 = vperm.slane %v46, 7
    %v2648 = vmul.f32 %v63, %v2646
    %v2649 = vmul.f32 %v63, %v2647
    %v2650 = vmul.f32 %v67, %v2646
    %v2651 = vmul.f32 %v67, %v2647
    %v2652 = vadd.f32 %v2642, %v2648
    %v2653 = vadd.f32 %v2643, %v2649
    %v2654 = vadd.f32 %v2644, %v2650
    %v2655 = vadd.f32 %v2645, %v2651
    %v2656 = vadd.f32 %v2652, %v74
    %v2657 = vadd.f32 %v2653, %v74
    %v2658 = vadd.f32 %v2654, %v79
    %v2659 = vadd.f32 %v2655, %v79
    %v2660 = vmax.f32 %v2656, 0.0
    %v2661 = vmax.f32 %v2657, 0.0
    %v2662 = vmax.f32 %v2658, 0.0
    %v2663 = vmax.f32 %v2659, 0.0
    %2664 = vmatpush.msra.mxu0 0.0
    %2665 = vmatpush.msra.mxu0 0.0
    %2666 = vmatpush.msra.mxu0 0.0
    %2667 = vmatpush.msra.mxu0 0.0
    %2668 = vmatpush.msra.mxu0 0.0
    %2669 = vmatpush.msra.mxu0 0.0
    %2670 = vmatpush.msra.mxu0 0.0
    %2671 = vmatpush.msra.mxu0 0.0
    %2672 = vmatpush.msra.mxu0 0.0
    %2673 = vmatpush.msra.mxu0 0.0
    %2674 = vmatpush.msra.mxu0 0.0
    %2675 = vmatpush.msra.mxu0 0.0
    %2676 = vmatpush.msra.mxu0 0.0
    %2677 = vmatpush.msra.mxu0 0.0
    %2678 = vmatpush.msra.mxu0 %v2662
    %2679 = vmatpush.msra.mxu0 %v2660
    %2680 = vmatmul.f32.gmra.mxu0 %v219
    %v2681 = vpop.f32.mrf.mxu0
    %v2682 = vadd.f32 %v116, %v2681
    %2683 = vmatmul.f32.gmra.mxu0 %v222
    %v2684 = vpop.f32.mrf.mxu0
    %v2685 = vadd.f32 %v121, %v2684
    %2686 = vmatmul.f32.gmra.mxu0 %v225
    %v2687 = vpop.f32.mrf.mxu0
    %v2688 = vadd.f32 %v126, %v2687
    %2689 = vmatmul.f32.gmra.mxu0 %v228
    %v2690 = vpop.f32.mrf.mxu0
    %v2691 = vadd.f32 %v131, %v2690
    %2692 = vmatmul.f32.gmra.mxu0 %v231
    %v2693 = vpop.f32.mrf.mxu0
    %v2694 = vadd.f32 %v136, %v2693
    %2695 = vmatmul.f32.gmra.mxu0 %v234
    %v2696 = vpop.f32.mrf.mxu0
    %v2697 = vadd.f32 %v141, %v2696
    %2698 = vmatmul.f32.gmra.mxu0 %v237
    %v2699 = vpop.f32.mrf.mxu0
    %v2700 = vadd.f32 %v146, %v2699
    %2701 = vmatmul.f32.gmra.mxu0 %v240
    %v2702 = vpop.f32.mrf.mxu0
    %v2703 = vadd.f32 %v151, %v2702
    %2704 = vmatmul.f32.gmra.mxu0 %v243
    %v2705 = vpop.f32.mrf.mxu0
    %v2706 = vadd.f32 %v156, %v2705
    %2707 = vmatmul.f32.gmra.mxu0 %v246
    %v2708 = vpop.f32.mrf.mxu0
    %v2709 = vadd.f32 %v161, %v2708
    %2710 = vmatmul.f32.gmra.mxu0 %v249
    %v2711 = vpop.f32.mrf.mxu0
    %v2712 = vadd.f32 %v166, %v2711
    %2713 = vmatmul.f32.gmra.mxu0 %v252
    %v2714 = vpop.f32.mrf.mxu0
    %v2715 = vadd.f32 %v171, %v2714
    %2716 = vmatmul.f32.gmra.mxu0 %v255
    %v2717 = vpop.f32.mrf.mxu0
    %v2718 = vadd.f32 %v176, %v2717
    %2719 = vmatmul.f32.gmra.mxu0 %v258
    %v2720 = vpop.f32.mrf.mxu0
    %v2721 = vadd.f32 %v181, %v2720
    %2722 = vmatmul.f32.gmra.mxu0 %v261
    %v2723 = vpop.f32.mrf.mxu0
    %v2724 = vadd.f32 %v186, %v2723
    %2725 = vmatmul.f32.gmra.mxu0 %v264
    %v2726 = vpop.f32.mrf.mxu0
    %v2727 = vadd.f32 %v191, %v2726
    %2728 = vdwg.mxu0
    %2729 = vmatpush.msra.mxu0 0.0
    %2730 = vmatpush.msra.mxu0 0.0
    %2731 = vmatpush.msra.mxu0 0.0
    %2732 = vmatpush.msra.mxu0 0.0
    %2733 = vmatpush.msra.mxu0 0.0
    %2734 = vmatpush.msra.mxu0 0.0
    %2735 = vmatpush.msra.mxu0 0.0
    %2736 = vmatpush.msra.mxu0 0.0
    %2737 = vmatpush.msra.mxu0 0.0
    %2738 = vmatpush.msra.mxu0 0.0
    %2739 = vmatpush.msra.mxu0 0.0
    %2740 = vmatpush.msra.mxu0 0.0
    %2741 = vmatpush.msra.mxu0 0.0
    %2742 = vmatpush.msra.mxu0 0.0
    %2743 = vmatpush.msra.mxu0 %v2663
    %2744 = vmatpush.msra.mxu0 %v2661
    %2745 = vmatmul.f32.gmra.mxu0 %v219
    %v2746 = vpop.f32.mrf.mxu0
    %v2747 = vadd.f32 %v116, %v2746
    %2748 = vmatmul.f32.gmra.mxu0 %v222
    %v2749 = vpop.f32.mrf.mxu0
    %v2750 = vadd.f32 %v121, %v2749
    %2751 = vmatmul.f32.gmra.mxu0 %v225
    %v2752 = vpop.f32.mrf.mxu0
    %v2753 = vadd.f32 %v126, %v2752
    %2754 = vmatmul.f32.gmra.mxu0 %v228
    %v2755 = vpop.f32.mrf.mxu0
    %v2756 = vadd.f32 %v131, %v2755
    %2757 = vmatmul.f32.gmra.mxu0 %v231
    %v2758 = vpop.f32.mrf.mxu0
    %v2759 = vadd.f32 %v136, %v2758
    %2760 = vmatmul.f32.gmra.mxu0 %v234
    %v2761 = vpop.f32.mrf.mxu0
    %v2762 = vadd.f32 %v141, %v2761
    %2763 = vmatmul.f32.gmra.mxu0 %v237
    %v2764 = vpop.f32.mrf.mxu0
    %v2765 = vadd.f32 %v146, %v2764
    %2766 = vmatmul.f32.gmra.mxu0 %v240
    %v2767 = vpop.f32.mrf.mxu0
    %v2768 = vadd.f32 %v151, %v2767
    %2769 = vmatmul.f32.gmra.mxu0 %v243
    %v2770 = vpop.f32.mrf.mxu0
    %v2771 = vadd.f32 %v156, %v2770
    %2772 = vmatmul.f32.gmra.mxu0 %v246
    %v2773 = vpop.f32.mrf.mxu0
    %v2774 = vadd.f32 %v161, %v2773
    %2775 = vmatmul.f32.gmra.mxu0 %v249
    %v2776 = vpop.f32.mrf.mxu0
    %v2777 = vadd.f32 %v166, %v2776
    %2778 = vmatmul.f32.gmra.mxu0 %v252
    %v2779 = vpop.f32.mrf.mxu0
    %v2780 = vadd.f32 %v171, %v2779
    %2781 = vmatmul.f32.gmra.mxu0 %v255
    %v2782 = vpop.f32.mrf.mxu0
    %v2783 = vadd.f32 %v176, %v2782
    %2784 = vmatmul.f32.gmra.mxu0 %v258
    %v2785 = vpop.f32.mrf.mxu0
    %v2786 = vadd.f32 %v181, %v2785
    %2787 = vmatmul.f32.gmra.mxu0 %v261
    %v2788 = vpop.f32.mrf.mxu0
    %v2789 = vadd.f32 %v186, %v2788
    %2790 = vmatmul.f32.gmra.mxu0 %v264
    %v2791 = vpop.f32.mrf.mxu0
    %v2792 = vadd.f32 %v191, %v2791
    %2793 = vdwg.mxu0
    %v2794 = vmax.f32 %v2682, 0.0
    %v2795 = vmax.f32 %v2747, 0.0
    %v2796 = vmax.f32 %v2685, 0.0
    %v2797 = vmax.f32 %v2750, 0.0
    %v2798 = vmax.f32 %v2688, 0.0
    %v2799 = vmax.f32 %v2753, 0.0
    %v2800 = vmax.f32 %v2691, 0.0
    %v2801 = vmax.f32 %v2756, 0.0
    %v2802 = vmax.f32 %v2694, 0.0
    %v2803 = vmax.f32 %v2759, 0.0
    %v2804 = vmax.f32 %v2697, 0.0
    %v2805 = vmax.f32 %v2762, 0.0
    %v2806 = vmax.f32 %v2700, 0.0
    %v2807 = vmax.f32 %v2765, 0.0
    %v2808 = vmax.f32 %v2703, 0.0
    %v2809 = vmax.f32 %v2768, 0.0
    %v2810 = vmax.f32 %v2706, 0.0
    %v2811 = vmax.f32 %v2771, 0.0
    %v2812 = vmax.f32 %v2709, 0.0
    %v2813 = vmax.f32 %v2774, 0.0
    %v2814 = vmax.f32 %v2712, 0.0
    %v2815 = vmax.f32 %v2777, 0.0
    %v2816 = vmax.f32 %v2715, 0.0
    %v2817 = vmax.f32 %v2780, 0.0
    %v2818 = vmax.f32 %v2718, 0.0
    %v2819 = vmax.f32 %v2783, 0.0
    %v2820 = vmax.f32 %v2721, 0.0
    %v2821 = vmax.f32 %v2786, 0.0
    %v2822 = vmax.f32 %v2724, 0.0
    %v2823 = vmax.f32 %v2789, 0.0
    %v2824 = vmax.f32 %v2727, 0.0
    %v2825 = vmax.f32 %v2792, 0.0
    %v2826 = vmax.f32 %v2608, %v2794
    %v2827 = vmax.f32 %v2609, %v2795
    %v2828 = vmax.f32 %v2610, %v2796
    %v2829 = vmax.f32 %v2611, %v2797
    %v2830 = vmax.f32 %v2612, %v2798
    %v2831 = vmax.f32 %v2613, %v2799
    %v2832 = vmax.f32 %v2614, %v2800
    %v2833 = vmax.f32 %v2615, %v2801
    %v2834 = vmax.f32 %v2616, %v2802
    %v2835 = vmax.f32 %v2617, %v2803
    %v2836 = vmax.f32 %v2618, %v2804
    %v2837 = vmax.f32 %v2619, %v2805
    %v2838 = vmax.f32 %v2620, %v2806
    %v2839 = vmax.f32 %v2621, %v2807
    %v2840 = vmax.f32 %v2622, %v2808
    %v2841 = vmax.f32 %v2623, %v2809
    %v2842 = vmax.f32 %v2624, %v2810
    %v2843 = vmax.f32 %v2625, %v2811
    %v2844 = vmax.f32 %v2626, %v2812
    %v2845 = vmax.f32 %v2627, %v2813
    %v2846 = vmax.f32 %v2628, %v2814
    %v2847 = vmax.f32 %v2629, %v2815
    %v2848 = vmax.f32 %v2630, %v2816
    %v2849 = vmax.f32 %v2631, %v2817
    %v2850 = vmax.f32 %v2632, %v2818
    %v2851 = vmax.f32 %v2633, %v2819
    %v2852 = vmax.f32 %v2634, %v2820
    %v2853 = vmax.f32 %v2635, %v2821
    %v2854 = vmax.f32 %v2636, %v2822
    %v2855 = vmax.f32 %v2637, %v2823
    %v2856 = vmax.f32 %v2638, %v2824
    %v2857 = vmax.f32 %v2639, %v2825
    %v2858 = vperm.slane %v41, 4
    %v2859 = vperm.slane %v42, 4
    %v2860 = vmul.f32 %v54, %v2858
    %v2861 = vmul.f32 %v54, %v2859
    %v2862 = vmul.f32 %v59, %v2858
    %v2863 = vmul.f32 %v59, %v2859
    %v2864 = vperm.slane %v47, 0
    %v2865 = vperm.slane %v48, 0
    %v2866 = vmul.f32 %v63, %v2864
    %v2867 = vmul.f32 %v63, %v2865
    %v2868 = vmul.f32 %v67, %v2864
    %v2869 = vmul.f32 %v67, %v2865
    %v2870 = vadd.f32 %v2860, %v2866
    %v2871 = vadd.f32 %v2861, %v2867
    %v2872 = vadd.f32 %v2862, %v2868
    %v2873 = vadd.f32 %v2863, %v2869
    %v2874 = vadd.f32 %v2870, %v74
    %v2875 = vadd.f32 %v2871, %v74
    %v2876 = vadd.f32 %v2872, %v79
    %v2877 = vadd.f32 %v2873, %v79
    %v2878 = vmax.f32 %v2874, 0.0
    %v2879 = vmax.f32 %v2875, 0.0
    %v2880 = vmax.f32 %v2876, 0.0
    %v2881 = vmax.f32 %v2877, 0.0
    %2882 = vmatpush.msra.mxu0 0.0
    %2883 = vmatpush.msra.mxu0 0.0
    %2884 = vmatpush.msra.mxu0 0.0
    %2885 = vmatpush.msra.mxu0 0.0
    %2886 = vmatpush.msra.mxu0 0.0
    %2887 = vmatpush.msra.mxu0 0.0
    %2888 = vmatpush.msra.mxu0 0.0
    %2889 = vmatpush.msra.mxu0 0.0
    %2890 = vmatpush.msra.mxu0 0.0
    %2891 = vmatpush.msra.mxu0 0.0
    %2892 = vmatpush.msra.mxu0 0.0
    %2893 = vmatpush.msra.mxu0 0.0
    %2894 = vmatpush.msra.mxu0 0.0
    %2895 = vmatpush.msra.mxu0 0.0
    %2896 = vmatpush.msra.mxu0 %v2880
    %2897 = vmatpush.msra.mxu0 %v2878
    %2898 = vmatmul.f32.gmra.mxu0 %v219
    %v2899 = vpop.f32.mrf.mxu0
    %v2900 = vadd.f32 %v116, %v2899
    %2901 = vmatmul.f32.gmra.mxu0 %v222
    %v2902 = vpop.f32.mrf.mxu0
    %v2903 = vadd.f32 %v121, %v2902
    %2904 = vmatmul.f32.gmra.mxu0 %v225
    %v2905 = vpop.f32.mrf.mxu0
    %v2906 = vadd.f32 %v126, %v2905
    %2907 = vmatmul.f32.gmra.mxu0 %v228
    %v2908 = vpop.f32.mrf.mxu0
    %v2909 = vadd.f32 %v131, %v2908
    %2910 = vmatmul.f32.gmra.mxu0 %v231
    %v2911 = vpop.f32.mrf.mxu0
    %v2912 = vadd.f32 %v136, %v2911
    %2913 = vmatmul.f32.gmra.mxu0 %v234
    %v2914 = vpop.f32.mrf.mxu0
    %v2915 = vadd.f32 %v141, %v2914
    %2916 = vmatmul.f32.gmra.mxu0 %v237
    %v2917 = vpop.f32.mrf.mxu0
    %v2918 = vadd.f32 %v146, %v2917
    %2919 = vmatmul.f32.gmra.mxu0 %v240
    %v2920 = vpop.f32.mrf.mxu0
    %v2921 = vadd.f32 %v151, %v2920
    %2922 = vmatmul.f32.gmra.mxu0 %v243
    %v2923 = vpop.f32.mrf.mxu0
    %v2924 = vadd.f32 %v156, %v2923
    %2925 = vmatmul.f32.gmra.mxu0 %v246
    %v2926 = vpop.f32.mrf.mxu0
    %v2927 = vadd.f32 %v161, %v2926
    %2928 = vmatmul.f32.gmra.mxu0 %v249
    %v2929 = vpop.f32.mrf.mxu0
    %v2930 = vadd.f32 %v166, %v2929
    %2931 = vmatmul.f32.gmra.mxu0 %v252
    %v2932 = vpop.f32.mrf.mxu0
    %v2933 = vadd.f32 %v171, %v2932
    %2934 = vmatmul.f32.gmra.mxu0 %v255
    %v2935 = vpop.f32.mrf.mxu0
    %v2936 = vadd.f32 %v176, %v2935
    %2937 = vmatmul.f32.gmra.mxu0 %v258
    %v2938 = vpop.f32.mrf.mxu0
    %v2939 = vadd.f32 %v181, %v2938
    %2940 = vmatmul.f32.gmra.mxu0 %v261
    %v2941 = vpop.f32.mrf.mxu0
    %v2942 = vadd.f32 %v186, %v2941
    %2943 = vmatmul.f32.gmra.mxu0 %v264
    %v2944 = vpop.f32.mrf.mxu0
    %v2945 = vadd.f32 %v191, %v2944
    %2946 = vdwg.mxu0
    %2947 = vmatpush.msra.mxu0 0.0
    %2948 = vmatpush.msra.mxu0 0.0
    %2949 = vmatpush.msra.mxu0 0.0
    %2950 = vmatpush.msra.mxu0 0.0
    %2951 = vmatpush.msra.mxu0 0.0
    %2952 = vmatpush.msra.mxu0 0.0
    %2953 = vmatpush.msra.mxu0 0.0
    %2954 = vmatpush.msra.mxu0 0.0
    %2955 = vmatpush.msra.mxu0 0.0
    %2956 = vmatpush.msra.mxu0 0.0
    %2957 = vmatpush.msra.mxu0 0.0
    %2958 = vmatpush.msra.mxu0 0.0
    %2959 = vmatpush.msra.mxu0 0.0
    %2960 = vmatpush.msra.mxu0 0.0
    %2961 = vmatpush.msra.mxu0 %v2881
    %2962 = vmatpush.msra.mxu0 %v2879
    %2963 = vmatmul.f32.gmra.mxu0 %v219
    %v2964 = vpop.f32.mrf.mxu0
    %v2965 = vadd.f32 %v116, %v2964
    %2966 = vmatmul.f32.gmra.mxu0 %v222
    %v2967 = vpop.f32.mrf.mxu0
    %v2968 = vadd.f32 %v121, %v2967
    %2969 = vmatmul.f32.gmra.mxu0 %v225
    %v2970 = vpop.f32.mrf.mxu0
    %v2971 = vadd.f32 %v126, %v2970
    %2972 = vmatmul.f32.gmra.mxu0 %v228
    %v2973 = vpop.f32.mrf.mxu0
    %v2974 = vadd.f32 %v131, %v2973
    %2975 = vmatmul.f32.gmra.mxu0 %v231
    %v2976 = vpop.f32.mrf.mxu0
    %v2977 = vadd.f32 %v136, %v2976
    %2978 = vmatmul.f32.gmra.mxu0 %v234
    %v2979 = vpop.f32.mrf.mxu0
    %v2980 = vadd.f32 %v141, %v2979
    %2981 = vmatmul.f32.gmra.mxu0 %v237
    %v2982 = vpop.f32.mrf.mxu0
    %v2983 = vadd.f32 %v146, %v2982
    %2984 = vmatmul.f32.gmra.mxu0 %v240
    %v2985 = vpop.f32.mrf.mxu0
    %v2986 = vadd.f32 %v151, %v2985
    %2987 = vmatmul.f32.gmra.mxu0 %v243
    %v2988 = vpop.f32.mrf.mxu0
    %v2989 = vadd.f32 %v156, %v2988
    %2990 = vmatmul.f32.gmra.mxu0 %v246
    %v2991 = vpop.f32.mrf.mxu0
    %v2992 = vadd.f32 %v161, %v2991
    %2993 = vmatmul.f32.gmra.mxu0 %v249
    %v2994 = vpop.f32.mrf.mxu0
    %v2995 = vadd.f32 %v166, %v2994
    %2996 = vmatmul.f32.gmra.mxu0 %v252
    %v2997 = vpop.f32.mrf.mxu0
    %v2998 = vadd.f32 %v171, %v2997
    %2999 = vmatmul.f32.gmra.mxu0 %v255
    %v3000 = vpop.f32.mrf.mxu0
    %v3001 = vadd.f32 %v176, %v3000
    %3002 = vmatmul.f32.gmra.mxu0 %v258
    %v3003 = vpop.f32.mrf.mxu0
    %v3004 = vadd.f32 %v181, %v3003
    %3005 = vmatmul.f32.gmra.mxu0 %v261
    %v3006 = vpop.f32.mrf.mxu0
    %v3007 = vadd.f32 %v186, %v3006
    %3008 = vmatmul.f32.gmra.mxu0 %v264
    %v3009 = vpop.f32.mrf.mxu0
    %v3010 = vadd.f32 %v191, %v3009
    %3011 = vdwg.mxu0
    %v3012 = vmax.f32 %v2900, 0.0
    %v3013 = vmax.f32 %v2965, 0.0
    %v3014 = vmax.f32 %v2903, 0.0
    %v3015 = vmax.f32 %v2968, 0.0
    %v3016 = vmax.f32 %v2906, 0.0
    %v3017 = vmax.f32 %v2971, 0.0
    %v3018 = vmax.f32 %v2909, 0.0
    %v3019 = vmax.f32 %v2974, 0.0
    %v3020 = vmax.f32 %v2912, 0.0
    %v3021 = vmax.f32 %v2977, 0.0
    %v3022 = vmax.f32 %v2915, 0.0
    %v3023 = vmax.f32 %v2980, 0.0
    %v3024 = vmax.f32 %v2918, 0.0
    %v3025 = vmax.f32 %v2983, 0.0
    %v3026 = vmax.f32 %v2921, 0.0
    %v3027 = vmax.f32 %v2986, 0.0
    %v3028 = vmax.f32 %v2924, 0.0
    %v3029 = vmax.f32 %v2989, 0.0
    %v3030 = vmax.f32 %v2927, 0.0
    %v3031 = vmax.f32 %v2992, 0.0
    %v3032 = vmax.f32 %v2930, 0.0
    %v3033 = vmax.f32 %v2995, 0.0
    %v3034 = vmax.f32 %v2933, 0.0
    %v3035 = vmax.f32 %v2998, 0.0
    %v3036 = vmax.f32 %v2936, 0.0
    %v3037 = vmax.f32 %v3001, 0.0
    %v3038 = vmax.f32 %v2939, 0.0
    %v3039 = vmax.f32 %v3004, 0.0
    %v3040 = vmax.f32 %v2942, 0.0
    %v3041 = vmax.f32 %v3007, 0.0
    %v3042 = vmax.f32 %v2945, 0.0
    %v3043 = vmax.f32 %v3010, 0.0
    %v3044 = vmax.f32 %v2826, %v3012
    %v3045 = vmax.f32 %v2827, %v3013
    %v3046 = vmax.f32 %v2828, %v3014
    %v3047 = vmax.f32 %v2829, %v3015
    %v3048 = vmax.f32 %v2830, %v3016
    %v3049 = vmax.f32 %v2831, %v3017
    %v3050 = vmax.f32 %v2832, %v3018
    %v3051 = vmax.f32 %v2833, %v3019
    %v3052 = vmax.f32 %v2834, %v3020
    %v3053 = vmax.f32 %v2835, %v3021
    %v3054 = vmax.f32 %v2836, %v3022
    %v3055 = vmax.f32 %v2837, %v3023
    %v3056 = vmax.f32 %v2838, %v3024
    %v3057 = vmax.f32 %v2839, %v3025
    %v3058 = vmax.f32 %v2840, %v3026
    %v3059 = vmax.f32 %v2841, %v3027
    %v3060 = vmax.f32 %v2842, %v3028
    %v3061 = vmax.f32 %v2843, %v3029
    %v3062 = vmax.f32 %v2844, %v3030
    %v3063 = vmax.f32 %v2845, %v3031
    %v3064 = vmax.f32 %v2846, %v3032
    %v3065 = vmax.f32 %v2847, %v3033
    %v3066 = vmax.f32 %v2848, %v3034
    %v3067 = vmax.f32 %v2849, %v3035
    %v3068 = vmax.f32 %v2850, %v3036
    %v3069 = vmax.f32 %v2851, %v3037
    %v3070 = vmax.f32 %v2852, %v3038
    %v3071 = vmax.f32 %v2853, %v3039
    %v3072 = vmax.f32 %v2854, %v3040
    %v3073 = vmax.f32 %v2855, %v3041
    %v3074 = vmax.f32 %v2856, %v3042
    %v3075 = vmax.f32 %v2857, %v3043
    %v3076 = vperm.slane %v41, 5
    %v3077 = vperm.slane %v42, 5
    %v3078 = vmul.f32 %v54, %v3076
    %v3079 = vmul.f32 %v54, %v3077
    %v3080 = vmul.f32 %v59, %v3076
    %v3081 = vmul.f32 %v59, %v3077
    %v3082 = vperm.slane %v47, 1
    %v3083 = vperm.slane %v48, 1
    %v3084 = vmul.f32 %v63, %v3082
    %v3085 = vmul.f32 %v63, %v3083
    %v3086 = vmul.f32 %v67, %v3082
    %v3087 = vmul.f32 %v67, %v3083
    %v3088 = vadd.f32 %v3078, %v3084
    %v3089 = vadd.f32 %v3079, %v3085
    %v3090 = vadd.f32 %v3080, %v3086
    %v3091 = vadd.f32 %v3081, %v3087
    %v3092 = vadd.f32 %v3088, %v74
    %v3093 = vadd.f32 %v3089, %v74
    %v3094 = vadd.f32 %v3090, %v79
    %v3095 = vadd.f32 %v3091, %v79
    %v3096 = vmax.f32 %v3092, 0.0
    %v3097 = vmax.f32 %v3093, 0.0
    %v3098 = vmax.f32 %v3094, 0.0
    %v3099 = vmax.f32 %v3095, 0.0
    %3100 = vmatpush.msra.mxu0 0.0
    %3101 = vmatpush.msra.mxu0 0.0
    %3102 = vmatpush.msra.mxu0 0.0
    %3103 = vmatpush.msra.mxu0 0.0
    %3104 = vmatpush.msra.mxu0 0.0
    %3105 = vmatpush.msra.mxu0 0.0
    %3106 = vmatpush.msra.mxu0 0.0
    %3107 = vmatpush.msra.mxu0 0.0
    %3108 = vmatpush.msra.mxu0 0.0
    %3109 = vmatpush.msra.mxu0 0.0
    %3110 = vmatpush.msra.mxu0 0.0
    %3111 = vmatpush.msra.mxu0 0.0
    %3112 = vmatpush.msra.mxu0 0.0
    %3113 = vmatpush.msra.mxu0 0.0
    %3114 = vmatpush.msra.mxu0 %v3098
    %3115 = vmatpush.msra.mxu0 %v3096
    %3116 = vmatmul.f32.gmra.mxu0 %v219
    %v3117 = vpop.f32.mrf.mxu0
    %v3118 = vadd.f32 %v116, %v3117
    %3119 = vmatmul.f32.gmra.mxu0 %v222
    %v3120 = vpop.f32.mrf.mxu0
    %v3121 = vadd.f32 %v121, %v3120
    %3122 = vmatmul.f32.gmra.mxu0 %v225
    %v3123 = vpop.f32.mrf.mxu0
    %v3124 = vadd.f32 %v126, %v3123
    %3125 = vmatmul.f32.gmra.mxu0 %v228
    %v3126 = vpop.f32.mrf.mxu0
    %v3127 = vadd.f32 %v131, %v3126
    %3128 = vmatmul.f32.gmra.mxu0 %v231
    %v3129 = vpop.f32.mrf.mxu0
    %v3130 = vadd.f32 %v136, %v3129
    %3131 = vmatmul.f32.gmra.mxu0 %v234
    %v3132 = vpop.f32.mrf.mxu0
    %v3133 = vadd.f32 %v141, %v3132
    %3134 = vmatmul.f32.gmra.mxu0 %v237
    %v3135 = vpop.f32.mrf.mxu0
    %v3136 = vadd.f32 %v146, %v3135
    %3137 = vmatmul.f32.gmra.mxu0 %v240
    %v3138 = vpop.f32.mrf.mxu0
    %v3139 = vadd.f32 %v151, %v3138
    %3140 = vmatmul.f32.gmra.mxu0 %v243
    %v3141 = vpop.f32.mrf.mxu0
    %v3142 = vadd.f32 %v156, %v3141
    %3143 = vmatmul.f32.gmra.mxu0 %v246
    %v3144 = vpop.f32.mrf.mxu0
    %v3145 = vadd.f32 %v161, %v3144
    %3146 = vmatmul.f32.gmra.mxu0 %v249
    %v3147 = vpop.f32.mrf.mxu0
    %v3148 = vadd.f32 %v166, %v3147
    %3149 = vmatmul.f32.gmra.mxu0 %v252
    %v3150 = vpop.f32.mrf.mxu0
    %v3151 = vadd.f32 %v171, %v3150
    %3152 = vmatmul.f32.gmra.mxu0 %v255
    %v3153 = vpop.f32.mrf.mxu0
    %v3154 = vadd.f32 %v176, %v3153
    %3155 = vmatmul.f32.gmra.mxu0 %v258
    %v3156 = vpop.f32.mrf.mxu0
    %v3157 = vadd.f32 %v181, %v3156
    %3158 = vmatmul.f32.gmra.mxu0 %v261
    %v3159 = vpop.f32.mrf.mxu0
    %v3160 = vadd.f32 %v186, %v3159
    %3161 = vmatmul.f32.gmra.mxu0 %v264
    %v3162 = vpop.f32.mrf.mxu0
    %v3163 = vadd.f32 %v191, %v3162
    %3164 = vdwg.mxu0
    %3165 = vmatpush.msra.mxu0 0.0
    %3166 = vmatpush.msra.mxu0 0.0
    %3167 = vmatpush.msra.mxu0 0.0
    %3168 = vmatpush.msra.mxu0 0.0
    %3169 = vmatpush.msra.mxu0 0.0
    %3170 = vmatpush.msra.mxu0 0.0
    %3171 = vmatpush.msra.mxu0 0.0
    %3172 = vmatpush.msra.mxu0 0.0
    %3173 = vmatpush.msra.mxu0 0.0
    %3174 = vmatpush.msra.mxu0 0.0
    %3175 = vmatpush.msra.mxu0 0.0
    %3176 = vmatpush.msra.mxu0 0.0
    %3177 = vmatpush.msra.mxu0 0.0
    %3178 = vmatpush.msra.mxu0 0.0
    %3179 = vmatpush.msra.mxu0 %v3099
    %3180 = vmatpush.msra.mxu0 %v3097
    %3181 = vmatmul.f32.gmra.mxu0 %v219
    %v3182 = vpop.f32.mrf.mxu0
    %v3183 = vadd.f32 %v116, %v3182
    %3184 = vmatmul.f32.gmra.mxu0 %v222
    %v3185 = vpop.f32.mrf.mxu0
    %v3186 = vadd.f32 %v121, %v3185
    %3187 = vmatmul.f32.gmra.mxu0 %v225
    %v3188 = vpop.f32.mrf.mxu0
    %v3189 = vadd.f32 %v126, %v3188
    %3190 = vmatmul.f32.gmra.mxu0 %v228
    %v3191 = vpop.f32.mrf.mxu0
    %v3192 = vadd.f32 %v131, %v3191
    %3193 = vmatmul.f32.gmra.mxu0 %v231
    %v3194 = vpop.f32.mrf.mxu0
    %v3195 = vadd.f32 %v136, %v3194
    %3196 = vmatmul.f32.gmra.mxu0 %v234
    %v3197 = vpop.f32.mrf.mxu0
    %v3198 = vadd.f32 %v141, %v3197
    %3199 = vmatmul.f32.gmra.mxu0 %v237
    %v3200 = vpop.f32.mrf.mxu0
    %v3201 = vadd.f32 %v146, %v3200
    %3202 = vmatmul.f32.gmra.mxu0 %v240
    %v3203 = vpop.f32.mrf.mxu0
    %v3204 = vadd.f32 %v151, %v3203
    %3205 = vmatmul.f32.gmra.mxu0 %v243
    %v3206 = vpop.f32.mrf.mxu0
    %v3207 = vadd.f32 %v156, %v3206
    %3208 = vmatmul.f32.gmra.mxu0 %v246
    %v3209 = vpop.f32.mrf.mxu0
    %v3210 = vadd.f32 %v161, %v3209
    %3211 = vmatmul.f32.gmra.mxu0 %v249
    %v3212 = vpop.f32.mrf.mxu0
    %v3213 = vadd.f32 %v166, %v3212
    %3214 = vmatmul.f32.gmra.mxu0 %v252
    %v3215 = vpop.f32.mrf.mxu0
    %v3216 = vadd.f32 %v171, %v3215
    %3217 = vmatmul.f32.gmra.mxu0 %v255
    %v3218 = vpop.f32.mrf.mxu0
    %v3219 = vadd.f32 %v176, %v3218
    %3220 = vmatmul.f32.gmra.mxu0 %v258
    %v3221 = vpop.f32.mrf.mxu0
    %v3222 = vadd.f32 %v181, %v3221
    %3223 = vmatmul.f32.gmra.mxu0 %v261
    %v3224 = vpop.f32.mrf.mxu0
    %v3225 = vadd.f32 %v186, %v3224
    %3226 = vmatmul.f32.gmra.mxu0 %v264
    %v3227 = vpop.f32.mrf.mxu0
    %v3228 = vadd.f32 %v191, %v3227
    %3229 = vdwg.mxu0
    %v3230 = vmax.f32 %v3118, 0.0
    %v3231 = vmax.f32 %v3183, 0.0
    %v3232 = vmax.f32 %v3121, 0.0
    %v3233 = vmax.f32 %v3186, 0.0
    %v3234 = vmax.f32 %v3124, 0.0
    %v3235 = vmax.f32 %v3189, 0.0
    %v3236 = vmax.f32 %v3127, 0.0
    %v3237 = vmax.f32 %v3192, 0.0
    %v3238 = vmax.f32 %v3130, 0.0
    %v3239 = vmax.f32 %v3195, 0.0
    %v3240 = vmax.f32 %v3133, 0.0
    %v3241 = vmax.f32 %v3198, 0.0
    %v3242 = vmax.f32 %v3136, 0.0
    %v3243 = vmax.f32 %v3201, 0.0
    %v3244 = vmax.f32 %v3139, 0.0
    %v3245 = vmax.f32 %v3204, 0.0
    %v3246 = vmax.f32 %v3142, 0.0
    %v3247 = vmax.f32 %v3207, 0.0
    %v3248 = vmax.f32 %v3145, 0.0
    %v3249 = vmax.f32 %v3210, 0.0
    %v3250 = vmax.f32 %v3148, 0.0
    %v3251 = vmax.f32 %v3213, 0.0
    %v3252 = vmax.f32 %v3151, 0.0
    %v3253 = vmax.f32 %v3216, 0.0
    %v3254 = vmax.f32 %v3154, 0.0
    %v3255 = vmax.f32 %v3219, 0.0
    %v3256 = vmax.f32 %v3157, 0.0
    %v3257 = vmax.f32 %v3222, 0.0
    %v3258 = vmax.f32 %v3160, 0.0
    %v3259 = vmax.f32 %v3225, 0.0
    %v3260 = vmax.f32 %v3163, 0.0
    %v3261 = vmax.f32 %v3228, 0.0
    %v3262 = vmax.f32 %v3044, %v3230
    %v3263 = vmax.f32 %v3045, %v3231
    %v3264 = vmax.f32 %v3046, %v3232
    %v3265 = vmax.f32 %v3047, %v3233
    %v3266 = vmax.f32 %v3048, %v3234
    %v3267 = vmax.f32 %v3049, %v3235
    %v3268 = vmax.f32 %v3050, %v3236
    %v3269 = vmax.f32 %v3051, %v3237
    %v3270 = vmax.f32 %v3052, %v3238
    %v3271 = vmax.f32 %v3053, %v3239
    %v3272 = vmax.f32 %v3054, %v3240
    %v3273 = vmax.f32 %v3055, %v3241
    %v3274 = vmax.f32 %v3056, %v3242
    %v3275 = vmax.f32 %v3057, %v3243
    %v3276 = vmax.f32 %v3058, %v3244
    %v3277 = vmax.f32 %v3059, %v3245
    %v3278 = vmax.f32 %v3060, %v3246
    %v3279 = vmax.f32 %v3061, %v3247
    %v3280 = vmax.f32 %v3062, %v3248
    %v3281 = vmax.f32 %v3063, %v3249
    %v3282 = vmax.f32 %v3064, %v3250
    %v3283 = vmax.f32 %v3065, %v3251
    %v3284 = vmax.f32 %v3066, %v3252
    %v3285 = vmax.f32 %v3067, %v3253
    %v3286 = vmax.f32 %v3068, %v3254
    %v3287 = vmax.f32 %v3069, %v3255
    %v3288 = vmax.f32 %v3070, %v3256
    %v3289 = vmax.f32 %v3071, %v3257
    %v3290 = vmax.f32 %v3072, %v3258
    %v3291 = vmax.f32 %v3073, %v3259
    %v3292 = vmax.f32 %v3074, %v3260
    %v3293 = vmax.f32 %v3075, %v3261
    %v3294 = vperm.slane %v41, 6
    %v3295 = vperm.slane %v42, 6
    %v3296 = vmul.f32 %v54, %v3294
    %v3297 = vmul.f32 %v54, %v3295
    %v3298 = vmul.f32 %v59, %v3294
    %v3299 = vmul.f32 %v59, %v3295
    %v3300 = vperm.slane %v47, 2
    %v3301 = vperm.slane %v48, 2
    %v3302 = vmul.f32 %v63, %v3300
    %v3303 = vmul.f32 %v63, %v3301
    %v3304 = vmul.f32 %v67, %v3300
    %v3305 = vmul.f32 %v67, %v3301
    %v3306 = vadd.f32 %v3296, %v3302
    %v3307 = vadd.f32 %v3297, %v3303
    %v3308 = vadd.f32 %v3298, %v3304
    %v3309 = vadd.f32 %v3299, %v3305
    %v3310 = vadd.f32 %v3306, %v74
    %v3311 = vadd.f32 %v3307, %v74
    %v3312 = vadd.f32 %v3308, %v79
    %v3313 = vadd.f32 %v3309, %v79
    %v3314 = vmax.f32 %v3310, 0.0
    %v3315 = vmax.f32 %v3311, 0.0
    %v3316 = vmax.f32 %v3312, 0.0
    %v3317 = vmax.f32 %v3313, 0.0
    %3318 = vmatpush.msra.mxu0 0.0
    %3319 = vmatpush.msra.mxu0 0.0
    %3320 = vmatpush.msra.mxu0 0.0
    %3321 = vmatpush.msra.mxu0 0.0
    %3322 = vmatpush.msra.mxu0 0.0
    %3323 = vmatpush.msra.mxu0 0.0
    %3324 = vmatpush.msra.mxu0 0.0
    %3325 = vmatpush.msra.mxu0 0.0
    %3326 = vmatpush.msra.mxu0 0.0
    %3327 = vmatpush.msra.mxu0 0.0
    %3328 = vmatpush.msra.mxu0 0.0
    %3329 = vmatpush.msra.mxu0 0.0
    %3330 = vmatpush.msra.mxu0 0.0
    %3331 = vmatpush.msra.mxu0 0.0
    %3332 = vmatpush.msra.mxu0 %v3316
    %3333 = vmatpush.msra.mxu0 %v3314
    %3334 = vmatmul.f32.gmra.mxu0 %v219
    %v3335 = vpop.f32.mrf.mxu0
    %v3336 = vadd.f32 %v116, %v3335
    %3337 = vmatmul.f32.gmra.mxu0 %v222
    %v3338 = vpop.f32.mrf.mxu0
    %v3339 = vadd.f32 %v121, %v3338
    %3340 = vmatmul.f32.gmra.mxu0 %v225
    %v3341 = vpop.f32.mrf.mxu0
    %v3342 = vadd.f32 %v126, %v3341
    %3343 = vmatmul.f32.gmra.mxu0 %v228
    %v3344 = vpop.f32.mrf.mxu0
    %v3345 = vadd.f32 %v131, %v3344
    %3346 = vmatmul.f32.gmra.mxu0 %v231
    %v3347 = vpop.f32.mrf.mxu0
    %v3348 = vadd.f32 %v136, %v3347
    %3349 = vmatmul.f32.gmra.mxu0 %v234
    %v3350 = vpop.f32.mrf.mxu0
    %v3351 = vadd.f32 %v141, %v3350
    %3352 = vmatmul.f32.gmra.mxu0 %v237
    %v3353 = vpop.f32.mrf.mxu0
    %v3354 = vadd.f32 %v146, %v3353
    %3355 = vmatmul.f32.gmra.mxu0 %v240
    %v3356 = vpop.f32.mrf.mxu0
    %v3357 = vadd.f32 %v151, %v3356
    %3358 = vmatmul.f32.gmra.mxu0 %v243
    %v3359 = vpop.f32.mrf.mxu0
    %v3360 = vadd.f32 %v156, %v3359
    %3361 = vmatmul.f32.gmra.mxu0 %v246
    %v3362 = vpop.f32.mrf.mxu0
    %v3363 = vadd.f32 %v161, %v3362
    %3364 = vmatmul.f32.gmra.mxu0 %v249
    %v3365 = vpop.f32.mrf.mxu0
    %v3366 = vadd.f32 %v166, %v3365
    %3367 = vmatmul.f32.gmra.mxu0 %v252
    %v3368 = vpop.f32.mrf.mxu0
    %v3369 = vadd.f32 %v171, %v3368
    %3370 = vmatmul.f32.gmra.mxu0 %v255
    %v3371 = vpop.f32.mrf.mxu0
    %v3372 = vadd.f32 %v176, %v3371
    %3373 = vmatmul.f32.gmra.mxu0 %v258
    %v3374 = vpop.f32.mrf.mxu0
    %v3375 = vadd.f32 %v181, %v3374
    %3376 = vmatmul.f32.gmra.mxu0 %v261
    %v3377 = vpop.f32.mrf.mxu0
    %v3378 = vadd.f32 %v186, %v3377
    %3379 = vmatmul.f32.gmra.mxu0 %v264
    %v3380 = vpop.f32.mrf.mxu0
    %v3381 = vadd.f32 %v191, %v3380
    %3382 = vdwg.mxu0
    %3383 = vmatpush.msra.mxu0 0.0
    %3384 = vmatpush.msra.mxu0 0.0
    %3385 = vmatpush.msra.mxu0 0.0
    %3386 = vmatpush.msra.mxu0 0.0
    %3387 = vmatpush.msra.mxu0 0.0
    %3388 = vmatpush.msra.mxu0 0.0
    %3389 = vmatpush.msra.mxu0 0.0
    %3390 = vmatpush.msra.mxu0 0.0
    %3391 = vmatpush.msra.mxu0 0.0
    %3392 = vmatpush.msra.mxu0 0.0
    %3393 = vmatpush.msra.mxu0 0.0
    %3394 = vmatpush.msra.mxu0 0.0
    %3395 = vmatpush.msra.mxu0 0.0
    %3396 = vmatpush.msra.mxu0 0.0
    %3397 = vmatpush.msra.mxu0 %v3317
    %3398 = vmatpush.msra.mxu0 %v3315
    %3399 = vmatmul.f32.gmra.mxu0 %v219
    %v3400 = vpop.f32.mrf.mxu0
    %v3401 = vadd.f32 %v116, %v3400
    %3402 = vmatmul.f32.gmra.mxu0 %v222
    %v3403 = vpop.f32.mrf.mxu0
    %v3404 = vadd.f32 %v121, %v3403
    %3405 = vmatmul.f32.gmra.mxu0 %v225
    %v3406 = vpop.f32.mrf.mxu0
    %v3407 = vadd.f32 %v126, %v3406
    %3408 = vmatmul.f32.gmra.mxu0 %v228
    %v3409 = vpop.f32.mrf.mxu0
    %v3410 = vadd.f32 %v131, %v3409
    %3411 = vmatmul.f32.gmra.mxu0 %v231
    %v3412 = vpop.f32.mrf.mxu0
    %v3413 = vadd.f32 %v136, %v3412
    %3414 = vmatmul.f32.gmra.mxu0 %v234
    %v3415 = vpop.f32.mrf.mxu0
    %v3416 = vadd.f32 %v141, %v3415
    %3417 = vmatmul.f32.gmra.mxu0 %v237
    %v3418 = vpop.f32.mrf.mxu0
    %v3419 = vadd.f32 %v146, %v3418
    %3420 = vmatmul.f32.gmra.mxu0 %v240
    %v3421 = vpop.f32.mrf.mxu0
    %v3422 = vadd.f32 %v151, %v3421
    %3423 = vmatmul.f32.gmra.mxu0 %v243
    %v3424 = vpop.f32.mrf.mxu0
    %v3425 = vadd.f32 %v156, %v3424
    %3426 = vmatmul.f32.gmra.mxu0 %v246
    %v3427 = vpop.f32.mrf.mxu0
    %v3428 = vadd.f32 %v161, %v3427
    %3429 = vmatmul.f32.gmra.mxu0 %v249
    %v3430 = vpop.f32.mrf.mxu0
    %v3431 = vadd.f32 %v166, %v3430
    %3432 = vmatmul.f32.gmra.mxu0 %v252
    %v3433 = vpop.f32.mrf.mxu0
    %v3434 = vadd.f32 %v171, %v3433
    %3435 = vmatmul.f32.gmra.mxu0 %v255
    %v3436 = vpop.f32.mrf.mxu0
    %v3437 = vadd.f32 %v176, %v3436
    %3438 = vmatmul.f32.gmra.mxu0 %v258
    %v3439 = vpop.f32.mrf.mxu0
    %v3440 = vadd.f32 %v181, %v3439
    %3441 = vmatmul.f32.gmra.mxu0 %v261
    %v3442 = vpop.f32.mrf.mxu0
    %v3443 = vadd.f32 %v186, %v3442
    %3444 = vmatmul.f32.gmra.mxu0 %v264
    %v3445 = vpop.f32.mrf.mxu0
    %v3446 = vadd.f32 %v191, %v3445
    %3447 = vdwg.mxu0
    %v3448 = vmax.f32 %v3336, 0.0
    %v3449 = vmax.f32 %v3401, 0.0
    %v3450 = vmax.f32 %v3339, 0.0
    %v3451 = vmax.f32 %v3404, 0.0
    %v3452 = vmax.f32 %v3342, 0.0
    %v3453 = vmax.f32 %v3407, 0.0
    %v3454 = vmax.f32 %v3345, 0.0
    %v3455 = vmax.f32 %v3410, 0.0
    %v3456 = vmax.f32 %v3348, 0.0
    %v3457 = vmax.f32 %v3413, 0.0
    %v3458 = vmax.f32 %v3351, 0.0
    %v3459 = vmax.f32 %v3416, 0.0
    %v3460 = vmax.f32 %v3354, 0.0
    %v3461 = vmax.f32 %v3419, 0.0
    %v3462 = vmax.f32 %v3357, 0.0
    %v3463 = vmax.f32 %v3422, 0.0
    %v3464 = vmax.f32 %v3360, 0.0
    %v3465 = vmax.f32 %v3425, 0.0
    %v3466 = vmax.f32 %v3363, 0.0
    %v3467 = vmax.f32 %v3428, 0.0
    %v3468 = vmax.f32 %v3366, 0.0
    %v3469 = vmax.f32 %v3431, 0.0
    %v3470 = vmax.f32 %v3369, 0.0
    %v3471 = vmax.f32 %v3434, 0.0
    %v3472 = vmax.f32 %v3372, 0.0
    %v3473 = vmax.f32 %v3437, 0.0
    %v3474 = vmax.f32 %v3375, 0.0
    %v3475 = vmax.f32 %v3440, 0.0
    %v3476 = vmax.f32 %v3378, 0.0
    %v3477 = vmax.f32 %v3443, 0.0
    %v3478 = vmax.f32 %v3381, 0.0
    %v3479 = vmax.f32 %v3446, 0.0
    %v3480 = vmax.f32 %v3262, %v3448
    %v3481 = vmax.f32 %v3263, %v3449
    %v3482 = vmax.f32 %v3264, %v3450
    %v3483 = vmax.f32 %v3265, %v3451
    %v3484 = vmax.f32 %v3266, %v3452
    %v3485 = vmax.f32 %v3267, %v3453
    %v3486 = vmax.f32 %v3268, %v3454
    %v3487 = vmax.f32 %v3269, %v3455
    %v3488 = vmax.f32 %v3270, %v3456
    %v3489 = vmax.f32 %v3271, %v3457
    %v3490 = vmax.f32 %v3272, %v3458
    %v3491 = vmax.f32 %v3273, %v3459
    %v3492 = vmax.f32 %v3274, %v3460
    %v3493 = vmax.f32 %v3275, %v3461
    %v3494 = vmax.f32 %v3276, %v3462
    %v3495 = vmax.f32 %v3277, %v3463
    %v3496 = vmax.f32 %v3278, %v3464
    %v3497 = vmax.f32 %v3279, %v3465
    %v3498 = vmax.f32 %v3280, %v3466
    %v3499 = vmax.f32 %v3281, %v3467
    %v3500 = vmax.f32 %v3282, %v3468
    %v3501 = vmax.f32 %v3283, %v3469
    %v3502 = vmax.f32 %v3284, %v3470
    %v3503 = vmax.f32 %v3285, %v3471
    %v3504 = vmax.f32 %v3286, %v3472
    %v3505 = vmax.f32 %v3287, %v3473
    %v3506 = vmax.f32 %v3288, %v3474
    %v3507 = vmax.f32 %v3289, %v3475
    %v3508 = vmax.f32 %v3290, %v3476
    %v3509 = vmax.f32 %v3291, %v3477
    %v3510 = vmax.f32 %v3292, %v3478
    %v3511 = vmax.f32 %v3293, %v3479
    %v3512 = vperm.slane %v41, 7
    %v3513 = vperm.slane %v42, 7
    %v3514 = vmul.f32 %v54, %v3512
    %v3515 = vmul.f32 %v54, %v3513
    %v3516 = vmul.f32 %v59, %v3512
    %v3517 = vmul.f32 %v59, %v3513
    %v3518 = vperm.slane %v47, 3
    %v3519 = vperm.slane %v48, 3
    %v3520 = vmul.f32 %v63, %v3518
    %v3521 = vmul.f32 %v63, %v3519
    %v3522 = vmul.f32 %v67, %v3518
    %v3523 = vmul.f32 %v67, %v3519
    %v3524 = vadd.f32 %v3514, %v3520
    %v3525 = vadd.f32 %v3515, %v3521
    %v3526 = vadd.f32 %v3516, %v3522
    %v3527 = vadd.f32 %v3517, %v3523
    %v3528 = vadd.f32 %v3524, %v74
    %v3529 = vadd.f32 %v3525, %v74
    %v3530 = vadd.f32 %v3526, %v79
    %v3531 = vadd.f32 %v3527, %v79
    %v3532 = vmax.f32 %v3528, 0.0
    %v3533 = vmax.f32 %v3529, 0.0
    %v3534 = vmax.f32 %v3530, 0.0
    %v3535 = vmax.f32 %v3531, 0.0
    %3536 = vmatpush.msra.mxu0 0.0
    %3537 = vmatpush.msra.mxu0 0.0
    %3538 = vmatpush.msra.mxu0 0.0
    %3539 = vmatpush.msra.mxu0 0.0
    %3540 = vmatpush.msra.mxu0 0.0
    %3541 = vmatpush.msra.mxu0 0.0
    %3542 = vmatpush.msra.mxu0 0.0
    %3543 = vmatpush.msra.mxu0 0.0
    %3544 = vmatpush.msra.mxu0 0.0
    %3545 = vmatpush.msra.mxu0 0.0
    %3546 = vmatpush.msra.mxu0 0.0
    %3547 = vmatpush.msra.mxu0 0.0
    %3548 = vmatpush.msra.mxu0 0.0
    %3549 = vmatpush.msra.mxu0 0.0
    %3550 = vmatpush.msra.mxu0 %v3534
    %3551 = vmatpush.msra.mxu0 %v3532
    %3552 = vmatmul.f32.gmra.mxu0 %v219
    %v3553 = vpop.f32.mrf.mxu0
    %v3554 = vadd.f32 %v116, %v3553
    %3555 = vmatmul.f32.gmra.mxu0 %v222
    %v3556 = vpop.f32.mrf.mxu0
    %v3557 = vadd.f32 %v121, %v3556
    %3558 = vmatmul.f32.gmra.mxu0 %v225
    %v3559 = vpop.f32.mrf.mxu0
    %v3560 = vadd.f32 %v126, %v3559
    %3561 = vmatmul.f32.gmra.mxu0 %v228
    %v3562 = vpop.f32.mrf.mxu0
    %v3563 = vadd.f32 %v131, %v3562
    %3564 = vmatmul.f32.gmra.mxu0 %v231
    %v3565 = vpop.f32.mrf.mxu0
    %v3566 = vadd.f32 %v136, %v3565
    %3567 = vmatmul.f32.gmra.mxu0 %v234
    %v3568 = vpop.f32.mrf.mxu0
    %v3569 = vadd.f32 %v141, %v3568
    %3570 = vmatmul.f32.gmra.mxu0 %v237
    %v3571 = vpop.f32.mrf.mxu0
    %v3572 = vadd.f32 %v146, %v3571
    %3573 = vmatmul.f32.gmra.mxu0 %v240
    %v3574 = vpop.f32.mrf.mxu0
    %v3575 = vadd.f32 %v151, %v3574
    %3576 = vmatmul.f32.gmra.mxu0 %v243
    %v3577 = vpop.f32.mrf.mxu0
    %v3578 = vadd.f32 %v156, %v3577
    %3579 = vmatmul.f32.gmra.mxu0 %v246
    %v3580 = vpop.f32.mrf.mxu0
    %v3581 = vadd.f32 %v161, %v3580
    %3582 = vmatmul.f32.gmra.mxu0 %v249
    %v3583 = vpop.f32.mrf.mxu0
    %v3584 = vadd.f32 %v166, %v3583
    %3585 = vmatmul.f32.gmra.mxu0 %v252
    %v3586 = vpop.f32.mrf.mxu0
    %v3587 = vadd.f32 %v171, %v3586
    %3588 = vmatmul.f32.gmra.mxu0 %v255
    %v3589 = vpop.f32.mrf.mxu0
    %v3590 = vadd.f32 %v176, %v3589
    %3591 = vmatmul.f32.gmra.mxu0 %v258
    %v3592 = vpop.f32.mrf.mxu0
    %v3593 = vadd.f32 %v181, %v3592
    %3594 = vmatmul.f32.gmra.mxu0 %v261
    %v3595 = vpop.f32.mrf.mxu0
    %v3596 = vadd.f32 %v186, %v3595
    %3597 = vmatmul.f32.gmra.mxu0 %v264
    %v3598 = vpop.f32.mrf.mxu0
    %v3599 = vadd.f32 %v191, %v3598
    %3600 = vdwg.mxu0
    %3601 = vmatpush.msra.mxu0 0.0
    %3602 = vmatpush.msra.mxu0 0.0
    %3603 = vmatpush.msra.mxu0 0.0
    %3604 = vmatpush.msra.mxu0 0.0
    %3605 = vmatpush.msra.mxu0 0.0
    %3606 = vmatpush.msra.mxu0 0.0
    %3607 = vmatpush.msra.mxu0 0.0
    %3608 = vmatpush.msra.mxu0 0.0
    %3609 = vmatpush.msra.mxu0 0.0
    %3610 = vmatpush.msra.mxu0 0.0
    %3611 = vmatpush.msra.mxu0 0.0
    %3612 = vmatpush.msra.mxu0 0.0
    %3613 = vmatpush.msra.mxu0 0.0
    %3614 = vmatpush.msra.mxu0 0.0
    %3615 = vmatpush.msra.mxu0 %v3535
    %3616 = vmatpush.msra.mxu0 %v3533
    %3617 = vmatmul.f32.gmra.mxu0 %v219
    %v3618 = vpop.f32.mrf.mxu0
    %v3619 = vadd.f32 %v116, %v3618
    %3620 = vmatmul.f32.gmra.mxu0 %v222
    %v3621 = vpop.f32.mrf.mxu0
    %v3622 = vadd.f32 %v121, %v3621
    %3623 = vmatmul.f32.gmra.mxu0 %v225
    %v3624 = vpop.f32.mrf.mxu0
    %v3625 = vadd.f32 %v126, %v3624
    %3626 = vmatmul.f32.gmra.mxu0 %v228
    %v3627 = vpop.f32.mrf.mxu0
    %v3628 = vadd.f32 %v131, %v3627
    %3629 = vmatmul.f32.gmra.mxu0 %v231
    %v3630 = vpop.f32.mrf.mxu0
    %v3631 = vadd.f32 %v136, %v3630
    %3632 = vmatmul.f32.gmra.mxu0 %v234
    %v3633 = vpop.f32.mrf.mxu0
    %v3634 = vadd.f32 %v141, %v3633
    %3635 = vmatmul.f32.gmra.mxu0 %v237
    %v3636 = vpop.f32.mrf.mxu0
    %v3637 = vadd.f32 %v146, %v3636
    %3638 = vmatmul.f32.gmra.mxu0 %v240
    %v3639 = vpop.f32.mrf.mxu0
    %v3640 = vadd.f32 %v151, %v3639
    %3641 = vmatmul.f32.gmra.mxu0 %v243
    %v3642 = vpop.f32.mrf.mxu0
    %v3643 = vadd.f32 %v156, %v3642
    %3644 = vmatmul.f32.gmra.mxu0 %v246
    %v3645 = vpop.f32.mrf.mxu0
    %v3646 = vadd.f32 %v161, %v3645
    %3647 = vmatmul.f32.gmra.mxu0 %v249
    %v3648 = vpop.f32.mrf.mxu0
    %v3649 = vadd.f32 %v166, %v3648
    %3650 = vmatmul.f32.gmra.mxu0 %v252
    %v3651 = vpop.f32.mrf.mxu0
    %v3652 = vadd.f32 %v171, %v3651
    %3653 = vmatmul.f32.gmra.mxu0 %v255
    %v3654 = vpop.f32.mrf.mxu0
    %v3655 = vadd.f32 %v176, %v3654
    %3656 = vmatmul.f32.gmra.mxu0 %v258
    %v3657 = vpop.f32.mrf.mxu0
    %v3658 = vadd.f32 %v181, %v3657
    %3659 = vmatmul.f32.gmra.mxu0 %v261
    %v3660 = vpop.f32.mrf.mxu0
    %v3661 = vadd.f32 %v186, %v3660
    %3662 = vmatmul.f32.gmra.mxu0 %v264
    %v3663 = vpop.f32.mrf.mxu0
    %v3664 = vadd.f32 %v191, %v3663
    %3665 = vdwg.mxu0
    %v3666 = vmax.f32 %v3554, 0.0
    %v3667 = vmax.f32 %v3619, 0.0
    %v3668 = vmax.f32 %v3557, 0.0
    %v3669 = vmax.f32 %v3622, 0.0
    %v3670 = vmax.f32 %v3560, 0.0
    %v3671 = vmax.f32 %v3625, 0.0
    %v3672 = vmax.f32 %v3563, 0.0
    %v3673 = vmax.f32 %v3628, 0.0
    %v3674 = vmax.f32 %v3566, 0.0
    %v3675 = vmax.f32 %v3631, 0.0
    %v3676 = vmax.f32 %v3569, 0.0
    %v3677 = vmax.f32 %v3634, 0.0
    %v3678 = vmax.f32 %v3572, 0.0
    %v3679 = vmax.f32 %v3637, 0.0
    %v3680 = vmax.f32 %v3575, 0.0
    %v3681 = vmax.f32 %v3640, 0.0
    %v3682 = vmax.f32 %v3578, 0.0
    %v3683 = vmax.f32 %v3643, 0.0
    %v3684 = vmax.f32 %v3581, 0.0
    %v3685 = vmax.f32 %v3646, 0.0
    %v3686 = vmax.f32 %v3584, 0.0
    %v3687 = vmax.f32 %v3649, 0.0
    %v3688 = vmax.f32 %v3587, 0.0
    %v3689 = vmax.f32 %v3652, 0.0
    %v3690 = vmax.f32 %v3590, 0.0
    %v3691 = vmax.f32 %v3655, 0.0
    %v3692 = vmax.f32 %v3593, 0.0
    %v3693 = vmax.f32 %v3658, 0.0
    %v3694 = vmax.f32 %v3596, 0.0
    %v3695 = vmax.f32 %v3661, 0.0
    %v3696 = vmax.f32 %v3599, 0.0
    %v3697 = vmax.f32 %v3664, 0.0
    %v3698 = vmax.f32 %v3480, %v3666
    %v3699 = vmax.f32 %v3481, %v3667
    %v3700 = vmax.f32 %v3482, %v3668
    %v3701 = vmax.f32 %v3483, %v3669
    %v3702 = vmax.f32 %v3484, %v3670
    %v3703 = vmax.f32 %v3485, %v3671
    %v3704 = vmax.f32 %v3486, %v3672
    %v3705 = vmax.f32 %v3487, %v3673
    %v3706 = vmax.f32 %v3488, %v3674
    %v3707 = vmax.f32 %v3489, %v3675
    %v3708 = vmax.f32 %v3490, %v3676
    %v3709 = vmax.f32 %v3491, %v3677
    %v3710 = vmax.f32 %v3492, %v3678
    %v3711 = vmax.f32 %v3493, %v3679
    %v3712 = vmax.f32 %v3494, %v3680
    %v3713 = vmax.f32 %v3495, %v3681
    %v3714 = vmax.f32 %v3496, %v3682
    %v3715 = vmax.f32 %v3497, %v3683
    %v3716 = vmax.f32 %v3498, %v3684
    %v3717 = vmax.f32 %v3499, %v3685
    %v3718 = vmax.f32 %v3500, %v3686
    %v3719 = vmax.f32 %v3501, %v3687
    %v3720 = vmax.f32 %v3502, %v3688
    %v3721 = vmax.f32 %v3503, %v3689
    %v3722 = vmax.f32 %v3504, %v3690
    %v3723 = vmax.f32 %v3505, %v3691
    %v3724 = vmax.f32 %v3506, %v3692
    %v3725 = vmax.f32 %v3507, %v3693
    %v3726 = vmax.f32 %v3508, %v3694
    %v3727 = vmax.f32 %v3509, %v3695
    %v3728 = vmax.f32 %v3510, %v3696
    %v3729 = vmax.f32 %v3511, %v3697
    %v3730 = vperm.slane %v43, 0
    %v3731 = vperm.slane %v44, 0
    %v3732 = vmul.f32 %v54, %v3730
    %v3733 = vmul.f32 %v54, %v3731
    %v3734 = vmul.f32 %v59, %v3730
    %v3735 = vmul.f32 %v59, %v3731
    %v3736 = vperm.slane %v47, 4
    %v3737 = vperm.slane %v48, 4
    %v3738 = vmul.f32 %v63, %v3736
    %v3739 = vmul.f32 %v63, %v3737
    %v3740 = vmul.f32 %v67, %v3736
    %v3741 = vmul.f32 %v67, %v3737
    %v3742 = vadd.f32 %v3732, %v3738
    %v3743 = vadd.f32 %v3733, %v3739
    %v3744 = vadd.f32 %v3734, %v3740
    %v3745 = vadd.f32 %v3735, %v3741
    %v3746 = vadd.f32 %v3742, %v74
    %v3747 = vadd.f32 %v3743, %v74
    %v3748 = vadd.f32 %v3744, %v79
    %v3749 = vadd.f32 %v3745, %v79
    %v3750 = vmax.f32 %v3746, 0.0
    %v3751 = vmax.f32 %v3747, 0.0
    %v3752 = vmax.f32 %v3748, 0.0
    %v3753 = vmax.f32 %v3749, 0.0
    %3754 = vmatpush.msra.mxu0 0.0
    %3755 = vmatpush.msra.mxu0 0.0
    %3756 = vmatpush.msra.mxu0 0.0
    %3757 = vmatpush.msra.mxu0 0.0
    %3758 = vmatpush.msra.mxu0 0.0
    %3759 = vmatpush.msra.mxu0 0.0
    %3760 = vmatpush.msra.mxu0 0.0
    %3761 = vmatpush.msra.mxu0 0.0
    %3762 = vmatpush.msra.mxu0 0.0
    %3763 = vmatpush.msra.mxu0 0.0
    %3764 = vmatpush.msra.mxu0 0.0
    %3765 = vmatpush.msra.mxu0 0.0
    %3766 = vmatpush.msra.mxu0 0.0
    %3767 = vmatpush.msra.mxu0 0.0
    %3768 = vmatpush.msra.mxu0 %v3752
    %3769 = vmatpush.msra.mxu0 %v3750
    %3770 = vmatmul.f32.gmra.mxu0 %v219
    %v3771 = vpop.f32.mrf.mxu0
    %v3772 = vadd.f32 %v116, %v3771
    %3773 = vmatmul.f32.gmra.mxu0 %v222
    %v3774 = vpop.f32.mrf.mxu0
    %v3775 = vadd.f32 %v121, %v3774
    %3776 = vmatmul.f32.gmra.mxu0 %v225
    %v3777 = vpop.f32.mrf.mxu0
    %v3778 = vadd.f32 %v126, %v3777
    %3779 = vmatmul.f32.gmra.mxu0 %v228
    %v3780 = vpop.f32.mrf.mxu0
    %v3781 = vadd.f32 %v131, %v3780
    %3782 = vmatmul.f32.gmra.mxu0 %v231
    %v3783 = vpop.f32.mrf.mxu0
    %v3784 = vadd.f32 %v136, %v3783
    %3785 = vmatmul.f32.gmra.mxu0 %v234
    %v3786 = vpop.f32.mrf.mxu0
    %v3787 = vadd.f32 %v141, %v3786
    %3788 = vmatmul.f32.gmra.mxu0 %v237
    %v3789 = vpop.f32.mrf.mxu0
    %v3790 = vadd.f32 %v146, %v3789
    %3791 = vmatmul.f32.gmra.mxu0 %v240
    %v3792 = vpop.f32.mrf.mxu0
    %v3793 = vadd.f32 %v151, %v3792
    %3794 = vmatmul.f32.gmra.mxu0 %v243
    %v3795 = vpop.f32.mrf.mxu0
    %v3796 = vadd.f32 %v156, %v3795
    %3797 = vmatmul.f32.gmra.mxu0 %v246
    %v3798 = vpop.f32.mrf.mxu0
    %v3799 = vadd.f32 %v161, %v3798
    %3800 = vmatmul.f32.gmra.mxu0 %v249
    %v3801 = vpop.f32.mrf.mxu0
    %v3802 = vadd.f32 %v166, %v3801
    %3803 = vmatmul.f32.gmra.mxu0 %v252
    %v3804 = vpop.f32.mrf.mxu0
    %v3805 = vadd.f32 %v171, %v3804
    %3806 = vmatmul.f32.gmra.mxu0 %v255
    %v3807 = vpop.f32.mrf.mxu0
    %v3808 = vadd.f32 %v176, %v3807
    %3809 = vmatmul.f32.gmra.mxu0 %v258
    %v3810 = vpop.f32.mrf.mxu0
    %v3811 = vadd.f32 %v181, %v3810
    %3812 = vmatmul.f32.gmra.mxu0 %v261
    %v3813 = vpop.f32.mrf.mxu0
    %v3814 = vadd.f32 %v186, %v3813
    %3815 = vmatmul.f32.gmra.mxu0 %v264
    %v3816 = vpop.f32.mrf.mxu0
    %v3817 = vadd.f32 %v191, %v3816
    %3818 = vdwg.mxu0
    %3819 = vmatpush.msra.mxu0 0.0
    %3820 = vmatpush.msra.mxu0 0.0
    %3821 = vmatpush.msra.mxu0 0.0
    %3822 = vmatpush.msra.mxu0 0.0
    %3823 = vmatpush.msra.mxu0 0.0
    %3824 = vmatpush.msra.mxu0 0.0
    %3825 = vmatpush.msra.mxu0 0.0
    %3826 = vmatpush.msra.mxu0 0.0
    %3827 = vmatpush.msra.mxu0 0.0
    %3828 = vmatpush.msra.mxu0 0.0
    %3829 = vmatpush.msra.mxu0 0.0
    %3830 = vmatpush.msra.mxu0 0.0
    %3831 = vmatpush.msra.mxu0 0.0
    %3832 = vmatpush.msra.mxu0 0.0
    %3833 = vmatpush.msra.mxu0 %v3753
    %3834 = vmatpush.msra.mxu0 %v3751
    %3835 = vmatmul.f32.gmra.mxu0 %v219
    %v3836 = vpop.f32.mrf.mxu0
    %v3837 = vadd.f32 %v116, %v3836
    %3838 = vmatmul.f32.gmra.mxu0 %v222
    %v3839 = vpop.f32.mrf.mxu0
    %v3840 = vadd.f32 %v121, %v3839
    %3841 = vmatmul.f32.gmra.mxu0 %v225
    %v3842 = vpop.f32.mrf.mxu0
    %v3843 = vadd.f32 %v126, %v3842
    %3844 = vmatmul.f32.gmra.mxu0 %v228
    %v3845 = vpop.f32.mrf.mxu0
    %v3846 = vadd.f32 %v131, %v3845
    %3847 = vmatmul.f32.gmra.mxu0 %v231
    %v3848 = vpop.f32.mrf.mxu0
    %v3849 = vadd.f32 %v136, %v3848
    %3850 = vmatmul.f32.gmra.mxu0 %v234
    %v3851 = vpop.f32.mrf.mxu0
    %v3852 = vadd.f32 %v141, %v3851
    %3853 = vmatmul.f32.gmra.mxu0 %v237
    %v3854 = vpop.f32.mrf.mxu0
    %v3855 = vadd.f32 %v146, %v3854
    %3856 = vmatmul.f32.gmra.mxu0 %v240
    %v3857 = vpop.f32.mrf.mxu0
    %v3858 = vadd.f32 %v151, %v3857
    %3859 = vmatmul.f32.gmra.mxu0 %v243
    %v3860 = vpop.f32.mrf.mxu0
    %v3861 = vadd.f32 %v156, %v3860
    %3862 = vmatmul.f32.gmra.mxu0 %v246
    %v3863 = vpop.f32.mrf.mxu0
    %v3864 = vadd.f32 %v161, %v3863
    %3865 = vmatmul.f32.gmra.mxu0 %v249
    %v3866 = vpop.f32.mrf.mxu0
    %v3867 = vadd.f32 %v166, %v3866
    %3868 = vmatmul.f32.gmra.mxu0 %v252
    %v3869 = vpop.f32.mrf.mxu0
    %v3870 = vadd.f32 %v171, %v3869
    %3871 = vmatmul.f32.gmra.mxu0 %v255
    %v3872 = vpop.f32.mrf.mxu0
    %v3873 = vadd.f32 %v176, %v3872
    %3874 = vmatmul.f32.gmra.mxu0 %v258
    %v3875 = vpop.f32.mrf.mxu0
    %v3876 = vadd.f32 %v181, %v3875
    %3877 = vmatmul.f32.gmra.mxu0 %v261
    %v3878 = vpop.f32.mrf.mxu0
    %v3879 = vadd.f32 %v186, %v3878
    %3880 = vmatmul.f32.gmra.mxu0 %v264
    %v3881 = vpop.f32.mrf.mxu0
    %v3882 = vadd.f32 %v191, %v3881
    %3883 = vdwg.mxu0
    %v3884 = vmax.f32 %v3772, 0.0
    %v3885 = vmax.f32 %v3837, 0.0
    %v3886 = vmax.f32 %v3775, 0.0
    %v3887 = vmax.f32 %v3840, 0.0
    %v3888 = vmax.f32 %v3778, 0.0
    %v3889 = vmax.f32 %v3843, 0.0
    %v3890 = vmax.f32 %v3781, 0.0
    %v3891 = vmax.f32 %v3846, 0.0
    %v3892 = vmax.f32 %v3784, 0.0
    %v3893 = vmax.f32 %v3849, 0.0
    %v3894 = vmax.f32 %v3787, 0.0
    %v3895 = vmax.f32 %v3852, 0.0
    %v3896 = vmax.f32 %v3790, 0.0
    %v3897 = vmax.f32 %v3855, 0.0
    %v3898 = vmax.f32 %v3793, 0.0
    %v3899 = vmax.f32 %v3858, 0.0
    %v3900 = vmax.f32 %v3796, 0.0
    %v3901 = vmax.f32 %v3861, 0.0
    %v3902 = vmax.f32 %v3799, 0.0
    %v3903 = vmax.f32 %v3864, 0.0
    %v3904 = vmax.f32 %v3802, 0.0
    %v3905 = vmax.f32 %v3867, 0.0
    %v3906 = vmax.f32 %v3805, 0.0
    %v3907 = vmax.f32 %v3870, 0.0
    %v3908 = vmax.f32 %v3808, 0.0
    %v3909 = vmax.f32 %v3873, 0.0
    %v3910 = vmax.f32 %v3811, 0.0
    %v3911 = vmax.f32 %v3876, 0.0
    %v3912 = vmax.f32 %v3814, 0.0
    %v3913 = vmax.f32 %v3879, 0.0
    %v3914 = vmax.f32 %v3817, 0.0
    %v3915 = vmax.f32 %v3882, 0.0
    %v3916 = vmax.f32 %v3698, %v3884
    %v3917 = vmax.f32 %v3699, %v3885
    %v3918 = vmax.f32 %v3700, %v3886
    %v3919 = vmax.f32 %v3701, %v3887
    %v3920 = vmax.f32 %v3702, %v3888
    %v3921 = vmax.f32 %v3703, %v3889
    %v3922 = vmax.f32 %v3704, %v3890
    %v3923 = vmax.f32 %v3705, %v3891
    %v3924 = vmax.f32 %v3706, %v3892
    %v3925 = vmax.f32 %v3707, %v3893
    %v3926 = vmax.f32 %v3708, %v3894
    %v3927 = vmax.f32 %v3709, %v3895
    %v3928 = vmax.f32 %v3710, %v3896
    %v3929 = vmax.f32 %v3711, %v3897
    %v3930 = vmax.f32 %v3712, %v3898
    %v3931 = vmax.f32 %v3713, %v3899
    %v3932 = vmax.f32 %v3714, %v3900
    %v3933 = vmax.f32 %v3715, %v3901
    %v3934 = vmax.f32 %v3716, %v3902
    %v3935 = vmax.f32 %v3717, %v3903
    %v3936 = vmax.f32 %v3718, %v3904
    %v3937 = vmax.f32 %v3719, %v3905
    %v3938 = vmax.f32 %v3720, %v3906
    %v3939 = vmax.f32 %v3721, %v3907
    %v3940 = vmax.f32 %v3722, %v3908
    %v3941 = vmax.f32 %v3723, %v3909
    %v3942 = vmax.f32 %v3724, %v3910
    %v3943 = vmax.f32 %v3725, %v3911
    %v3944 = vmax.f32 %v3726, %v3912
    %v3945 = vmax.f32 %v3727, %v3913
    %v3946 = vmax.f32 %v3728, %v3914
    %v3947 = vmax.f32 %v3729, %v3915
    %v3948 = vperm.slane %v43, 1
    %v3949 = vperm.slane %v44, 1
    %v3950 = vmul.f32 %v54, %v3948
    %v3951 = vmul.f32 %v54, %v3949
    %v3952 = vmul.f32 %v59, %v3948
    %v3953 = vmul.f32 %v59, %v3949
    %v3954 = vperm.slane %v47, 5
    %v3955 = vperm.slane %v48, 5
    %v3956 = vmul.f32 %v63, %v3954
    %v3957 = vmul.f32 %v63, %v3955
    %v3958 = vmul.f32 %v67, %v3954
    %v3959 = vmul.f32 %v67, %v3955
    %v3960 = vadd.f32 %v3950, %v3956
    %v3961 = vadd.f32 %v3951, %v3957
    %v3962 = vadd.f32 %v3952, %v3958
    %v3963 = vadd.f32 %v3953, %v3959
    %v3964 = vadd.f32 %v3960, %v74
    %v3965 = vadd.f32 %v3961, %v74
    %v3966 = vadd.f32 %v3962, %v79
    %v3967 = vadd.f32 %v3963, %v79
    %v3968 = vmax.f32 %v3964, 0.0
    %v3969 = vmax.f32 %v3965, 0.0
    %v3970 = vmax.f32 %v3966, 0.0
    %v3971 = vmax.f32 %v3967, 0.0
    %3972 = vmatpush.msra.mxu0 0.0
    %3973 = vmatpush.msra.mxu0 0.0
    %3974 = vmatpush.msra.mxu0 0.0
    %3975 = vmatpush.msra.mxu0 0.0
    %3976 = vmatpush.msra.mxu0 0.0
    %3977 = vmatpush.msra.mxu0 0.0
    %3978 = vmatpush.msra.mxu0 0.0
    %3979 = vmatpush.msra.mxu0 0.0
    %3980 = vmatpush.msra.mxu0 0.0
    %3981 = vmatpush.msra.mxu0 0.0
    %3982 = vmatpush.msra.mxu0 0.0
    %3983 = vmatpush.msra.mxu0 0.0
    %3984 = vmatpush.msra.mxu0 0.0
    %3985 = vmatpush.msra.mxu0 0.0
    %3986 = vmatpush.msra.mxu0 %v3970
    %3987 = vmatpush.msra.mxu0 %v3968
    %3988 = vmatmul.f32.gmra.mxu0 %v219
    %v3989 = vpop.f32.mrf.mxu0
    %v3990 = vadd.f32 %v116, %v3989
    %3991 = vmatmul.f32.gmra.mxu0 %v222
    %v3992 = vpop.f32.mrf.mxu0
    %v3993 = vadd.f32 %v121, %v3992
    %3994 = vmatmul.f32.gmra.mxu0 %v225
    %v3995 = vpop.f32.mrf.mxu0
    %v3996 = vadd.f32 %v126, %v3995
    %3997 = vmatmul.f32.gmra.mxu0 %v228
    %v3998 = vpop.f32.mrf.mxu0
    %v3999 = vadd.f32 %v131, %v3998
    %4000 = vmatmul.f32.gmra.mxu0 %v231
    %v4001 = vpop.f32.mrf.mxu0
    %v4002 = vadd.f32 %v136, %v4001
    %4003 = vmatmul.f32.gmra.mxu0 %v234
    %v4004 = vpop.f32.mrf.mxu0
    %v4005 = vadd.f32 %v141, %v4004
    %4006 = vmatmul.f32.gmra.mxu0 %v237
    %v4007 = vpop.f32.mrf.mxu0
    %v4008 = vadd.f32 %v146, %v4007
    %4009 = vmatmul.f32.gmra.mxu0 %v240
    %v4010 = vpop.f32.mrf.mxu0
    %v4011 = vadd.f32 %v151, %v4010
    %4012 = vmatmul.f32.gmra.mxu0 %v243
    %v4013 = vpop.f32.mrf.mxu0
    %v4014 = vadd.f32 %v156, %v4013
    %4015 = vmatmul.f32.gmra.mxu0 %v246
    %v4016 = vpop.f32.mrf.mxu0
    %v4017 = vadd.f32 %v161, %v4016
    %4018 = vmatmul.f32.gmra.mxu0 %v249
    %v4019 = vpop.f32.mrf.mxu0
    %v4020 = vadd.f32 %v166, %v4019
    %4021 = vmatmul.f32.gmra.mxu0 %v252
    %v4022 = vpop.f32.mrf.mxu0
    %v4023 = vadd.f32 %v171, %v4022
    %4024 = vmatmul.f32.gmra.mxu0 %v255
    %v4025 = vpop.f32.mrf.mxu0
    %v4026 = vadd.f32 %v176, %v4025
    %4027 = vmatmul.f32.gmra.mxu0 %v258
    %v4028 = vpop.f32.mrf.mxu0
    %v4029 = vadd.f32 %v181, %v4028
    %4030 = vmatmul.f32.gmra.mxu0 %v261
    %v4031 = vpop.f32.mrf.mxu0
    %v4032 = vadd.f32 %v186, %v4031
    %4033 = vmatmul.f32.gmra.mxu0 %v264
    %v4034 = vpop.f32.mrf.mxu0
    %v4035 = vadd.f32 %v191, %v4034
    %4036 = vdwg.mxu0
    %4037 = vmatpush.msra.mxu0 0.0
    %4038 = vmatpush.msra.mxu0 0.0
    %4039 = vmatpush.msra.mxu0 0.0
    %4040 = vmatpush.msra.mxu0 0.0
    %4041 = vmatpush.msra.mxu0 0.0
    %4042 = vmatpush.msra.mxu0 0.0
    %4043 = vmatpush.msra.mxu0 0.0
    %4044 = vmatpush.msra.mxu0 0.0
    %4045 = vmatpush.msra.mxu0 0.0
    %4046 = vmatpush.msra.mxu0 0.0
    %4047 = vmatpush.msra.mxu0 0.0
    %4048 = vmatpush.msra.mxu0 0.0
    %4049 = vmatpush.msra.mxu0 0.0
    %4050 = vmatpush.msra.mxu0 0.0
    %4051 = vmatpush.msra.mxu0 %v3971
    %4052 = vmatpush.msra.mxu0 %v3969
    %4053 = vmatmul.f32.gmra.mxu0 %v219
    %v4054 = vpop.f32.mrf.mxu0
    %v4055 = vadd.f32 %v116, %v4054
    %4056 = vmatmul.f32.gmra.mxu0 %v222
    %v4057 = vpop.f32.mrf.mxu0
    %v4058 = vadd.f32 %v121, %v4057
    %4059 = vmatmul.f32.gmra.mxu0 %v225
    %v4060 = vpop.f32.mrf.mxu0
    %v4061 = vadd.f32 %v126, %v4060
    %4062 = vmatmul.f32.gmra.mxu0 %v228
    %v4063 = vpop.f32.mrf.mxu0
    %v4064 = vadd.f32 %v131, %v4063
    %4065 = vmatmul.f32.gmra.mxu0 %v231
    %v4066 = vpop.f32.mrf.mxu0
    %v4067 = vadd.f32 %v136, %v4066
    %4068 = vmatmul.f32.gmra.mxu0 %v234
    %v4069 = vpop.f32.mrf.mxu0
    %v4070 = vadd.f32 %v141, %v4069
    %4071 = vmatmul.f32.gmra.mxu0 %v237
    %v4072 = vpop.f32.mrf.mxu0
    %v4073 = vadd.f32 %v146, %v4072
    %4074 = vmatmul.f32.gmra.mxu0 %v240
    %v4075 = vpop.f32.mrf.mxu0
    %v4076 = vadd.f32 %v151, %v4075
    %4077 = vmatmul.f32.gmra.mxu0 %v243
    %v4078 = vpop.f32.mrf.mxu0
    %v4079 = vadd.f32 %v156, %v4078
    %4080 = vmatmul.f32.gmra.mxu0 %v246
    %v4081 = vpop.f32.mrf.mxu0
    %v4082 = vadd.f32 %v161, %v4081
    %4083 = vmatmul.f32.gmra.mxu0 %v249
    %v4084 = vpop.f32.mrf.mxu0
    %v4085 = vadd.f32 %v166, %v4084
    %4086 = vmatmul.f32.gmra.mxu0 %v252
    %v4087 = vpop.f32.mrf.mxu0
    %v4088 = vadd.f32 %v171, %v4087
    %4089 = vmatmul.f32.gmra.mxu0 %v255
    %v4090 = vpop.f32.mrf.mxu0
    %v4091 = vadd.f32 %v176, %v4090
    %4092 = vmatmul.f32.gmra.mxu0 %v258
    %v4093 = vpop.f32.mrf.mxu0
    %v4094 = vadd.f32 %v181, %v4093
    %4095 = vmatmul.f32.gmra.mxu0 %v261
    %v4096 = vpop.f32.mrf.mxu0
    %v4097 = vadd.f32 %v186, %v4096
    %4098 = vmatmul.f32.gmra.mxu0 %v264
    %v4099 = vpop.f32.mrf.mxu0
    %v4100 = vadd.f32 %v191, %v4099
    %4101 = vdwg.mxu0
    %v4102 = vmax.f32 %v3990, 0.0
    %v4103 = vmax.f32 %v4055, 0.0
    %v4104 = vmax.f32 %v3993, 0.0
    %v4105 = vmax.f32 %v4058, 0.0
    %v4106 = vmax.f32 %v3996, 0.0
    %v4107 = vmax.f32 %v4061, 0.0
    %v4108 = vmax.f32 %v3999, 0.0
    %v4109 = vmax.f32 %v4064, 0.0
    %v4110 = vmax.f32 %v4002, 0.0
    %v4111 = vmax.f32 %v4067, 0.0
    %v4112 = vmax.f32 %v4005, 0.0
    %v4113 = vmax.f32 %v4070, 0.0
    %v4114 = vmax.f32 %v4008, 0.0
    %v4115 = vmax.f32 %v4073, 0.0
    %v4116 = vmax.f32 %v4011, 0.0
    %v4117 = vmax.f32 %v4076, 0.0
    %v4118 = vmax.f32 %v4014, 0.0
    %v4119 = vmax.f32 %v4079, 0.0
    %v4120 = vmax.f32 %v4017, 0.0
    %v4121 = vmax.f32 %v4082, 0.0
    %v4122 = vmax.f32 %v4020, 0.0
    %v4123 = vmax.f32 %v4085, 0.0
    %v4124 = vmax.f32 %v4023, 0.0
    %v4125 = vmax.f32 %v4088, 0.0
    %v4126 = vmax.f32 %v4026, 0.0
    %v4127 = vmax.f32 %v4091, 0.0
    %v4128 = vmax.f32 %v4029, 0.0
    %v4129 = vmax.f32 %v4094, 0.0
    %v4130 = vmax.f32 %v4032, 0.0
    %v4131 = vmax.f32 %v4097, 0.0
    %v4132 = vmax.f32 %v4035, 0.0
    %v4133 = vmax.f32 %v4100, 0.0
    %v4134 = vmax.f32 %v3916, %v4102
    %v4135 = vmax.f32 %v3917, %v4103
    %v4136 = vmax.f32 %v3918, %v4104
    %v4137 = vmax.f32 %v3919, %v4105
    %v4138 = vmax.f32 %v3920, %v4106
    %v4139 = vmax.f32 %v3921, %v4107
    %v4140 = vmax.f32 %v3922, %v4108
    %v4141 = vmax.f32 %v3923, %v4109
    %v4142 = vmax.f32 %v3924, %v4110
    %v4143 = vmax.f32 %v3925, %v4111
    %v4144 = vmax.f32 %v3926, %v4112
    %v4145 = vmax.f32 %v3927, %v4113
    %v4146 = vmax.f32 %v3928, %v4114
    %v4147 = vmax.f32 %v3929, %v4115
    %v4148 = vmax.f32 %v3930, %v4116
    %v4149 = vmax.f32 %v3931, %v4117
    %v4150 = vmax.f32 %v3932, %v4118
    %v4151 = vmax.f32 %v3933, %v4119
    %v4152 = vmax.f32 %v3934, %v4120
    %v4153 = vmax.f32 %v3935, %v4121
    %v4154 = vmax.f32 %v3936, %v4122
    %v4155 = vmax.f32 %v3937, %v4123
    %v4156 = vmax.f32 %v3938, %v4124
    %v4157 = vmax.f32 %v3939, %v4125
    %v4158 = vmax.f32 %v3940, %v4126
    %v4159 = vmax.f32 %v3941, %v4127
    %v4160 = vmax.f32 %v3942, %v4128
    %v4161 = vmax.f32 %v3943, %v4129
    %v4162 = vmax.f32 %v3944, %v4130
    %v4163 = vmax.f32 %v3945, %v4131
    %v4164 = vmax.f32 %v3946, %v4132
    %v4165 = vmax.f32 %v3947, %v4133
    %v4166 = vperm.slane %v43, 2
    %v4167 = vperm.slane %v44, 2
    %v4168 = vmul.f32 %v54, %v4166
    %v4169 = vmul.f32 %v54, %v4167
    %v4170 = vmul.f32 %v59, %v4166
    %v4171 = vmul.f32 %v59, %v4167
    %v4172 = vperm.slane %v47, 6
    %v4173 = vperm.slane %v48, 6
    %v4174 = vmul.f32 %v63, %v4172
    %v4175 = vmul.f32 %v63, %v4173
    %v4176 = vmul.f32 %v67, %v4172
    %v4177 = vmul.f32 %v67, %v4173
    %v4178 = vadd.f32 %v4168, %v4174
    %v4179 = vadd.f32 %v4169, %v4175
    %v4180 = vadd.f32 %v4170, %v4176
    %v4181 = vadd.f32 %v4171, %v4177
    %v4182 = vadd.f32 %v4178, %v74
    %v4183 = vadd.f32 %v4179, %v74
    %v4184 = vadd.f32 %v4180, %v79
    %v4185 = vadd.f32 %v4181, %v79
    %v4186 = vmax.f32 %v4182, 0.0
    %v4187 = vmax.f32 %v4183, 0.0
    %v4188 = vmax.f32 %v4184, 0.0
    %v4189 = vmax.f32 %v4185, 0.0
    %4190 = vmatpush.msra.mxu0 0.0
    %4191 = vmatpush.msra.mxu0 0.0
    %4192 = vmatpush.msra.mxu0 0.0
    %4193 = vmatpush.msra.mxu0 0.0
    %4194 = vmatpush.msra.mxu0 0.0
    %4195 = vmatpush.msra.mxu0 0.0
    %4196 = vmatpush.msra.mxu0 0.0
    %4197 = vmatpush.msra.mxu0 0.0
    %4198 = vmatpush.msra.mxu0 0.0
    %4199 = vmatpush.msra.mxu0 0.0
    %4200 = vmatpush.msra.mxu0 0.0
    %4201 = vmatpush.msra.mxu0 0.0
    %4202 = vmatpush.msra.mxu0 0.0
    %4203 = vmatpush.msra.mxu0 0.0
    %4204 = vmatpush.msra.mxu0 %v4188
    %4205 = vmatpush.msra.mxu0 %v4186
    %4206 = vmatmul.f32.gmra.mxu0 %v219
    %v4207 = vpop.f32.mrf.mxu0
    %v4208 = vadd.f32 %v116, %v4207
    %4209 = vmatmul.f32.gmra.mxu0 %v222
    %v4210 = vpop.f32.mrf.mxu0
    %v4211 = vadd.f32 %v121, %v4210
    %4212 = vmatmul.f32.gmra.mxu0 %v225
    %v4213 = vpop.f32.mrf.mxu0
    %v4214 = vadd.f32 %v126, %v4213
    %4215 = vmatmul.f32.gmra.mxu0 %v228
    %v4216 = vpop.f32.mrf.mxu0
    %v4217 = vadd.f32 %v131, %v4216
    %4218 = vmatmul.f32.gmra.mxu0 %v231
    %v4219 = vpop.f32.mrf.mxu0
    %v4220 = vadd.f32 %v136, %v4219
    %4221 = vmatmul.f32.gmra.mxu0 %v234
    %v4222 = vpop.f32.mrf.mxu0
    %v4223 = vadd.f32 %v141, %v4222
    %4224 = vmatmul.f32.gmra.mxu0 %v237
    %v4225 = vpop.f32.mrf.mxu0
    %v4226 = vadd.f32 %v146, %v4225
    %4227 = vmatmul.f32.gmra.mxu0 %v240
    %v4228 = vpop.f32.mrf.mxu0
    %v4229 = vadd.f32 %v151, %v4228
    %4230 = vmatmul.f32.gmra.mxu0 %v243
    %v4231 = vpop.f32.mrf.mxu0
    %v4232 = vadd.f32 %v156, %v4231
    %4233 = vmatmul.f32.gmra.mxu0 %v246
    %v4234 = vpop.f32.mrf.mxu0
    %v4235 = vadd.f32 %v161, %v4234
    %4236 = vmatmul.f32.gmra.mxu0 %v249
    %v4237 = vpop.f32.mrf.mxu0
    %v4238 = vadd.f32 %v166, %v4237
    %4239 = vmatmul.f32.gmra.mxu0 %v252
    %v4240 = vpop.f32.mrf.mxu0
    %v4241 = vadd.f32 %v171, %v4240
    %4242 = vmatmul.f32.gmra.mxu0 %v255
    %v4243 = vpop.f32.mrf.mxu0
    %v4244 = vadd.f32 %v176, %v4243
    %4245 = vmatmul.f32.gmra.mxu0 %v258
    %v4246 = vpop.f32.mrf.mxu0
    %v4247 = vadd.f32 %v181, %v4246
    %4248 = vmatmul.f32.gmra.mxu0 %v261
    %v4249 = vpop.f32.mrf.mxu0
    %v4250 = vadd.f32 %v186, %v4249
    %4251 = vmatmul.f32.gmra.mxu0 %v264
    %v4252 = vpop.f32.mrf.mxu0
    %v4253 = vadd.f32 %v191, %v4252
    %4254 = vdwg.mxu0
    %4255 = vmatpush.msra.mxu0 0.0
    %4256 = vmatpush.msra.mxu0 0.0
    %4257 = vmatpush.msra.mxu0 0.0
    %4258 = vmatpush.msra.mxu0 0.0
    %4259 = vmatpush.msra.mxu0 0.0
    %4260 = vmatpush.msra.mxu0 0.0
    %4261 = vmatpush.msra.mxu0 0.0
    %4262 = vmatpush.msra.mxu0 0.0
    %4263 = vmatpush.msra.mxu0 0.0
    %4264 = vmatpush.msra.mxu0 0.0
    %4265 = vmatpush.msra.mxu0 0.0
    %4266 = vmatpush.msra.mxu0 0.0
    %4267 = vmatpush.msra.mxu0 0.0
    %4268 = vmatpush.msra.mxu0 0.0
    %4269 = vmatpush.msra.mxu0 %v4189
    %4270 = vmatpush.msra.mxu0 %v4187
    %4271 = vmatmul.f32.gmra.mxu0 %v219
    %v4272 = vpop.f32.mrf.mxu0
    %v4273 = vadd.f32 %v116, %v4272
    %4274 = vmatmul.f32.gmra.mxu0 %v222
    %v4275 = vpop.f32.mrf.mxu0
    %v4276 = vadd.f32 %v121, %v4275
    %4277 = vmatmul.f32.gmra.mxu0 %v225
    %v4278 = vpop.f32.mrf.mxu0
    %v4279 = vadd.f32 %v126, %v4278
    %4280 = vmatmul.f32.gmra.mxu0 %v228
    %v4281 = vpop.f32.mrf.mxu0
    %v4282 = vadd.f32 %v131, %v4281
    %4283 = vmatmul.f32.gmra.mxu0 %v231
    %v4284 = vpop.f32.mrf.mxu0
    %v4285 = vadd.f32 %v136, %v4284
    %4286 = vmatmul.f32.gmra.mxu0 %v234
    %v4287 = vpop.f32.mrf.mxu0
    %v4288 = vadd.f32 %v141, %v4287
    %4289 = vmatmul.f32.gmra.mxu0 %v237
    %v4290 = vpop.f32.mrf.mxu0
    %v4291 = vadd.f32 %v146, %v4290
    %4292 = vmatmul.f32.gmra.mxu0 %v240
    %v4293 = vpop.f32.mrf.mxu0
    %v4294 = vadd.f32 %v151, %v4293
    %4295 = vmatmul.f32.gmra.mxu0 %v243
    %v4296 = vpop.f32.mrf.mxu0
    %v4297 = vadd.f32 %v156, %v4296
    %4298 = vmatmul.f32.gmra.mxu0 %v246
    %v4299 = vpop.f32.mrf.mxu0
    %v4300 = vadd.f32 %v161, %v4299
    %4301 = vmatmul.f32.gmra.mxu0 %v249
    %v4302 = vpop.f32.mrf.mxu0
    %v4303 = vadd.f32 %v166, %v4302
    %4304 = vmatmul.f32.gmra.mxu0 %v252
    %v4305 = vpop.f32.mrf.mxu0
    %v4306 = vadd.f32 %v171, %v4305
    %4307 = vmatmul.f32.gmra.mxu0 %v255
    %v4308 = vpop.f32.mrf.mxu0
    %v4309 = vadd.f32 %v176, %v4308
    %4310 = vmatmul.f32.gmra.mxu0 %v258
    %v4311 = vpop.f32.mrf.mxu0
    %v4312 = vadd.f32 %v181, %v4311
    %4313 = vmatmul.f32.gmra.mxu0 %v261
    %v4314 = vpop.f32.mrf.mxu0
    %v4315 = vadd.f32 %v186, %v4314
    %4316 = vmatmul.f32.gmra.mxu0 %v264
    %v4317 = vpop.f32.mrf.mxu0
    %v4318 = vadd.f32 %v191, %v4317
    %4319 = vdwg.mxu0
    %v4320 = vmax.f32 %v4208, 0.0
    %v4321 = vmax.f32 %v4273, 0.0
    %v4322 = vmax.f32 %v4211, 0.0
    %v4323 = vmax.f32 %v4276, 0.0
    %v4324 = vmax.f32 %v4214, 0.0
    %v4325 = vmax.f32 %v4279, 0.0
    %v4326 = vmax.f32 %v4217, 0.0
    %v4327 = vmax.f32 %v4282, 0.0
    %v4328 = vmax.f32 %v4220, 0.0
    %v4329 = vmax.f32 %v4285, 0.0
    %v4330 = vmax.f32 %v4223, 0.0
    %v4331 = vmax.f32 %v4288, 0.0
    %v4332 = vmax.f32 %v4226, 0.0
    %v4333 = vmax.f32 %v4291, 0.0
    %v4334 = vmax.f32 %v4229, 0.0
    %v4335 = vmax.f32 %v4294, 0.0
    %v4336 = vmax.f32 %v4232, 0.0
    %v4337 = vmax.f32 %v4297, 0.0
    %v4338 = vmax.f32 %v4235, 0.0
    %v4339 = vmax.f32 %v4300, 0.0
    %v4340 = vmax.f32 %v4238, 0.0
    %v4341 = vmax.f32 %v4303, 0.0
    %v4342 = vmax.f32 %v4241, 0.0
    %v4343 = vmax.f32 %v4306, 0.0
    %v4344 = vmax.f32 %v4244, 0.0
    %v4345 = vmax.f32 %v4309, 0.0
    %v4346 = vmax.f32 %v4247, 0.0
    %v4347 = vmax.f32 %v4312, 0.0
    %v4348 = vmax.f32 %v4250, 0.0
    %v4349 = vmax.f32 %v4315, 0.0
    %v4350 = vmax.f32 %v4253, 0.0
    %v4351 = vmax.f32 %v4318, 0.0
    %v4352 = vmax.f32 %v4134, %v4320
    %v4353 = vmax.f32 %v4135, %v4321
    %v4354 = vmax.f32 %v4136, %v4322
    %v4355 = vmax.f32 %v4137, %v4323
    %v4356 = vmax.f32 %v4138, %v4324
    %v4357 = vmax.f32 %v4139, %v4325
    %v4358 = vmax.f32 %v4140, %v4326
    %v4359 = vmax.f32 %v4141, %v4327
    %v4360 = vmax.f32 %v4142, %v4328
    %v4361 = vmax.f32 %v4143, %v4329
    %v4362 = vmax.f32 %v4144, %v4330
    %v4363 = vmax.f32 %v4145, %v4331
    %v4364 = vmax.f32 %v4146, %v4332
    %v4365 = vmax.f32 %v4147, %v4333
    %v4366 = vmax.f32 %v4148, %v4334
    %v4367 = vmax.f32 %v4149, %v4335
    %v4368 = vmax.f32 %v4150, %v4336
    %v4369 = vmax.f32 %v4151, %v4337
    %v4370 = vmax.f32 %v4152, %v4338
    %v4371 = vmax.f32 %v4153, %v4339
    %v4372 = vmax.f32 %v4154, %v4340
    %v4373 = vmax.f32 %v4155, %v4341
    %v4374 = vmax.f32 %v4156, %v4342
    %v4375 = vmax.f32 %v4157, %v4343
    %v4376 = vmax.f32 %v4158, %v4344
    %v4377 = vmax.f32 %v4159, %v4345
    %v4378 = vmax.f32 %v4160, %v4346
    %v4379 = vmax.f32 %v4161, %v4347
    %v4380 = vmax.f32 %v4162, %v4348
    %v4381 = vmax.f32 %v4163, %v4349
    %v4382 = vmax.f32 %v4164, %v4350
    %v4383 = vmax.f32 %v4165, %v4351
    %v4384 = vperm.slane %v43, 3
    %v4385 = vperm.slane %v44, 3
    %v4386 = vmul.f32 %v54, %v4384
    %v4387 = vmul.f32 %v54, %v4385
    %v4388 = vmul.f32 %v59, %v4384
    %v4389 = vmul.f32 %v59, %v4385
    %v4390 = vperm.slane %v47, 7
    %v4391 = vperm.slane %v48, 7
    %v4392 = vmul.f32 %v63, %v4390
    %v4393 = vmul.f32 %v63, %v4391
    %v4394 = vmul.f32 %v67, %v4390
    %v4395 = vmul.f32 %v67, %v4391
    %v4396 = vadd.f32 %v4386, %v4392
    %v4397 = vadd.f32 %v4387, %v4393
    %v4398 = vadd.f32 %v4388, %v4394
    %v4399 = vadd.f32 %v4389, %v4395
    %v4400 = vadd.f32 %v4396, %v74
    %v4401 = vadd.f32 %v4397, %v74
    %v4402 = vadd.f32 %v4398, %v79
    %v4403 = vadd.f32 %v4399, %v79
    %v4404 = vmax.f32 %v4400, 0.0
    %v4405 = vmax.f32 %v4401, 0.0
    %v4406 = vmax.f32 %v4402, 0.0
    %v4407 = vmax.f32 %v4403, 0.0
    %4408 = vmatpush.msra.mxu0 0.0
    %4409 = vmatpush.msra.mxu0 0.0
    %4410 = vmatpush.msra.mxu0 0.0
    %4411 = vmatpush.msra.mxu0 0.0
    %4412 = vmatpush.msra.mxu0 0.0
    %4413 = vmatpush.msra.mxu0 0.0
    %4414 = vmatpush.msra.mxu0 0.0
    %4415 = vmatpush.msra.mxu0 0.0
    %4416 = vmatpush.msra.mxu0 0.0
    %4417 = vmatpush.msra.mxu0 0.0
    %4418 = vmatpush.msra.mxu0 0.0
    %4419 = vmatpush.msra.mxu0 0.0
    %4420 = vmatpush.msra.mxu0 0.0
    %4421 = vmatpush.msra.mxu0 0.0
    %4422 = vmatpush.msra.mxu0 %v4406
    %4423 = vmatpush.msra.mxu0 %v4404
    %4424 = vmatmul.f32.gmra.mxu0 %v219
    %v4425 = vpop.f32.mrf.mxu0
    %v4426 = vadd.f32 %v116, %v4425
    %4427 = vmatmul.f32.gmra.mxu0 %v222
    %v4428 = vpop.f32.mrf.mxu0
    %v4429 = vadd.f32 %v121, %v4428
    %4430 = vmatmul.f32.gmra.mxu0 %v225
    %v4431 = vpop.f32.mrf.mxu0
    %v4432 = vadd.f32 %v126, %v4431
    %4433 = vmatmul.f32.gmra.mxu0 %v228
    %v4434 = vpop.f32.mrf.mxu0
    %v4435 = vadd.f32 %v131, %v4434
    %4436 = vmatmul.f32.gmra.mxu0 %v231
    %v4437 = vpop.f32.mrf.mxu0
    %v4438 = vadd.f32 %v136, %v4437
    %4439 = vmatmul.f32.gmra.mxu0 %v234
    %v4440 = vpop.f32.mrf.mxu0
    %v4441 = vadd.f32 %v141, %v4440
    %4442 = vmatmul.f32.gmra.mxu0 %v237
    %v4443 = vpop.f32.mrf.mxu0
    %v4444 = vadd.f32 %v146, %v4443
    %4445 = vmatmul.f32.gmra.mxu0 %v240
    %v4446 = vpop.f32.mrf.mxu0
    %v4447 = vadd.f32 %v151, %v4446
    %4448 = vmatmul.f32.gmra.mxu0 %v243
    %v4449 = vpop.f32.mrf.mxu0
    %v4450 = vadd.f32 %v156, %v4449
    %4451 = vmatmul.f32.gmra.mxu0 %v246
    %v4452 = vpop.f32.mrf.mxu0
    %v4453 = vadd.f32 %v161, %v4452
    %4454 = vmatmul.f32.gmra.mxu0 %v249
    %v4455 = vpop.f32.mrf.mxu0
    %v4456 = vadd.f32 %v166, %v4455
    %4457 = vmatmul.f32.gmra.mxu0 %v252
    %v4458 = vpop.f32.mrf.mxu0
    %v4459 = vadd.f32 %v171, %v4458
    %4460 = vmatmul.f32.gmra.mxu0 %v255
    %v4461 = vpop.f32.mrf.mxu0
    %v4462 = vadd.f32 %v176, %v4461
    %4463 = vmatmul.f32.gmra.mxu0 %v258
    %v4464 = vpop.f32.mrf.mxu0
    %v4465 = vadd.f32 %v181, %v4464
    %4466 = vmatmul.f32.gmra.mxu0 %v261
    %v4467 = vpop.f32.mrf.mxu0
    %v4468 = vadd.f32 %v186, %v4467
    %4469 = vmatmul.f32.gmra.mxu0 %v264
    %v4470 = vpop.f32.mrf.mxu0
    %v4471 = vadd.f32 %v191, %v4470
    %4472 = vdwg.mxu0
    %4473 = vmatpush.msra.mxu0 0.0
    %4474 = vmatpush.msra.mxu0 0.0
    %4475 = vmatpush.msra.mxu0 0.0
    %4476 = vmatpush.msra.mxu0 0.0
    %4477 = vmatpush.msra.mxu0 0.0
    %4478 = vmatpush.msra.mxu0 0.0
    %4479 = vmatpush.msra.mxu0 0.0
    %4480 = vmatpush.msra.mxu0 0.0
    %4481 = vmatpush.msra.mxu0 0.0
    %4482 = vmatpush.msra.mxu0 0.0
    %4483 = vmatpush.msra.mxu0 0.0
    %4484 = vmatpush.msra.mxu0 0.0
    %4485 = vmatpush.msra.mxu0 0.0
    %4486 = vmatpush.msra.mxu0 0.0
    %4487 = vmatpush.msra.mxu0 %v4407
    %4488 = vmatpush.msra.mxu0 %v4405
    %4489 = vmatmul.f32.gmra.mxu0 %v219
    %v4490 = vpop.f32.mrf.mxu0
    %v4491 = vadd.f32 %v116, %v4490
    %4492 = vmatmul.f32.gmra.mxu0 %v222
    %v4493 = vpop.f32.mrf.mxu0
    %v4494 = vadd.f32 %v121, %v4493
    %4495 = vmatmul.f32.gmra.mxu0 %v225
    %v4496 = vpop.f32.mrf.mxu0
    %v4497 = vadd.f32 %v126, %v4496
    %4498 = vmatmul.f32.gmra.mxu0 %v228
    %v4499 = vpop.f32.mrf.mxu0
    %v4500 = vadd.f32 %v131, %v4499
    %4501 = vmatmul.f32.gmra.mxu0 %v231
    %v4502 = vpop.f32.mrf.mxu0
    %v4503 = vadd.f32 %v136, %v4502
    %4504 = vmatmul.f32.gmra.mxu0 %v234
    %v4505 = vpop.f32.mrf.mxu0
    %v4506 = vadd.f32 %v141, %v4505
    %4507 = vmatmul.f32.gmra.mxu0 %v237
    %v4508 = vpop.f32.mrf.mxu0
    %v4509 = vadd.f32 %v146, %v4508
    %4510 = vmatmul.f32.gmra.mxu0 %v240
    %v4511 = vpop.f32.mrf.mxu0
    %v4512 = vadd.f32 %v151, %v4511
    %4513 = vmatmul.f32.gmra.mxu0 %v243
    %v4514 = vpop.f32.mrf.mxu0
    %v4515 = vadd.f32 %v156, %v4514
    %4516 = vmatmul.f32.gmra.mxu0 %v246
    %v4517 = vpop.f32.mrf.mxu0
    %v4518 = vadd.f32 %v161, %v4517
    %4519 = vmatmul.f32.gmra.mxu0 %v249
    %v4520 = vpop.f32.mrf.mxu0
    %v4521 = vadd.f32 %v166, %v4520
    %4522 = vmatmul.f32.gmra.mxu0 %v252
    %v4523 = vpop.f32.mrf.mxu0
    %v4524 = vadd.f32 %v171, %v4523
    %4525 = vmatmul.f32.gmra.mxu0 %v255
    %v4526 = vpop.f32.mrf.mxu0
    %v4527 = vadd.f32 %v176, %v4526
    %4528 = vmatmul.f32.gmra.mxu0 %v258
    %v4529 = vpop.f32.mrf.mxu0
    %v4530 = vadd.f32 %v181, %v4529
    %4531 = vmatmul.f32.gmra.mxu0 %v261
    %v4532 = vpop.f32.mrf.mxu0
    %v4533 = vadd.f32 %v186, %v4532
    %4534 = vmatmul.f32.gmra.mxu0 %v264
    %v4535 = vpop.f32.mrf.mxu0
    %v4536 = vadd.f32 %v191, %v4535
    %4537 = vdwg.mxu0
    %v4538 = vmax.f32 %v4426, 0.0
    %v4539 = vmax.f32 %v4491, 0.0
    %v4540 = vmax.f32 %v4429, 0.0
    %v4541 = vmax.f32 %v4494, 0.0
    %v4542 = vmax.f32 %v4432, 0.0
    %v4543 = vmax.f32 %v4497, 0.0
    %v4544 = vmax.f32 %v4435, 0.0
    %v4545 = vmax.f32 %v4500, 0.0
    %v4546 = vmax.f32 %v4438, 0.0
    %v4547 = vmax.f32 %v4503, 0.0
    %v4548 = vmax.f32 %v4441, 0.0
    %v4549 = vmax.f32 %v4506, 0.0
    %v4550 = vmax.f32 %v4444, 0.0
    %v4551 = vmax.f32 %v4509, 0.0
    %v4552 = vmax.f32 %v4447, 0.0
    %v4553 = vmax.f32 %v4512, 0.0
    %v4554 = vmax.f32 %v4450, 0.0
    %v4555 = vmax.f32 %v4515, 0.0
    %v4556 = vmax.f32 %v4453, 0.0
    %v4557 = vmax.f32 %v4518, 0.0
    %v4558 = vmax.f32 %v4456, 0.0
    %v4559 = vmax.f32 %v4521, 0.0
    %v4560 = vmax.f32 %v4459, 0.0
    %v4561 = vmax.f32 %v4524, 0.0
    %v4562 = vmax.f32 %v4462, 0.0
    %v4563 = vmax.f32 %v4527, 0.0
    %v4564 = vmax.f32 %v4465, 0.0
    %v4565 = vmax.f32 %v4530, 0.0
    %v4566 = vmax.f32 %v4468, 0.0
    %v4567 = vmax.f32 %v4533, 0.0
    %v4568 = vmax.f32 %v4471, 0.0
    %v4569 = vmax.f32 %v4536, 0.0
    %v4570 = vmax.f32 %v4352, %v4538
    %v4571 = vmax.f32 %v4353, %v4539
    %v4572 = vmax.f32 %v4354, %v4540
    %v4573 = vmax.f32 %v4355, %v4541
    %v4574 = vmax.f32 %v4356, %v4542
    %v4575 = vmax.f32 %v4357, %v4543
    %v4576 = vmax.f32 %v4358, %v4544
    %v4577 = vmax.f32 %v4359, %v4545
    %v4578 = vmax.f32 %v4360, %v4546
    %v4579 = vmax.f32 %v4361, %v4547
    %v4580 = vmax.f32 %v4362, %v4548
    %v4581 = vmax.f32 %v4363, %v4549
    %v4582 = vmax.f32 %v4364, %v4550
    %v4583 = vmax.f32 %v4365, %v4551
    %v4584 = vmax.f32 %v4366, %v4552
    %v4585 = vmax.f32 %v4367, %v4553
    %v4586 = vmax.f32 %v4368, %v4554
    %v4587 = vmax.f32 %v4369, %v4555
    %v4588 = vmax.f32 %v4370, %v4556
    %v4589 = vmax.f32 %v4371, %v4557
    %v4590 = vmax.f32 %v4372, %v4558
    %v4591 = vmax.f32 %v4373, %v4559
    %v4592 = vmax.f32 %v4374, %v4560
    %v4593 = vmax.f32 %v4375, %v4561
    %v4594 = vmax.f32 %v4376, %v4562
    %v4595 = vmax.f32 %v4377, %v4563
    %v4596 = vmax.f32 %v4378, %v4564
    %v4597 = vmax.f32 %v4379, %v4565
    %v4598 = vmax.f32 %v4380, %v4566
    %v4599 = vmax.f32 %v4381, %v4567
    %v4600 = vmax.f32 %v4382, %v4568
    %v4601 = vmax.f32 %v4383, %v4569
    %v4602 = vld [vmem:[%s5] sm:$0xff]
    %v4603 = vld [vmem:[%s5 + $0x8] sm:$0xff]
    %v4604 = vld [vmem:[%s5 + $0x10] sm:$0xff]
    %v4605 = vld [vmem:[%s5 + $0x18] sm:$0xff]
    %v4606 = vld [vmem:[%s6] sm:$0xff]
    %v4607 = vld [vmem:[%s6 + $0x8] sm:$0xff]
    %v4608 = vld [vmem:[%s6 + $0x10] sm:$0xff]
    %v4609 = vld [vmem:[%s6 + $0x18] sm:$0xff]
    %4611 = vset.pattern.permute.xlu0 0
    %4612 = vperm.xlu0 %4611, %v4606
    %v4613 = vpop.permute.xlu0 %4612
    %4616 = vset.pattern.permute.xlu0 0
    %4617 = vperm.xlu0 %4616, %v4607
    %v4618 = vpop.permute.xlu0 %4617
    %4621 = vset.pattern.permute.xlu0 0
    %4622 = vperm.xlu0 %4621, %v4608
    %v4623 = vpop.permute.xlu0 %4622
    %4626 = vset.pattern.permute.xlu0 0
    %4627 = vperm.xlu0 %4626, %v4609
    %v4628 = vpop.permute.xlu0 %4627
    %4630 = vmatpush.msra.mxu0 %v4600
    %4631 = vmatpush.msra.mxu0 %v4598
    %4632 = vmatpush.msra.mxu0 %v4596
    %4633 = vmatpush.msra.mxu0 %v4594
    %4634 = vmatpush.msra.mxu0 %v4592
    %4635 = vmatpush.msra.mxu0 %v4590
    %4636 = vmatpush.msra.mxu0 %v4588
    %4637 = vmatpush.msra.mxu0 %v4586
    %4638 = vmatpush.msra.mxu0 %v4584
    %4639 = vmatpush.msra.mxu0 %v4582
    %4640 = vmatpush.msra.mxu0 %v4580
    %4641 = vmatpush.msra.mxu0 %v4578
    %4642 = vmatpush.msra.mxu0 %v4576
    %4643 = vmatpush.msra.mxu0 %v4574
    %4644 = vmatpush.msra.mxu0 %v4572
    %4645 = vmatpush.msra.mxu0 %v4570
    %4646 = vmatmul.f32.gmra.mxu0 %v4602
    %v4647 = vpop.f32.mrf.mxu0
    %v4648 = vadd.f32 %v4613, %v4647
    %4649 = vmatmul.f32.gmra.mxu0 %v4603
    %v4650 = vpop.f32.mrf.mxu0
    %v4651 = vadd.f32 %v4618, %v4650
    %4652 = vmatmul.f32.gmra.mxu0 %v4604
    %v4653 = vpop.f32.mrf.mxu0
    %v4654 = vadd.f32 %v4623, %v4653
    %4655 = vmatmul.f32.gmra.mxu0 %v4605
    %v4656 = vpop.f32.mrf.mxu0
    %v4657 = vadd.f32 %v4628, %v4656
    %4658 = vdwg.mxu0
    %4659 = vmatpush.msra.mxu0 %v4601
    %4660 = vmatpush.msra.mxu0 %v4599
    %4661 = vmatpush.msra.mxu0 %v4597
    %4662 = vmatpush.msra.mxu0 %v4595
    %4663 = vmatpush.msra.mxu0 %v4593
    %4664 = vmatpush.msra.mxu0 %v4591
    %4665 = vmatpush.msra.mxu0 %v4589
    %4666 = vmatpush.msra.mxu0 %v4587
    %4667 = vmatpush.msra.mxu0 %v4585
    %4668 = vmatpush.msra.mxu0 %v4583
    %4669 = vmatpush.msra.mxu0 %v4581
    %4670 = vmatpush.msra.mxu0 %v4579
    %4671 = vmatpush.msra.mxu0 %v4577
    %4672 = vmatpush.msra.mxu0 %v4575
    %4673 = vmatpush.msra.mxu0 %v4573
    %4674 = vmatpush.msra.mxu0 %v4571
    %4675 = vmatmul.f32.gmra.mxu0 %v4602
    %v4676 = vpop.f32.mrf.mxu0
    %v4677 = vadd.f32 %v4613, %v4676
    %4678 = vmatmul.f32.gmra.mxu0 %v4603
    %v4679 = vpop.f32.mrf.mxu0
    %v4680 = vadd.f32 %v4618, %v4679
    %4681 = vmatmul.f32.gmra.mxu0 %v4604
    %v4682 = vpop.f32.mrf.mxu0
    %v4683 = vadd.f32 %v4623, %v4682
    %4684 = vmatmul.f32.gmra.mxu0 %v4605
    %v4685 = vpop.f32.mrf.mxu0
    %v4686 = vadd.f32 %v4628, %v4685
    %4687 = vdwg.mxu0
    %v4688 = vmax.f32 %v4648, 0.0
    %v4689 = vmax.f32 %v4677, 0.0
    %v4690 = vmax.f32 %v4651, 0.0
    %v4691 = vmax.f32 %v4680, 0.0
    %v4692 = vmax.f32 %v4654, 0.0
    %v4693 = vmax.f32 %v4683, 0.0
    %v4694 = vmax.f32 %v4657, 0.0
    %v4695 = vmax.f32 %v4686, 0.0
    %v4696 = vld [vmem:[%s7] sm:$0xff]
    %v4697 = vld [vmem:[%s7 + $0x8] sm:$0xff]
    %v4698 = vld [vmem:[%s8] sm:$0xff]
    %v4699 = vld [vmem:[%s8 + $0x8] sm:$0xff]
    %4701 = vset.pattern.permute.xlu0 0
    %4702 = vperm.xlu0 %4701, %v4698
    %v4703 = vpop.permute.xlu0 %4702
    %4706 = vset.pattern.permute.xlu0 0
    %4707 = vperm.xlu0 %4706, %v4699
    %v4708 = vpop.permute.xlu0 %4707
    %vm4710 = vcmask 261120
    %v4712 = vsel %vm4710, %v4696, 0
    %v4715 = vsel %vm4710, %v4697, 0
    %4717 = vmatpush.msra.mxu0 0.0
    %4718 = vmatpush.msra.mxu0 0.0
    %4719 = vmatpush.msra.mxu0 0.0
    %4720 = vmatpush.msra.mxu0 0.0
    %4721 = vmatpush.msra.mxu0 0.0
    %4722 = vmatpush.msra.mxu0 0.0
    %4723 = vmatpush.msra.mxu0 0.0
    %4724 = vmatpush.msra.mxu0 0.0
    %4725 = vmatpush.msra.mxu0 0.0
    %4726 = vmatpush.msra.mxu0 0.0
    %4727 = vmatpush.msra.mxu0 0.0
    %4728 = vmatpush.msra.mxu0 0.0
    %4729 = vmatpush.msra.mxu0 %v4694
    %4730 = vmatpush.msra.mxu0 %v4692
    %4731 = vmatpush.msra.mxu0 %v4690
    %4732 = vmatpush.msra.mxu0 %v4688
    %4733 = vmatmul.f32.gmra.mxu0 %v4712
    %v4734 = vpop.f32.mrf.mxu0
    %v4735 = vadd.f32 %v4703, %v4734
    %4736 = vmatmul.f32.gmra.mxu0 %v4715
    %v4737 = vpop.f32.mrf.mxu0
    %v4738 = vadd.f32 %v4708, %v4737
    %4739 = vdwg.mxu0
    %4740 = vmatpush.msra.mxu0 0.0
    %4741 = vmatpush.msra.mxu0 0.0
    %4742 = vmatpush.msra.mxu0 0.0
    %4743 = vmatpush.msra.mxu0 0.0
    %4744 = vmatpush.msra.mxu0 0.0
    %4745 = vmatpush.msra.mxu0 0.0
    %4746 = vmatpush.msra.mxu0 0.0
    %4747 = vmatpush.msra.mxu0 0.0
    %4748 = vmatpush.msra.mxu0 0.0
    %4749 = vmatpush.msra.mxu0 0.0
    %4750 = vmatpush.msra.mxu0 0.0
    %4751 = vmatpush.msra.mxu0 0.0
    %4752 = vmatpush.msra.mxu0 %v4695
    %4753 = vmatpush.msra.mxu0 %v4693
    %4754 = vmatpush.msra.mxu0 %v4691
    %4755 = vmatpush.msra.mxu0 %v4689
    %4756 = vmatmul.f32.gmra.mxu0 %v4712
    %v4757 = vpop.f32.mrf.mxu0
    %v4758 = vadd.f32 %v4703, %v4757
    %4759 = vmatmul.f32.gmra.mxu0 %v4715
    %v4760 = vpop.f32.mrf.mxu0
    %v4761 = vadd.f32 %v4708, %v4760
    %4762 = vdwg.mxu0
    %v4763 = vmax.f32 %v4735, 0.0
    %v4764 = vmax.f32 %v4758, 0.0
    %v4765 = vmax.f32 %v4738, 0.0
    %v4766 = vmax.f32 %v4761, 0.0
    %v4767 = vld [vmem:[%s9] sm:$0xf]
    %v4768 = vld [vmem:[%s10] sm:$0xf]
    %4770 = vset.pattern.permute.xlu0 0
    %4771 = vperm.xlu0 %4770, %v4768
    %v4772 = vpop.permute.xlu0 %4771
    %v4775 = vsel %vm217, %v4767, 0
    %4777 = vmatpush.msra.mxu0 0.0
    %4778 = vmatpush.msra.mxu0 0.0
    %4779 = vmatpush.msra.mxu0 0.0
    %4780 = vmatpush.msra.mxu0 0.0
    %4781 = vmatpush.msra.mxu0 0.0
    %4782 = vmatpush.msra.mxu0 0.0
    %4783 = vmatpush.msra.mxu0 0.0
    %4784 = vmatpush.msra.mxu0 0.0
    %4785 = vmatpush.msra.mxu0 0.0
    %4786 = vmatpush.msra.mxu0 0.0
    %4787 = vmatpush.msra.mxu0 0.0
    %4788 = vmatpush.msra.mxu0 0.0
    %4789 = vmatpush.msra.mxu0 0.0
    %4790 = vmatpush.msra.mxu0 0.0
    %4791 = vmatpush.msra.mxu0 %v4765
    %4792 = vmatpush.msra.mxu0 %v4763
    %4793 = vmatmul.f32.gmra.mxu0 %v4775
    %v4794 = vpop.f32.mrf.mxu0
    %v4795 = vadd.f32 %v4772, %v4794
    %4796 = vdwg.mxu0
    %4797 = vmatpush.msra.mxu0 0.0
    %4798 = vmatpush.msra.mxu0 0.0
    %4799 = vmatpush.msra.mxu0 0.0
    %4800 = vmatpush.msra.mxu0 0.0
    %4801 = vmatpush.msra.mxu0 0.0
    %4802 = vmatpush.msra.mxu0 0.0
    %4803 = vmatpush.msra.mxu0 0.0
    %4804 = vmatpush.msra.mxu0 0.0
    %4805 = vmatpush.msra.mxu0 0.0
    %4806 = vmatpush.msra.mxu0 0.0
    %4807 = vmatpush.msra.mxu0 0.0
    %4808 = vmatpush.msra.mxu0 0.0
    %4809 = vmatpush.msra.mxu0 0.0
    %4810 = vmatpush.msra.mxu0 0.0
    %4811 = vmatpush.msra.mxu0 %v4766
    %4812 = vmatpush.msra.mxu0 %v4764
    %4813 = vmatmul.f32.gmra.mxu0 %v4775
    %v4814 = vpop.f32.mrf.mxu0
    %v4815 = vadd.f32 %v4772, %v4814
    %4816 = vdwg.mxu0
    %v4819 = vrot.slane %v4815, 4
    %vm4820 = vcmask 1043456
    %v4821 = vsel %vm4820, %v4795, %v4819
    %4823 = vst [vmem:[#allocation2] sm:$0xff] %v4821
    // Predicated region
    $region46: #{tpu_custom_call.1} parent=1 // pred_check
      _
    $region47: #{tpu_custom_call.1} parent=1 // pred_check_branch
      %4825 = sbr.rel (0) target = $region49
    $region48: #{tpu_custom_call.1} parent=1 // pred_region
      %4827 = vsyncadd [#allocation3], 0
      %s4829 = sshll.u32 [#allocation2], 4
      %s4830 = int_to_ptr.vmem [resolvable:$true] %s4829
      %s4831 = sshll.u32 %s11, 4
      %s4832 = int_to_ptr.hbm [resolvable:$true] %s4831
      %4834 = dma.vmem_to_hbm [thread:$0]  %s4830, 128, %s4832, [#allocation3]
    $region49: #{tpu_custom_call.1} parent=1 // pred_fallthru
      _
    // Predicated region
    $region50: #{tpu_custom_call.1} parent=1 // pred_check
      _
    $region51: #{tpu_custom_call.1} parent=1 // pred_check_branch
      %4836 = sbr.rel (0) target = $region53
    $region52: #{tpu_custom_call.1} parent=1 // pred_region
      %4838 = dma.done [#allocation3], 128
    $region53: #{tpu_custom_call.1} parent=1 // pred_fallthru
      _
    %4839 = vsyncpa [#allocation3], 1

</llo_original>
